<compile_context>
chip_gen: v7x
topology: tpu7x:2x2x1
jax: 0.10.0
libtpu: 0.0.40
codegen_flags: <defaults>
</compile_context>

<pallas_src>
import functools

import jax
import jax.numpy as jnp
from jax import lax
from jax.experimental import pallas as pl
from jax.experimental.pallas import tpu as pltpu


# ----------------------------------------------------------------------------
# Pallas kernel
# ----------------------------------------------------------------------------
def _timeshap_gose_kernel(threshold_idx,
                          x_ref, comb_ref, wih_ref, bgi_ref, bhn_ref,
                          whh_ref, wout_ref, bout_ref,
                          gose_ref, hidden_ref,
                          gi_ref):
    """Fused forward pass for one batch block (batch on the lane dimension).

    Inputs (VMEM):
      x_ref    : (T, V, Bb)   time-major, batch-on-lanes input block
      comb_ref : (E+1, V)     [comb_embedding^T ; ones] -- last row = row sums
      wih_ref  : (3H, E)      GRU W_ih, gates [r; z; n]
      bgi_ref  : (3H, 1)      b_ih with b_hh folded into r/z gates
      bhn_ref  : (H, 1)       b_hh for the n gate
      whh_ref  : (3H, H)      GRU W_hh (all gates fused)
      wout_ref : (C, H)       hidden2gose weight
      bout_ref : (C, 1)       hidden2gose bias
    Outputs:
      gose_ref   : (1, Bb)
      hidden_ref : (H, Bb)
    Scratch:
      gi_ref   : (T, 3H, Bb)  hoisted per-timestep input projections
    """
    T, V, Bb = x_ref.shape
    H = bhn_ref.shape[0]
    E = wih_ref.shape[1]
    C = wout_ref.shape[0]

    comb_t = comb_ref[...]                                  # (E+1, V)
    wih = wih_ref[...]                                      # (3H, E)
    bgi = jnp.broadcast_to(bgi_ref[...], (3 * H, Bb))       # hoisted broadcast

    # --- prologue: embedding + hoisted GRU input projection, one slab per t --
    def proj_step(t, carry):
        emb_aug = jnp.dot(comb_t, x_ref[t],
                          preferred_element_type=jnp.float32)        # (E+1, Bb)
        rs = emb_aug[E:E + 1, :]                                       # row sums
        inv = 1.0 / jnp.where(rs == 0.0, 1.0, rs)
        emb = jnp.maximum(emb_aug[:E, :] * inv, 0.0)                   # (E, Bb)
        gi_ref[t] = jnp.dot(wih, emb,
                            preferred_element_type=jnp.float32) + bgi  # (3H, Bb)
        return carry

    lax.fori_loop(0, T, proj_step, 0, unroll=True)

    # --- GRU recurrence: one fused (3H,H)@(H,Bb) dot per step -----------------
    whh = whh_ref[...]                                      # (3H, H)
    bhn = jnp.broadcast_to(bhn_ref[...], (H, Bb))           # hoisted broadcast

    def gru_step(t, h):                                     # h: (H, Bb)
        gh = jnp.dot(whh, h, preferred_element_type=jnp.float32)   # (3H, Bb)
        gi = gi_ref[t]                                              # (3H, Bb)
        r = jax.nn.sigmoid(gi[:H] + gh[:H])
        z = jax.nn.sigmoid(gi[H:2 * H] + gh[H:2 * H])
        n = jnp.tanh(gi[2 * H:] + r * (gh[2 * H:] + bhn))
        return (1.0 - z) * n + z * h

    hT = lax.fori_loop(0, T, gru_step, jnp.zeros((H, Bb), jnp.float32),
                       unroll=True)                          # (H, Bb)
    hidden_ref[...] = hT

    # --- hidden2gose + softmax (exact reciprocal; C is tiny) -----------------
    logits = jnp.dot(wout_ref[...], hT,
                     preferred_element_type=jnp.float32) + bout_ref[...]  # (C, Bb)
    m = jnp.max(logits, axis=0, keepdims=True)
    e = jnp.exp(logits - m)
    probs = e / jnp.sum(e, axis=0, keepdims=True)

    if threshold_idx == -1:
        # expected GOSE: sum_c probs[c] * c
        idx = lax.broadcasted_iota(jnp.float32, (C, 1), 0)
        gose_ref[...] = jnp.sum(probs * idx, axis=0, keepdims=True)
    else:
        # (1 - cumsum(probs))[ti] == 1 - sum(probs[:ti+1])
        gose_ref[...] = 1.0 - jnp.sum(probs[:threshold_idx + 1, :],
                                      axis=0, keepdims=True)


# ----------------------------------------------------------------------------
# Wrapper (one-time layout plumbing in XLA + pallas_call)
# ----------------------------------------------------------------------------
def _round_up(a, m):
    return ((a + m - 1) // m) * m


def timeshap_gose_forward(x, params, threshold_idx, block_b=None):
    """x: (B, T, V) float32. Returns (gose_out, hidden) matching the torch module."""
    B, T, V = x.shape
    H = params["whh"].shape[1]
    E = params["wih"].shape[1]
    C = params["wout"].shape[0]

    # Batch blocking: lane-dense 128/256-wide blocks with >=2 grid steps for
    # large TimeSHAP batches (engages both v7x TensorCores); tiny batches run
    # as a single 8-row-padded block.  Non-divisible B is padded, never lumped
    # into one oversized block.
    if block_b is None:
        if B >= 512:
            block_b = 256
        elif B > 128:
            block_b = 128
        else:
            block_b = _round_up(B, 8)
    block_b = max(8, _round_up(block_b, 8))
    B_pad = _round_up(B, block_b)
    n_blocks = B_pad // block_b

    x = x.astype(jnp.float32)
    if B_pad != B:
        x = jnp.pad(x, ((0, B_pad - B), (0, 0), (0, 0)))
    x_t = jnp.transpose(x, (1, 2, 0))                        # (T, V, B_pad)

    # One-time layout plumbing done by XLA outside the kernel.
    comb_aug = jnp.concatenate(
        [params["comb"].T, jnp.ones((1, V), jnp.float32)], axis=0)   # (E+1, V)
    bih = params["bih"].reshape(3 * H, 1)
    bhh = params["bhh"].reshape(3 * H, 1)
    b_gi = bih + jnp.concatenate(
        [bhh[:2 * H], jnp.zeros((H, 1), jnp.float32)], axis=0)       # (3H, 1)
    b_hn = bhh[2 * H:]                                               # (H, 1)
    bout = params["bout"].reshape(C, 1)

    kernel = functools.partial(_timeshap_gose_kernel, threshold_idx)

    def wspec(shape):
        return pl.BlockSpec(shape, lambda i: (0,) * len(shape))

    gose_t, hidden_t = pl.pallas_call(
        kernel,
        out_shape=(jax.ShapeDtypeStruct((1, B_pad), jnp.float32),
                   jax.ShapeDtypeStruct((H, B_pad), jnp.float32)),
        grid=(n_blocks,),
        in_specs=[
            pl.BlockSpec((T, V, block_b), lambda i: (0, 0, i)),  # x (batch on lanes)
            wspec((E + 1, V)),                                   # [comb^T ; ones]
            wspec((3 * H, E)),                                   # W_ih
            wspec((3 * H, 1)),                                   # b_ih (+ b_hh r/z)
            wspec((H, 1)),                                       # b_hh (n gate)
            wspec((3 * H, H)),                                   # W_hh (fused)
            wspec((C, H)),                                       # W_out
            wspec((C, 1)),                                       # b_out
        ],
        out_specs=(pl.BlockSpec((1, block_b), lambda i: (0, i)),
                   pl.BlockSpec((H, block_b), lambda i: (0, i))),
        scratch_shapes=[
            pltpu.VMEM((T, 3 * H, block_b), jnp.float32),        # packed gi slabs
        ],
        compiler_params=pltpu.CompilerParams(
            dimension_semantics=("parallel",),
            vmem_limit_bytes=32 * 1024 * 1024),
    )(x_t, comb_aug, params["wih"], b_gi, b_hn, params["whh"],
      params["wout"], bout)

    gose = gose_t[0, :B]                                     # (B,)
    hidden = hidden_t[:, :B].T                               # (B, H)

    if threshold_idx == -1:
        gose_out = gose[:, None]                             # (B, 1) expected GOSE
    else:
        gose_out = gose                                      # (B,)  prob above threshold
    hidden_out = hidden[None, :, :]                          # (num_layers=1, B, H)
    return gose_out, hidden_out


# ----------------------------------------------------------------------------
# Pure-JAX reference (for sanity check)
# ----------------------------------------------------------------------------
def reference_forward(x, params, threshold_idx):
    comb = params["comb"]
    row_sums = jnp.sum(x, axis=-1, keepdims=True)
    row_sums = jnp.where(row_sums == 0.0, 1.0, row_sums)
    emb = jax.nn.relu(jnp.einsum("btv,ve->bte", x, comb) / row_sums)

    H = params["whh"].shape[1]
    wih, whh = params["wih"], params["whh"]
    bih, bhh = params["bih"][0], params["bhh"][0]

    def step(h, xt):
        gi = xt @ wih.T + bih
        gh = h @ whh.T + bhh
        r = jax.nn.sigmoid(gi[:, :H] + gh[:, :H])
        z = jax.nn.sigmoid(gi[:, H:2 * H] + gh[:, H:2 * H])
        n = jnp.tanh(gi[:, 2 * H:] + r * gh[:, 2 * H:])
        h_new = (1.0 - z) * n + z * h
        return h_new, None

    h0 = jnp.zeros((x.shape[0], H), jnp.float32)
    hT, _ = lax.scan(step, h0, jnp.swapaxes(emb, 0, 1))
    logits = hT @ params["wout"].T + params["bout"][0]
    probs = jax.nn.softmax(logits, axis=-1)
    if threshold_idx == -1:
        out = probs @ jnp.arange(probs.shape[1], dtype=jnp.float32)[:, None]
    else:
        out = (1.0 - jnp.cumsum(probs, axis=-1))[:, threshold_idx]
    return out, hT[None]


# ----------------------------------------------------------------------------
# Parameter construction (deterministic, mimics the torch __init__)
# ----------------------------------------------------------------------------
def make_params(key, vocab0, cols_to_add, unknown_index, E, H, C):
    ks = jax.random.split(key, 8)
    embedX = 0.1 * jax.random.normal(ks[0], (vocab0, E), jnp.float32)
    embedW = 0.1 * jax.random.normal(ks[1], (vocab0, 1), jnp.float32)

    # extend embedding tables with copies of the <unk> row
    unk_x = jnp.tile(embedX[unknown_index][None, :], (cols_to_add, 1))
    unk_w = jnp.tile(embedW[unknown_index][None, :], (cols_to_add, 1))
    embedX = jnp.concatenate([embedX, unk_x], axis=0)        # (V, E)
    embedW = jnp.concatenate([embedW, unk_w], axis=0)        # (V, 1)
    comb = embedX * jnp.exp(embedW)                          # broadcast over E

    params = {
        "comb": comb.astype(jnp.float32),
        "wih":  (0.1 * jax.random.normal(ks[2], (3 * H, E))).astype(jnp.float32),
        "whh":  (0.1 * jax.random.normal(ks[3], (3 * H, H))).astype(jnp.float32),
        "bih":  (0.1 * jax.random.normal(ks[4], (1, 3 * H))).astype(jnp.float32),
        "bhh":  (0.1 * jax.random.normal(ks[5], (1, 3 * H))).astype(jnp.float32),
        "wout": (0.1 * jax.random.normal(ks[6], (C, H))).astype(jnp.float32),
        "bout": (0.1 * jax.random.normal(ks[7], (1, C))).astype(jnp.float32),
    }
    return params


if __name__ == "__main__":
    # Small shapes consistent with the module's forward pass.
    vocab0, cols_to_add = 20, 4  # original vocab + added <unk> rows
    V = vocab0 + cols_to_add     # token (feature) dimension of x
    T = 8                        # sequence length
    E, H, C = 32, 32, 7          # embedding dim, GRU hidden dim, #GOSE classes
    unknown_index = 1

    key = jax.random.PRNGKey(0)
    kx, kx2, kp = jax.random.split(key, 3)
    params = make_params(kp, vocab0, cols_to_add, unknown_index, E, H, C)

    # Small demo batch + a larger non-divisible batch (exercises the padded,
    # multi-block grid path).
    test_batches = [
        (jax.random.uniform(kx, (2, T, V)) < 0.25).astype(jnp.float32),
        (jax.random.uniform(kx2, (300, T, V)) < 0.25).astype(jnp.float32),
    ]

    for x in test_batches:
        # Exercise both heads: threshold prob (idx=2) and expected GOSE (idx=-1).
        for threshold_idx in (2, -1):
            gose_out, hidden_out = timeshap_gose_forward(x, params, threshold_idx)
            jax.block_until_ready((gose_out, hidden_out))

            ref_gose, ref_hidden = reference_forward(x, params, threshold_idx)
            assert jnp.allclose(hidden_out, ref_hidden, atol=1e-5, rtol=1e-5)
            assert jnp.allclose(gose_out, ref_gose, atol=2e-5, rtol=1e-4)

    print("KERNEL_OK")
</pallas_src>

<mosaic_0001>
module attributes {stable_mosaic.version = 11 : i64} {
  func.func @_timeshap_gose_kernel(%arg0: i32, %arg1: memref<8x24x8xf32, #tpu.memory_space<vmem>>, %arg2: memref<33x24xf32, #tpu.memory_space<vmem>>, %arg3: memref<96x32xf32, #tpu.memory_space<vmem>>, %arg4: memref<96x1xf32, #tpu.memory_space<vmem>>, %arg5: memref<32x1xf32, #tpu.memory_space<vmem>>, %arg6: memref<96x32xf32, #tpu.memory_space<vmem>>, %arg7: memref<7x32xf32, #tpu.memory_space<vmem>>, %arg8: memref<7x1xf32, #tpu.memory_space<vmem>>, %arg9: memref<1x8xf32, #tpu.memory_space<vmem>>, %arg10: memref<32x8xf32, #tpu.memory_space<vmem>>, %arg11: memref<8x96x8xf32, #tpu.memory_space<vmem>>) attributes {dimension_semantics = [#tpu.dimension_semantics<parallel>], iteration_bounds = array<i64: 1>, scalar_prefetch = 0 : i64, scratch_operands = 1 : i64, tpu.core_type = #tpu.core_type<tc>, window_params = [{transform_indices = @transform_0, window_bounds = array<i64: 8, 24, 8>}, {pipeline_mode = #tpu.pipeline_mode<synchronous>, transform_indices = @transform_1, window_bounds = array<i64: 33, 24>}, {pipeline_mode = #tpu.pipeline_mode<synchronous>, transform_indices = @transform_2, window_bounds = array<i64: 96, 32>}, {pipeline_mode = #tpu.pipeline_mode<synchronous>, transform_indices = @transform_3, window_bounds = array<i64: 96, 1>}, {pipeline_mode = #tpu.pipeline_mode<synchronous>, transform_indices = @transform_4, window_bounds = array<i64: 32, 1>}, {pipeline_mode = #tpu.pipeline_mode<synchronous>, transform_indices = @transform_5, window_bounds = array<i64: 96, 32>}, {pipeline_mode = #tpu.pipeline_mode<synchronous>, transform_indices = @transform_6, window_bounds = array<i64: 7, 32>}, {pipeline_mode = #tpu.pipeline_mode<synchronous>, transform_indices = @transform_7, window_bounds = array<i64: 7, 1>}, {transform_indices = @transform_8, window_bounds = array<i64: 1, 8>}, {transform_indices = @transform_9, window_bounds = array<i64: 32, 8>}]} {
    %c0 = arith.constant 0 : index
    %c0_0 = arith.constant 0 : index
    %0 = vector.load %arg2[%c0, %c0_0] : memref<33x24xf32, #tpu.memory_space<vmem>>, vector<33x24xf32>
    %c0_1 = arith.constant 0 : index
    %c0_2 = arith.constant 0 : index
    %1 = vector.load %arg3[%c0_1, %c0_2] : memref<96x32xf32, #tpu.memory_space<vmem>>, vector<96x32xf32>
    %c0_3 = arith.constant 0 : index
    %c0_4 = arith.constant 0 : index
    %2 = vector.load %arg4[%c0_3, %c0_4] : memref<96x1xf32, #tpu.memory_space<vmem>>, vector<96x1xf32>
    %3 = vector.shape_cast %2 : vector<96x1xf32> to vector<96x1xf32>
    %4 = vector.broadcast %3 : vector<96x1xf32> to vector<96x8xf32>
    %c0_i32 = arith.constant 0 : i32
    %5 = arith.index_cast %c0_i32 : i32 to index
    %c0_5 = arith.constant 0 : index
    %c0_6 = arith.constant 0 : index
    %6 = vector.load %arg1[%5, %c0_5, %c0_6] : memref<8x24x8xf32, #tpu.memory_space<vmem>>, vector<1x24x8xf32>
    %7 = vector.shape_cast %6 : vector<1x24x8xf32> to vector<24x8xf32>
    %cst = arith.constant dense<0.000000e+00> : vector<33x8xf32>
    %8 = tpu.matmul %0, %7, %cst {dimension_numbers = #tpu.dot_dimension_numbers<[1], [0], [0], [1], [0, 0, 1, 1], [], []>} : vector<33x24xf32>, vector<24x8xf32>, vector<33x8xf32> -> vector<33x8xf32>
    %9 = vector.extract_strided_slice %8 {offsets = [32, 0], sizes = [1, 8], strides = [1, 1]} : vector<33x8xf32> to vector<1x8xf32>
    %cst_7 = arith.constant 0.000000e+00 : f32
    %10 = vector.broadcast %cst_7 : f32 to vector<1x8xf32>
    %11 = arith.cmpf oeq, %9, %10 : vector<1x8xf32>
    %cst_8 = arith.constant 1.000000e+00 : f32
    %12 = vector.broadcast %cst_8 : f32 to vector<1x8xf32>
    %13 = arith.select %11, %12, %9 : vector<1x8xi1>, vector<1x8xf32>
    %cst_9 = arith.constant 1.000000e+00 : f32
    %14 = vector.broadcast %cst_9 : f32 to vector<1x8xf32>
    %15 = arith.divf %14, %13 : vector<1x8xf32>
    %16 = vector.extract_strided_slice %8 {offsets = [0, 0], sizes = [32, 8], strides = [1, 1]} : vector<33x8xf32> to vector<32x8xf32>
    %17 = vector.broadcast %15 : vector<1x8xf32> to vector<32x8xf32>
    %18 = arith.mulf %16, %17 : vector<32x8xf32>
    %cst_10 = arith.constant 0.000000e+00 : f32
    %19 = vector.broadcast %cst_10 : f32 to vector<32x8xf32>
    %20 = arith.maximumf %18, %19 : vector<32x8xf32>
    %cst_11 = arith.constant dense<0.000000e+00> : vector<96x8xf32>
    %21 = tpu.matmul %1, %20, %cst_11 {dimension_numbers = #tpu.dot_dimension_numbers<[1], [0], [0], [1], [0, 0, 1, 1], [], []>} : vector<96x32xf32>, vector<32x8xf32>, vector<96x8xf32> -> vector<96x8xf32>
    %22 = arith.addf %21, %4 : vector<96x8xf32>
    %23 = arith.index_cast %c0_i32 : i32 to index
    %c0_12 = arith.constant 0 : index
    %c0_13 = arith.constant 0 : index
    %24 = vector.load %arg11[%23, %c0_12, %c0_13] : memref<8x96x8xf32, #tpu.memory_space<vmem>>, vector<1x96x8xf32>
    %25 = vector.shape_cast %24 : vector<1x96x8xf32> to vector<96x8xf32>
    %26 = vector.shape_cast %22 : vector<96x8xf32> to vector<1x96x8xf32>
    tpu.vector_store %arg11[%23, %c0_12, %c0_13], %26 {strides = array<i32>} : memref<8x96x8xf32, #tpu.memory_space<vmem>>, vector<1x96x8xf32>,
    %c1_i32 = arith.constant 1 : i32
    %27 = arith.index_cast %c1_i32 : i32 to index
    %c0_14 = arith.constant 0 : index
    %c0_15 = arith.constant 0 : index
    %28 = vector.load %arg1[%27, %c0_14, %c0_15] : memref<8x24x8xf32, #tpu.memory_space<vmem>>, vector<1x24x8xf32>
    %29 = vector.shape_cast %28 : vector<1x24x8xf32> to vector<24x8xf32>
    %cst_16 = arith.constant dense<0.000000e+00> : vector<33x8xf32>
    %30 = tpu.matmul %0, %29, %cst_16 {dimension_numbers = #tpu.dot_dimension_numbers<[1], [0], [0], [1], [0, 0, 1, 1], [], []>} : vector<33x24xf32>, vector<24x8xf32>, vector<33x8xf32> -> vector<33x8xf32>
    %31 = vector.extract_strided_slice %30 {offsets = [32, 0], sizes = [1, 8], strides = [1, 1]} : vector<33x8xf32> to vector<1x8xf32>
    %cst_17 = arith.constant 0.000000e+00 : f32
    %32 = vector.broadcast %cst_17 : f32 to vector<1x8xf32>
    %33 = arith.cmpf oeq, %31, %32 : vector<1x8xf32>
    %cst_18 = arith.constant 1.000000e+00 : f32
    %34 = vector.broadcast %cst_18 : f32 to vector<1x8xf32>
    %35 = arith.select %33, %34, %31 : vector<1x8xi1>, vector<1x8xf32>
    %cst_19 = arith.constant 1.000000e+00 : f32
    %36 = vector.broadcast %cst_19 : f32 to vector<1x8xf32>
    %37 = arith.divf %36, %35 : vector<1x8xf32>
    %38 = vector.extract_strided_slice %30 {offsets = [0, 0], sizes = [32, 8], strides = [1, 1]} : vector<33x8xf32> to vector<32x8xf32>
    %39 = vector.broadcast %37 : vector<1x8xf32> to vector<32x8xf32>
    %40 = arith.mulf %38, %39 : vector<32x8xf32>
    %cst_20 = arith.constant 0.000000e+00 : f32
    %41 = vector.broadcast %cst_20 : f32 to vector<32x8xf32>
    %42 = arith.maximumf %40, %41 : vector<32x8xf32>
    %cst_21 = arith.constant dense<0.000000e+00> : vector<96x8xf32>
    %43 = tpu.matmul %1, %42, %cst_21 {dimension_numbers = #tpu.dot_dimension_numbers<[1], [0], [0], [1], [0, 0, 1, 1], [], []>} : vector<96x32xf32>, vector<32x8xf32>, vector<96x8xf32> -> vector<96x8xf32>
    %44 = arith.addf %43, %4 : vector<96x8xf32>
    %45 = arith.index_cast %c1_i32 : i32 to index
    %c0_22 = arith.constant 0 : index
    %c0_23 = arith.constant 0 : index
    %46 = vector.load %arg11[%45, %c0_22, %c0_23] : memref<8x96x8xf32, #tpu.memory_space<vmem>>, vector<1x96x8xf32>
    %47 = vector.shape_cast %46 : vector<1x96x8xf32> to vector<96x8xf32>
    %48 = vector.shape_cast %44 : vector<96x8xf32> to vector<1x96x8xf32>
    tpu.vector_store %arg11[%45, %c0_22, %c0_23], %48 {strides = array<i32>} : memref<8x96x8xf32, #tpu.memory_space<vmem>>, vector<1x96x8xf32>,
    %c2_i32 = arith.constant 2 : i32
    %49 = arith.index_cast %c2_i32 : i32 to index
    %c0_24 = arith.constant 0 : index
    %c0_25 = arith.constant 0 : index
    %50 = vector.load %arg1[%49, %c0_24, %c0_25] : memref<8x24x8xf32, #tpu.memory_space<vmem>>, vector<1x24x8xf32>
    %51 = vector.shape_cast %50 : vector<1x24x8xf32> to vector<24x8xf32>
    %cst_26 = arith.constant dense<0.000000e+00> : vector<33x8xf32>
    %52 = tpu.matmul %0, %51, %cst_26 {dimension_numbers = #tpu.dot_dimension_numbers<[1], [0], [0], [1], [0, 0, 1, 1], [], []>} : vector<33x24xf32>, vector<24x8xf32>, vector<33x8xf32> -> vector<33x8xf32>
    %53 = vector.extract_strided_slice %52 {offsets = [32, 0], sizes = [1, 8], strides = [1, 1]} : vector<33x8xf32> to vector<1x8xf32>
    %cst_27 = arith.constant 0.000000e+00 : f32
    %54 = vector.broadcast %cst_27 : f32 to vector<1x8xf32>
    %55 = arith.cmpf oeq, %53, %54 : vector<1x8xf32>
    %cst_28 = arith.constant 1.000000e+00 : f32
    %56 = vector.broadcast %cst_28 : f32 to vector<1x8xf32>
    %57 = arith.select %55, %56, %53 : vector<1x8xi1>, vector<1x8xf32>
    %cst_29 = arith.constant 1.000000e+00 : f32
    %58 = vector.broadcast %cst_29 : f32 to vector<1x8xf32>
    %59 = arith.divf %58, %57 : vector<1x8xf32>
    %60 = vector.extract_strided_slice %52 {offsets = [0, 0], sizes = [32, 8], strides = [1, 1]} : vector<33x8xf32> to vector<32x8xf32>
    %61 = vector.broadcast %59 : vector<1x8xf32> to vector<32x8xf32>
    %62 = arith.mulf %60, %61 : vector<32x8xf32>
    %cst_30 = arith.constant 0.000000e+00 : f32
    %63 = vector.broadcast %cst_30 : f32 to vector<32x8xf32>
    %64 = arith.maximumf %62, %63 : vector<32x8xf32>
    %cst_31 = arith.constant dense<0.000000e+00> : vector<96x8xf32>
    %65 = tpu.matmul %1, %64, %cst_31 {dimension_numbers = #tpu.dot_dimension_numbers<[1], [0], [0], [1], [0, 0, 1, 1], [], []>} : vector<96x32xf32>, vector<32x8xf32>, vector<96x8xf32> -> vector<96x8xf32>
    %66 = arith.addf %65, %4 : vector<96x8xf32>
    %67 = arith.index_cast %c2_i32 : i32 to index
    %c0_32 = arith.constant 0 : index
    %c0_33 = arith.constant 0 : index
    %68 = vector.load %arg11[%67, %c0_32, %c0_33] : memref<8x96x8xf32, #tpu.memory_space<vmem>>, vector<1x96x8xf32>
    %69 = vector.shape_cast %68 : vector<1x96x8xf32> to vector<96x8xf32>
    %70 = vector.shape_cast %66 : vector<96x8xf32> to vector<1x96x8xf32>
    tpu.vector_store %arg11[%67, %c0_32, %c0_33], %70 {strides = array<i32>} : memref<8x96x8xf32, #tpu.memory_space<vmem>>, vector<1x96x8xf32>,
    %c3_i32 = arith.constant 3 : i32
    %71 = arith.index_cast %c3_i32 : i32 to index
    %c0_34 = arith.constant 0 : index
    %c0_35 = arith.constant 0 : index
    %72 = vector.load %arg1[%71, %c0_34, %c0_35] : memref<8x24x8xf32, #tpu.memory_space<vmem>>, vector<1x24x8xf32>
    %73 = vector.shape_cast %72 : vector<1x24x8xf32> to vector<24x8xf32>
    %cst_36 = arith.constant dense<0.000000e+00> : vector<33x8xf32>
    %74 = tpu.matmul %0, %73, %cst_36 {dimension_numbers = #tpu.dot_dimension_numbers<[1], [0], [0], [1], [0, 0, 1, 1], [], []>} : vector<33x24xf32>, vector<24x8xf32>, vector<33x8xf32> -> vector<33x8xf32>
    %75 = vector.extract_strided_slice %74 {offsets = [32, 0], sizes = [1, 8], strides = [1, 1]} : vector<33x8xf32> to vector<1x8xf32>
    %cst_37 = arith.constant 0.000000e+00 : f32
    %76 = vector.broadcast %cst_37 : f32 to vector<1x8xf32>
    %77 = arith.cmpf oeq, %75, %76 : vector<1x8xf32>
    %cst_38 = arith.constant 1.000000e+00 : f32
    %78 = vector.broadcast %cst_38 : f32 to vector<1x8xf32>
    %79 = arith.select %77, %78, %75 : vector<1x8xi1>, vector<1x8xf32>
    %cst_39 = arith.constant 1.000000e+00 : f32
    %80 = vector.broadcast %cst_39 : f32 to vector<1x8xf32>
    %81 = arith.divf %80, %79 : vector<1x8xf32>
    %82 = vector.extract_strided_slice %74 {offsets = [0, 0], sizes = [32, 8], strides = [1, 1]} : vector<33x8xf32> to vector<32x8xf32>
    %83 = vector.broadcast %81 : vector<1x8xf32> to vector<32x8xf32>
    %84 = arith.mulf %82, %83 : vector<32x8xf32>
    %cst_40 = arith.constant 0.000000e+00 : f32
    %85 = vector.broadcast %cst_40 : f32 to vector<32x8xf32>
    %86 = arith.maximumf %84, %85 : vector<32x8xf32>
    %cst_41 = arith.constant dense<0.000000e+00> : vector<96x8xf32>
    %87 = tpu.matmul %1, %86, %cst_41 {dimension_numbers = #tpu.dot_dimension_numbers<[1], [0], [0], [1], [0, 0, 1, 1], [], []>} : vector<96x32xf32>, vector<32x8xf32>, vector<96x8xf32> -> vector<96x8xf32>
    %88 = arith.addf %87, %4 : vector<96x8xf32>
    %89 = arith.index_cast %c3_i32 : i32 to index
    %c0_42 = arith.constant 0 : index
    %c0_43 = arith.constant 0 : index
    %90 = vector.load %arg11[%89, %c0_42, %c0_43] : memref<8x96x8xf32, #tpu.memory_space<vmem>>, vector<1x96x8xf32>
    %91 = vector.shape_cast %90 : vector<1x96x8xf32> to vector<96x8xf32>
    %92 = vector.shape_cast %88 : vector<96x8xf32> to vector<1x96x8xf32>
    tpu.vector_store %arg11[%89, %c0_42, %c0_43], %92 {strides = array<i32>} : memref<8x96x8xf32, #tpu.memory_space<vmem>>, vector<1x96x8xf32>,
    %c4_i32 = arith.constant 4 : i32
    %93 = arith.index_cast %c4_i32 : i32 to index
    %c0_44 = arith.constant 0 : index
    %c0_45 = arith.constant 0 : index
    %94 = vector.load %arg1[%93, %c0_44, %c0_45] : memref<8x24x8xf32, #tpu.memory_space<vmem>>, vector<1x24x8xf32>
    %95 = vector.shape_cast %94 : vector<1x24x8xf32> to vector<24x8xf32>
    %cst_46 = arith.constant dense<0.000000e+00> : vector<33x8xf32>
    %96 = tpu.matmul %0, %95, %cst_46 {dimension_numbers = #tpu.dot_dimension_numbers<[1], [0], [0], [1], [0, 0, 1, 1], [], []>} : vector<33x24xf32>, vector<24x8xf32>, vector<33x8xf32> -> vector<33x8xf32>
    %97 = vector.extract_strided_slice %96 {offsets = [32, 0], sizes = [1, 8], strides = [1, 1]} : vector<33x8xf32> to vector<1x8xf32>
    %cst_47 = arith.constant 0.000000e+00 : f32
    %98 = vector.broadcast %cst_47 : f32 to vector<1x8xf32>
    %99 = arith.cmpf oeq, %97, %98 : vector<1x8xf32>
    %cst_48 = arith.constant 1.000000e+00 : f32
    %100 = vector.broadcast %cst_48 : f32 to vector<1x8xf32>
    %101 = arith.select %99, %100, %97 : vector<1x8xi1>, vector<1x8xf32>
    %cst_49 = arith.constant 1.000000e+00 : f32
    %102 = vector.broadcast %cst_49 : f32 to vector<1x8xf32>
    %103 = arith.divf %102, %101 : vector<1x8xf32>
    %104 = vector.extract_strided_slice %96 {offsets = [0, 0], sizes = [32, 8], strides = [1, 1]} : vector<33x8xf32> to vector<32x8xf32>
    %105 = vector.broadcast %103 : vector<1x8xf32> to vector<32x8xf32>
    %106 = arith.mulf %104, %105 : vector<32x8xf32>
    %cst_50 = arith.constant 0.000000e+00 : f32
    %107 = vector.broadcast %cst_50 : f32 to vector<32x8xf32>
    %108 = arith.maximumf %106, %107 : vector<32x8xf32>
    %cst_51 = arith.constant dense<0.000000e+00> : vector<96x8xf32>
    %109 = tpu.matmul %1, %108, %cst_51 {dimension_numbers = #tpu.dot_dimension_numbers<[1], [0], [0], [1], [0, 0, 1, 1], [], []>} : vector<96x32xf32>, vector<32x8xf32>, vector<96x8xf32> -> vector<96x8xf32>
    %110 = arith.addf %109, %4 : vector<96x8xf32>
    %111 = arith.index_cast %c4_i32 : i32 to index
    %c0_52 = arith.constant 0 : index
    %c0_53 = arith.constant 0 : index
    %112 = vector.load %arg11[%111, %c0_52, %c0_53] : memref<8x96x8xf32, #tpu.memory_space<vmem>>, vector<1x96x8xf32>
    %113 = vector.shape_cast %112 : vector<1x96x8xf32> to vector<96x8xf32>
    %114 = vector.shape_cast %110 : vector<96x8xf32> to vector<1x96x8xf32>
    tpu.vector_store %arg11[%111, %c0_52, %c0_53], %114 {strides = array<i32>} : memref<8x96x8xf32, #tpu.memory_space<vmem>>, vector<1x96x8xf32>,
    %c5_i32 = arith.constant 5 : i32
    %115 = arith.index_cast %c5_i32 : i32 to index
    %c0_54 = arith.constant 0 : index
    %c0_55 = arith.constant 0 : index
    %116 = vector.load %arg1[%115, %c0_54, %c0_55] : memref<8x24x8xf32, #tpu.memory_space<vmem>>, vector<1x24x8xf32>
    %117 = vector.shape_cast %116 : vector<1x24x8xf32> to vector<24x8xf32>
    %cst_56 = arith.constant dense<0.000000e+00> : vector<33x8xf32>
    %118 = tpu.matmul %0, %117, %cst_56 {dimension_numbers = #tpu.dot_dimension_numbers<[1], [0], [0], [1], [0, 0, 1, 1], [], []>} : vector<33x24xf32>, vector<24x8xf32>, vector<33x8xf32> -> vector<33x8xf32>
    %119 = vector.extract_strided_slice %118 {offsets = [32, 0], sizes = [1, 8], strides = [1, 1]} : vector<33x8xf32> to vector<1x8xf32>
    %cst_57 = arith.constant 0.000000e+00 : f32
    %120 = vector.broadcast %cst_57 : f32 to vector<1x8xf32>
    %121 = arith.cmpf oeq, %119, %120 : vector<1x8xf32>
    %cst_58 = arith.constant 1.000000e+00 : f32
    %122 = vector.broadcast %cst_58 : f32 to vector<1x8xf32>
    %123 = arith.select %121, %122, %119 : vector<1x8xi1>, vector<1x8xf32>
    %cst_59 = arith.constant 1.000000e+00 : f32
    %124 = vector.broadcast %cst_59 : f32 to vector<1x8xf32>
    %125 = arith.divf %124, %123 : vector<1x8xf32>
    %126 = vector.extract_strided_slice %118 {offsets = [0, 0], sizes = [32, 8], strides = [1, 1]} : vector<33x8xf32> to vector<32x8xf32>
    %127 = vector.broadcast %125 : vector<1x8xf32> to vector<32x8xf32>
    %128 = arith.mulf %126, %127 : vector<32x8xf32>
    %cst_60 = arith.constant 0.000000e+00 : f32
    %129 = vector.broadcast %cst_60 : f32 to vector<32x8xf32>
    %130 = arith.maximumf %128, %129 : vector<32x8xf32>
    %cst_61 = arith.constant dense<0.000000e+00> : vector<96x8xf32>
    %131 = tpu.matmul %1, %130, %cst_61 {dimension_numbers = #tpu.dot_dimension_numbers<[1], [0], [0], [1], [0, 0, 1, 1], [], []>} : vector<96x32xf32>, vector<32x8xf32>, vector<96x8xf32> -> vector<96x8xf32>
    %132 = arith.addf %131, %4 : vector<96x8xf32>
    %133 = arith.index_cast %c5_i32 : i32 to index
    %c0_62 = arith.constant 0 : index
    %c0_63 = arith.constant 0 : index
    %134 = vector.load %arg11[%133, %c0_62, %c0_63] : memref<8x96x8xf32, #tpu.memory_space<vmem>>, vector<1x96x8xf32>
    %135 = vector.shape_cast %134 : vector<1x96x8xf32> to vector<96x8xf32>
    %136 = vector.shape_cast %132 : vector<96x8xf32> to vector<1x96x8xf32>
    tpu.vector_store %arg11[%133, %c0_62, %c0_63], %136 {strides = array<i32>} : memref<8x96x8xf32, #tpu.memory_space<vmem>>, vector<1x96x8xf32>,
    %c6_i32 = arith.constant 6 : i32
    %137 = arith.index_cast %c6_i32 : i32 to index
    %c0_64 = arith.constant 0 : index
    %c0_65 = arith.constant 0 : index
    %138 = vector.load %arg1[%137, %c0_64, %c0_65] : memref<8x24x8xf32, #tpu.memory_space<vmem>>, vector<1x24x8xf32>
    %139 = vector.shape_cast %138 : vector<1x24x8xf32> to vector<24x8xf32>
    %cst_66 = arith.constant dense<0.000000e+00> : vector<33x8xf32>
    %140 = tpu.matmul %0, %139, %cst_66 {dimension_numbers = #tpu.dot_dimension_numbers<[1], [0], [0], [1], [0, 0, 1, 1], [], []>} : vector<33x24xf32>, vector<24x8xf32>, vector<33x8xf32> -> vector<33x8xf32>
    %141 = vector.extract_strided_slice %140 {offsets = [32, 0], sizes = [1, 8], strides = [1, 1]} : vector<33x8xf32> to vector<1x8xf32>
    %cst_67 = arith.constant 0.000000e+00 : f32
    %142 = vector.broadcast %cst_67 : f32 to vector<1x8xf32>
    %143 = arith.cmpf oeq, %141, %142 : vector<1x8xf32>
    %cst_68 = arith.constant 1.000000e+00 : f32
    %144 = vector.broadcast %cst_68 : f32 to vector<1x8xf32>
    %145 = arith.select %143, %144, %141 : vector<1x8xi1>, vector<1x8xf32>
    %cst_69 = arith.constant 1.000000e+00 : f32
    %146 = vector.broadcast %cst_69 : f32 to vector<1x8xf32>
    %147 = arith.divf %146, %145 : vector<1x8xf32>
    %148 = vector.extract_strided_slice %140 {offsets = [0, 0], sizes = [32, 8], strides = [1, 1]} : vector<33x8xf32> to vector<32x8xf32>
    %149 = vector.broadcast %147 : vector<1x8xf32> to vector<32x8xf32>
    %150 = arith.mulf %148, %149 : vector<32x8xf32>
    %cst_70 = arith.constant 0.000000e+00 : f32
    %151 = vector.broadcast %cst_70 : f32 to vector<32x8xf32>
    %152 = arith.maximumf %150, %151 : vector<32x8xf32>
    %cst_71 = arith.constant dense<0.000000e+00> : vector<96x8xf32>
    %153 = tpu.matmul %1, %152, %cst_71 {dimension_numbers = #tpu.dot_dimension_numbers<[1], [0], [0], [1], [0, 0, 1, 1], [], []>} : vector<96x32xf32>, vector<32x8xf32>, vector<96x8xf32> -> vector<96x8xf32>
    %154 = arith.addf %153, %4 : vector<96x8xf32>
    %155 = arith.index_cast %c6_i32 : i32 to index
    %c0_72 = arith.constant 0 : index
    %c0_73 = arith.constant 0 : index
    %156 = vector.load %arg11[%155, %c0_72, %c0_73] : memref<8x96x8xf32, #tpu.memory_space<vmem>>, vector<1x96x8xf32>
    %157 = vector.shape_cast %156 : vector<1x96x8xf32> to vector<96x8xf32>
    %158 = vector.shape_cast %154 : vector<96x8xf32> to vector<1x96x8xf32>
    tpu.vector_store %arg11[%155, %c0_72, %c0_73], %158 {strides = array<i32>} : memref<8x96x8xf32, #tpu.memory_space<vmem>>, vector<1x96x8xf32>,
    %c7_i32 = arith.constant 7 : i32
    %159 = arith.index_cast %c7_i32 : i32 to index
    %c0_74 = arith.constant 0 : index
    %c0_75 = arith.constant 0 : index
    %160 = vector.load %arg1[%159, %c0_74, %c0_75] : memref<8x24x8xf32, #tpu.memory_space<vmem>>, vector<1x24x8xf32>
    %161 = vector.shape_cast %160 : vector<1x24x8xf32> to vector<24x8xf32>
    %cst_76 = arith.constant dense<0.000000e+00> : vector<33x8xf32>
    %162 = tpu.matmul %0, %161, %cst_76 {dimension_numbers = #tpu.dot_dimension_numbers<[1], [0], [0], [1], [0, 0, 1, 1], [], []>} : vector<33x24xf32>, vector<24x8xf32>, vector<33x8xf32> -> vector<33x8xf32>
    %163 = vector.extract_strided_slice %162 {offsets = [32, 0], sizes = [1, 8], strides = [1, 1]} : vector<33x8xf32> to vector<1x8xf32>
    %cst_77 = arith.constant 0.000000e+00 : f32
    %164 = vector.broadcast %cst_77 : f32 to vector<1x8xf32>
    %165 = arith.cmpf oeq, %163, %164 : vector<1x8xf32>
    %cst_78 = arith.constant 1.000000e+00 : f32
    %166 = vector.broadcast %cst_78 : f32 to vector<1x8xf32>
    %167 = arith.select %165, %166, %163 : vector<1x8xi1>, vector<1x8xf32>
    %cst_79 = arith.constant 1.000000e+00 : f32
    %168 = vector.broadcast %cst_79 : f32 to vector<1x8xf32>
    %169 = arith.divf %168, %167 : vector<1x8xf32>
    %170 = vector.extract_strided_slice %162 {offsets = [0, 0], sizes = [32, 8], strides = [1, 1]} : vector<33x8xf32> to vector<32x8xf32>
    %171 = vector.broadcast %169 : vector<1x8xf32> to vector<32x8xf32>
    %172 = arith.mulf %170, %171 : vector<32x8xf32>
    %cst_80 = arith.constant 0.000000e+00 : f32
    %173 = vector.broadcast %cst_80 : f32 to vector<32x8xf32>
    %174 = arith.maximumf %172, %173 : vector<32x8xf32>
    %cst_81 = arith.constant dense<0.000000e+00> : vector<96x8xf32>
    %175 = tpu.matmul %1, %174, %cst_81 {dimension_numbers = #tpu.dot_dimension_numbers<[1], [0], [0], [1], [0, 0, 1, 1], [], []>} : vector<96x32xf32>, vector<32x8xf32>, vector<96x8xf32> -> vector<96x8xf32>
    %176 = arith.addf %175, %4 : vector<96x8xf32>
    %177 = arith.index_cast %c7_i32 : i32 to index
    %c0_82 = arith.constant 0 : index
    %c0_83 = arith.constant 0 : index
    %178 = vector.load %arg11[%177, %c0_82, %c0_83] : memref<8x96x8xf32, #tpu.memory_space<vmem>>, vector<1x96x8xf32>
    %179 = vector.shape_cast %178 : vector<1x96x8xf32> to vector<96x8xf32>
    %180 = vector.shape_cast %176 : vector<96x8xf32> to vector<1x96x8xf32>
    tpu.vector_store %arg11[%177, %c0_82, %c0_83], %180 {strides = array<i32>} : memref<8x96x8xf32, #tpu.memory_space<vmem>>, vector<1x96x8xf32>,
    %c8_i32 = arith.constant 8 : i32
    %c0_84 = arith.constant 0 : index
    %c0_85 = arith.constant 0 : index
    %181 = vector.load %arg6[%c0_84, %c0_85] : memref<96x32xf32, #tpu.memory_space<vmem>>, vector<96x32xf32>
    %c0_86 = arith.constant 0 : index
    %c0_87 = arith.constant 0 : index
    %182 = vector.load %arg5[%c0_86, %c0_87] : memref<32x1xf32, #tpu.memory_space<vmem>>, vector<32x1xf32>
    %183 = vector.shape_cast %182 : vector<32x1xf32> to vector<32x1xf32>
    %184 = vector.broadcast %183 : vector<32x1xf32> to vector<32x8xf32>
    %cst_88 = arith.constant 0.000000e+00 : f32
    %185 = vector.broadcast %cst_88 : f32 to vector<32x8xf32>
    %c0_i32_89 = arith.constant 0 : i32
    %cst_90 = arith.constant dense<0.000000e+00> : vector<96x8xf32>
    %186 = tpu.matmul %181, %185, %cst_90 {dimension_numbers = #tpu.dot_dimension_numbers<[1], [0], [0], [1], [0, 0, 1, 1], [], []>} : vector<96x32xf32>, vector<32x8xf32>, vector<96x8xf32> -> vector<96x8xf32>
    %187 = arith.index_cast %c0_i32_89 : i32 to index
    %c0_91 = arith.constant 0 : index
    %c0_92 = arith.constant 0 : index
    %188 = vector.load %arg11[%187, %c0_91, %c0_92] : memref<8x96x8xf32, #tpu.memory_space<vmem>>, vector<1x96x8xf32>
    %189 = vector.shape_cast %188 : vector<1x96x8xf32> to vector<96x8xf32>
    %190 = vector.extract_strided_slice %189 {offsets = [0, 0], sizes = [32, 8], strides = [1, 1]} : vector<96x8xf32> to vector<32x8xf32>
    %191 = vector.extract_strided_slice %186 {offsets = [0, 0], sizes = [32, 8], strides = [1, 1]} : vector<96x8xf32> to vector<32x8xf32>
    %192 = arith.addf %190, %191 : vector<32x8xf32>
    %193 = arith.negf %192 : vector<32x8xf32>
    %194 = math.exp %193 : vector<32x8xf32>
    %cst_93 = arith.constant 1.000000e+00 : f32
    %195 = vector.broadcast %cst_93 : f32 to vector<32x8xf32>
    %196 = arith.addf %195, %194 : vector<32x8xf32>
    %197 = arith.divf %195, %196 : vector<32x8xf32>
    %198 = vector.extract_strided_slice %189 {offsets = [32, 0], sizes = [32, 8], strides = [1, 1]} : vector<96x8xf32> to vector<32x8xf32>
    %199 = vector.extract_strided_slice %186 {offsets = [32, 0], sizes = [32, 8], strides = [1, 1]} : vector<96x8xf32> to vector<32x8xf32>
    %200 = arith.addf %198, %199 : vector<32x8xf32>
    %201 = arith.negf %200 : vector<32x8xf32>
    %202 = math.exp %201 : vector<32x8xf32>
    %cst_94 = arith.constant 1.000000e+00 : f32
    %203 = vector.broadcast %cst_94 : f32 to vector<32x8xf32>
    %204 = arith.addf %203, %202 : vector<32x8xf32>
    %205 = arith.divf %203, %204 : vector<32x8xf32>
    %206 = vector.extract_strided_slice %189 {offsets = [64, 0], sizes = [32, 8], strides = [1, 1]} : vector<96x8xf32> to vector<32x8xf32>
    %207 = vector.extract_strided_slice %186 {offsets = [64, 0], sizes = [32, 8], strides = [1, 1]} : vector<96x8xf32> to vector<32x8xf32>
    %208 = arith.addf %207, %184 : vector<32x8xf32>
    %209 = arith.mulf %197, %208 : vector<32x8xf32>
    %210 = arith.addf %206, %209 : vector<32x8xf32>
    %211 = math.tanh %210 : vector<32x8xf32>
    %cst_95 = arith.constant 1.000000e+00 : f32
    %212 = vector.broadcast %cst_95 : f32 to vector<32x8xf32>
    %213 = arith.subf %212, %205 : vector<32x8xf32>
    %214 = arith.mulf %213, %211 : vector<32x8xf32>
    %215 = arith.mulf %205, %185 : vector<32x8xf32>
    %216 = arith.addf %214, %215 : vector<32x8xf32>
    %c1_i32_96 = arith.constant 1 : i32
    %cst_97 = arith.constant dense<0.000000e+00> : vector<96x8xf32>
    %217 = tpu.matmul %181, %216, %cst_97 {dimension_numbers = #tpu.dot_dimension_numbers<[1], [0], [0], [1], [0, 0, 1, 1], [], []>} : vector<96x32xf32>, vector<32x8xf32>, vector<96x8xf32> -> vector<96x8xf32>
    %218 = arith.index_cast %c1_i32_96 : i32 to index
    %c0_98 = arith.constant 0 : index
    %c0_99 = arith.constant 0 : index
    %219 = vector.load %arg11[%218, %c0_98, %c0_99] : memref<8x96x8xf32, #tpu.memory_space<vmem>>, vector<1x96x8xf32>
    %220 = vector.shape_cast %219 : vector<1x96x8xf32> to vector<96x8xf32>
    %221 = vector.extract_strided_slice %220 {offsets = [0, 0], sizes = [32, 8], strides = [1, 1]} : vector<96x8xf32> to vector<32x8xf32>
    %222 = vector.extract_strided_slice %217 {offsets = [0, 0], sizes = [32, 8], strides = [1, 1]} : vector<96x8xf32> to vector<32x8xf32>
    %223 = arith.addf %221, %222 : vector<32x8xf32>
    %224 = arith.negf %223 : vector<32x8xf32>
    %225 = math.exp %224 : vector<32x8xf32>
    %cst_100 = arith.constant 1.000000e+00 : f32
    %226 = vector.broadcast %cst_100 : f32 to vector<32x8xf32>
    %227 = arith.addf %226, %225 : vector<32x8xf32>
    %228 = arith.divf %226, %227 : vector<32x8xf32>
    %229 = vector.extract_strided_slice %220 {offsets = [32, 0], sizes = [32, 8], strides = [1, 1]} : vector<96x8xf32> to vector<32x8xf32>
    %230 = vector.extract_strided_slice %217 {offsets = [32, 0], sizes = [32, 8], strides = [1, 1]} : vector<96x8xf32> to vector<32x8xf32>
    %231 = arith.addf %229, %230 : vector<32x8xf32>
    %232 = arith.negf %231 : vector<32x8xf32>
    %233 = math.exp %232 : vector<32x8xf32>
    %cst_101 = arith.constant 1.000000e+00 : f32
    %234 = vector.broadcast %cst_101 : f32 to vector<32x8xf32>
    %235 = arith.addf %234, %233 : vector<32x8xf32>
    %236 = arith.divf %234, %235 : vector<32x8xf32>
    %237 = vector.extract_strided_slice %220 {offsets = [64, 0], sizes = [32, 8], strides = [1, 1]} : vector<96x8xf32> to vector<32x8xf32>
    %238 = vector.extract_strided_slice %217 {offsets = [64, 0], sizes = [32, 8], strides = [1, 1]} : vector<96x8xf32> to vector<32x8xf32>
    %239 = arith.addf %238, %184 : vector<32x8xf32>
    %240 = arith.mulf %228, %239 : vector<32x8xf32>
    %241 = arith.addf %237, %240 : vector<32x8xf32>
    %242 = math.tanh %241 : vector<32x8xf32>
    %cst_102 = arith.constant 1.000000e+00 : f32
    %243 = vector.broadcast %cst_102 : f32 to vector<32x8xf32>
    %244 = arith.subf %243, %236 : vector<32x8xf32>
    %245 = arith.mulf %244, %242 : vector<32x8xf32>
    %246 = arith.mulf %236, %216 : vector<32x8xf32>
    %247 = arith.addf %245, %246 : vector<32x8xf32>
    %c2_i32_103 = arith.constant 2 : i32
    %cst_104 = arith.constant dense<0.000000e+00> : vector<96x8xf32>
    %248 = tpu.matmul %181, %247, %cst_104 {dimension_numbers = #tpu.dot_dimension_numbers<[1], [0], [0], [1], [0, 0, 1, 1], [], []>} : vector<96x32xf32>, vector<32x8xf32>, vector<96x8xf32> -> vector<96x8xf32>
    %249 = arith.index_cast %c2_i32_103 : i32 to index
    %c0_105 = arith.constant 0 : index
    %c0_106 = arith.constant 0 : index
    %250 = vector.load %arg11[%249, %c0_105, %c0_106] : memref<8x96x8xf32, #tpu.memory_space<vmem>>, vector<1x96x8xf32>
    %251 = vector.shape_cast %250 : vector<1x96x8xf32> to vector<96x8xf32>
    %252 = vector.extract_strided_slice %251 {offsets = [0, 0], sizes = [32, 8], strides = [1, 1]} : vector<96x8xf32> to vector<32x8xf32>
    %253 = vector.extract_strided_slice %248 {offsets = [0, 0], sizes = [32, 8], strides = [1, 1]} : vector<96x8xf32> to vector<32x8xf32>
    %254 = arith.addf %252, %253 : vector<32x8xf32>
    %255 = arith.negf %254 : vector<32x8xf32>
    %256 = math.exp %255 : vector<32x8xf32>
    %cst_107 = arith.constant 1.000000e+00 : f32
    %257 = vector.broadcast %cst_107 : f32 to vector<32x8xf32>
    %258 = arith.addf %257, %256 : vector<32x8xf32>
    %259 = arith.divf %257, %258 : vector<32x8xf32>
    %260 = vector.extract_strided_slice %251 {offsets = [32, 0], sizes = [32, 8], strides = [1, 1]} : vector<96x8xf32> to vector<32x8xf32>
    %261 = vector.extract_strided_slice %248 {offsets = [32, 0], sizes = [32, 8], strides = [1, 1]} : vector<96x8xf32> to vector<32x8xf32>
    %262 = arith.addf %260, %261 : vector<32x8xf32>
    %263 = arith.negf %262 : vector<32x8xf32>
    %264 = math.exp %263 : vector<32x8xf32>
    %cst_108 = arith.constant 1.000000e+00 : f32
    %265 = vector.broadcast %cst_108 : f32 to vector<32x8xf32>
    %266 = arith.addf %265, %264 : vector<32x8xf32>
    %267 = arith.divf %265, %266 : vector<32x8xf32>
    %268 = vector.extract_strided_slice %251 {offsets = [64, 0], sizes = [32, 8], strides = [1, 1]} : vector<96x8xf32> to vector<32x8xf32>
    %269 = vector.extract_strided_slice %248 {offsets = [64, 0], sizes = [32, 8], strides = [1, 1]} : vector<96x8xf32> to vector<32x8xf32>
    %270 = arith.addf %269, %184 : vector<32x8xf32>
    %271 = arith.mulf %259, %270 : vector<32x8xf32>
    %272 = arith.addf %268, %271 : vector<32x8xf32>
    %273 = math.tanh %272 : vector<32x8xf32>
    %cst_109 = arith.constant 1.000000e+00 : f32
    %274 = vector.broadcast %cst_109 : f32 to vector<32x8xf32>
    %275 = arith.subf %274, %267 : vector<32x8xf32>
    %276 = arith.mulf %275, %273 : vector<32x8xf32>
    %277 = arith.mulf %267, %247 : vector<32x8xf32>
    %278 = arith.addf %276, %277 : vector<32x8xf32>
    %c3_i32_110 = arith.constant 3 : i32
    %cst_111 = arith.constant dense<0.000000e+00> : vector<96x8xf32>
    %279 = tpu.matmul %181, %278, %cst_111 {dimension_numbers = #tpu.dot_dimension_numbers<[1], [0], [0], [1], [0, 0, 1, 1], [], []>} : vector<96x32xf32>, vector<32x8xf32>, vector<96x8xf32> -> vector<96x8xf32>
    %280 = arith.index_cast %c3_i32_110 : i32 to index
    %c0_112 = arith.constant 0 : index
    %c0_113 = arith.constant 0 : index
    %281 = vector.load %arg11[%280, %c0_112, %c0_113] : memref<8x96x8xf32, #tpu.memory_space<vmem>>, vector<1x96x8xf32>
    %282 = vector.shape_cast %281 : vector<1x96x8xf32> to vector<96x8xf32>
    %283 = vector.extract_strided_slice %282 {offsets = [0, 0], sizes = [32, 8], strides = [1, 1]} : vector<96x8xf32> to vector<32x8xf32>
    %284 = vector.extract_strided_slice %279 {offsets = [0, 0], sizes = [32, 8], strides = [1, 1]} : vector<96x8xf32> to vector<32x8xf32>
    %285 = arith.addf %283, %284 : vector<32x8xf32>
    %286 = arith.negf %285 : vector<32x8xf32>
    %287 = math.exp %286 : vector<32x8xf32>
    %cst_114 = arith.constant 1.000000e+00 : f32
    %288 = vector.broadcast %cst_114 : f32 to vector<32x8xf32>
    %289 = arith.addf %288, %287 : vector<32x8xf32>
    %290 = arith.divf %288, %289 : vector<32x8xf32>
    %291 = vector.extract_strided_slice %282 {offsets = [32, 0], sizes = [32, 8], strides = [1, 1]} : vector<96x8xf32> to vector<32x8xf32>
    %292 = vector.extract_strided_slice %279 {offsets = [32, 0], sizes = [32, 8], strides = [1, 1]} : vector<96x8xf32> to vector<32x8xf32>
    %293 = arith.addf %291, %292 : vector<32x8xf32>
    %294 = arith.negf %293 : vector<32x8xf32>
    %295 = math.exp %294 : vector<32x8xf32>
    %cst_115 = arith.constant 1.000000e+00 : f32
    %296 = vector.broadcast %cst_115 : f32 to vector<32x8xf32>
    %297 = arith.addf %296, %295 : vector<32x8xf32>
    %298 = arith.divf %296, %297 : vector<32x8xf32>
    %299 = vector.extract_strided_slice %282 {offsets = [64, 0], sizes = [32, 8], strides = [1, 1]} : vector<96x8xf32> to vector<32x8xf32>
    %300 = vector.extract_strided_slice %279 {offsets = [64, 0], sizes = [32, 8], strides = [1, 1]} : vector<96x8xf32> to vector<32x8xf32>
    %301 = arith.addf %300, %184 : vector<32x8xf32>
    %302 = arith.mulf %290, %301 : vector<32x8xf32>
    %303 = arith.addf %299, %302 : vector<32x8xf32>
    %304 = math.tanh %303 : vector<32x8xf32>
    %cst_116 = arith.constant 1.000000e+00 : f32
    %305 = vector.broadcast %cst_116 : f32 to vector<32x8xf32>
    %306 = arith.subf %305, %298 : vector<32x8xf32>
    %307 = arith.mulf %306, %304 : vector<32x8xf32>
    %308 = arith.mulf %298, %278 : vector<32x8xf32>
    %309 = arith.addf %307, %308 : vector<32x8xf32>
    %c4_i32_117 = arith.constant 4 : i32
    %cst_118 = arith.constant dense<0.000000e+00> : vector<96x8xf32>
    %310 = tpu.matmul %181, %309, %cst_118 {dimension_numbers = #tpu.dot_dimension_numbers<[1], [0], [0], [1], [0, 0, 1, 1], [], []>} : vector<96x32xf32>, vector<32x8xf32>, vector<96x8xf32> -> vector<96x8xf32>
    %311 = arith.index_cast %c4_i32_117 : i32 to index
    %c0_119 = arith.constant 0 : index
    %c0_120 = arith.constant 0 : index
    %312 = vector.load %arg11[%311, %c0_119, %c0_120] : memref<8x96x8xf32, #tpu.memory_space<vmem>>, vector<1x96x8xf32>
    %313 = vector.shape_cast %312 : vector<1x96x8xf32> to vector<96x8xf32>
    %314 = vector.extract_strided_slice %313 {offsets = [0, 0], sizes = [32, 8], strides = [1, 1]} : vector<96x8xf32> to vector<32x8xf32>
    %315 = vector.extract_strided_slice %310 {offsets = [0, 0], sizes = [32, 8], strides = [1, 1]} : vector<96x8xf32> to vector<32x8xf32>
    %316 = arith.addf %314, %315 : vector<32x8xf32>
    %317 = arith.negf %316 : vector<32x8xf32>
    %318 = math.exp %317 : vector<32x8xf32>
    %cst_121 = arith.constant 1.000000e+00 : f32
    %319 = vector.broadcast %cst_121 : f32 to vector<32x8xf32>
    %320 = arith.addf %319, %318 : vector<32x8xf32>
    %321 = arith.divf %319, %320 : vector<32x8xf32>
    %322 = vector.extract_strided_slice %313 {offsets = [32, 0], sizes = [32, 8], strides = [1, 1]} : vector<96x8xf32> to vector<32x8xf32>
    %323 = vector.extract_strided_slice %310 {offsets = [32, 0], sizes = [32, 8], strides = [1, 1]} : vector<96x8xf32> to vector<32x8xf32>
    %324 = arith.addf %322, %323 : vector<32x8xf32>
    %325 = arith.negf %324 : vector<32x8xf32>
    %326 = math.exp %325 : vector<32x8xf32>
    %cst_122 = arith.constant 1.000000e+00 : f32
    %327 = vector.broadcast %cst_122 : f32 to vector<32x8xf32>
    %328 = arith.addf %327, %326 : vector<32x8xf32>
    %329 = arith.divf %327, %328 : vector<32x8xf32>
    %330 = vector.extract_strided_slice %313 {offsets = [64, 0], sizes = [32, 8], strides = [1, 1]} : vector<96x8xf32> to vector<32x8xf32>
    %331 = vector.extract_strided_slice %310 {offsets = [64, 0], sizes = [32, 8], strides = [1, 1]} : vector<96x8xf32> to vector<32x8xf32>
    %332 = arith.addf %331, %184 : vector<32x8xf32>
    %333 = arith.mulf %321, %332 : vector<32x8xf32>
    %334 = arith.addf %330, %333 : vector<32x8xf32>
    %335 = math.tanh %334 : vector<32x8xf32>
    %cst_123 = arith.constant 1.000000e+00 : f32
    %336 = vector.broadcast %cst_123 : f32 to vector<32x8xf32>
    %337 = arith.subf %336, %329 : vector<32x8xf32>
    %338 = arith.mulf %337, %335 : vector<32x8xf32>
    %339 = arith.mulf %329, %309 : vector<32x8xf32>
    %340 = arith.addf %338, %339 : vector<32x8xf32>
    %c5_i32_124 = arith.constant 5 : i32
    %cst_125 = arith.constant dense<0.000000e+00> : vector<96x8xf32>
    %341 = tpu.matmul %181, %340, %cst_125 {dimension_numbers = #tpu.dot_dimension_numbers<[1], [0], [0], [1], [0, 0, 1, 1], [], []>} : vector<96x32xf32>, vector<32x8xf32>, vector<96x8xf32> -> vector<96x8xf32>
    %342 = arith.index_cast %c5_i32_124 : i32 to index
    %c0_126 = arith.constant 0 : index
    %c0_127 = arith.constant 0 : index
    %343 = vector.load %arg11[%342, %c0_126, %c0_127] : memref<8x96x8xf32, #tpu.memory_space<vmem>>, vector<1x96x8xf32>
    %344 = vector.shape_cast %343 : vector<1x96x8xf32> to vector<96x8xf32>
    %345 = vector.extract_strided_slice %344 {offsets = [0, 0], sizes = [32, 8], strides = [1, 1]} : vector<96x8xf32> to vector<32x8xf32>
    %346 = vector.extract_strided_slice %341 {offsets = [0, 0], sizes = [32, 8], strides = [1, 1]} : vector<96x8xf32> to vector<32x8xf32>
    %347 = arith.addf %345, %346 : vector<32x8xf32>
    %348 = arith.negf %347 : vector<32x8xf32>
    %349 = math.exp %348 : vector<32x8xf32>
    %cst_128 = arith.constant 1.000000e+00 : f32
    %350 = vector.broadcast %cst_128 : f32 to vector<32x8xf32>
    %351 = arith.addf %350, %349 : vector<32x8xf32>
    %352 = arith.divf %350, %351 : vector<32x8xf32>
    %353 = vector.extract_strided_slice %344 {offsets = [32, 0], sizes = [32, 8], strides = [1, 1]} : vector<96x8xf32> to vector<32x8xf32>
    %354 = vector.extract_strided_slice %341 {offsets = [32, 0], sizes = [32, 8], strides = [1, 1]} : vector<96x8xf32> to vector<32x8xf32>
    %355 = arith.addf %353, %354 : vector<32x8xf32>
    %356 = arith.negf %355 : vector<32x8xf32>
    %357 = math.exp %356 : vector<32x8xf32>
    %cst_129 = arith.constant 1.000000e+00 : f32
    %358 = vector.broadcast %cst_129 : f32 to vector<32x8xf32>
    %359 = arith.addf %358, %357 : vector<32x8xf32>
    %360 = arith.divf %358, %359 : vector<32x8xf32>
    %361 = vector.extract_strided_slice %344 {offsets = [64, 0], sizes = [32, 8], strides = [1, 1]} : vector<96x8xf32> to vector<32x8xf32>
    %362 = vector.extract_strided_slice %341 {offsets = [64, 0], sizes = [32, 8], strides = [1, 1]} : vector<96x8xf32> to vector<32x8xf32>
    %363 = arith.addf %362, %184 : vector<32x8xf32>
    %364 = arith.mulf %352, %363 : vector<32x8xf32>
    %365 = arith.addf %361, %364 : vector<32x8xf32>
    %366 = math.tanh %365 : vector<32x8xf32>
    %cst_130 = arith.constant 1.000000e+00 : f32
    %367 = vector.broadcast %cst_130 : f32 to vector<32x8xf32>
    %368 = arith.subf %367, %360 : vector<32x8xf32>
    %369 = arith.mulf %368, %366 : vector<32x8xf32>
    %370 = arith.mulf %360, %340 : vector<32x8xf32>
    %371 = arith.addf %369, %370 : vector<32x8xf32>
    %c6_i32_131 = arith.constant 6 : i32
    %cst_132 = arith.constant dense<0.000000e+00> : vector<96x8xf32>
    %372 = tpu.matmul %181, %371, %cst_132 {dimension_numbers = #tpu.dot_dimension_numbers<[1], [0], [0], [1], [0, 0, 1, 1], [], []>} : vector<96x32xf32>, vector<32x8xf32>, vector<96x8xf32> -> vector<96x8xf32>
    %373 = arith.index_cast %c6_i32_131 : i32 to index
    %c0_133 = arith.constant 0 : index
    %c0_134 = arith.constant 0 : index
    %374 = vector.load %arg11[%373, %c0_133, %c0_134] : memref<8x96x8xf32, #tpu.memory_space<vmem>>, vector<1x96x8xf32>
    %375 = vector.shape_cast %374 : vector<1x96x8xf32> to vector<96x8xf32>
    %376 = vector.extract_strided_slice %375 {offsets = [0, 0], sizes = [32, 8], strides = [1, 1]} : vector<96x8xf32> to vector<32x8xf32>
    %377 = vector.extract_strided_slice %372 {offsets = [0, 0], sizes = [32, 8], strides = [1, 1]} : vector<96x8xf32> to vector<32x8xf32>
    %378 = arith.addf %376, %377 : vector<32x8xf32>
    %379 = arith.negf %378 : vector<32x8xf32>
    %380 = math.exp %379 : vector<32x8xf32>
    %cst_135 = arith.constant 1.000000e+00 : f32
    %381 = vector.broadcast %cst_135 : f32 to vector<32x8xf32>
    %382 = arith.addf %381, %380 : vector<32x8xf32>
    %383 = arith.divf %381, %382 : vector<32x8xf32>
    %384 = vector.extract_strided_slice %375 {offsets = [32, 0], sizes = [32, 8], strides = [1, 1]} : vector<96x8xf32> to vector<32x8xf32>
    %385 = vector.extract_strided_slice %372 {offsets = [32, 0], sizes = [32, 8], strides = [1, 1]} : vector<96x8xf32> to vector<32x8xf32>
    %386 = arith.addf %384, %385 : vector<32x8xf32>
    %387 = arith.negf %386 : vector<32x8xf32>
    %388 = math.exp %387 : vector<32x8xf32>
    %cst_136 = arith.constant 1.000000e+00 : f32
    %389 = vector.broadcast %cst_136 : f32 to vector<32x8xf32>
    %390 = arith.addf %389, %388 : vector<32x8xf32>
    %391 = arith.divf %389, %390 : vector<32x8xf32>
    %392 = vector.extract_strided_slice %375 {offsets = [64, 0], sizes = [32, 8], strides = [1, 1]} : vector<96x8xf32> to vector<32x8xf32>
    %393 = vector.extract_strided_slice %372 {offsets = [64, 0], sizes = [32, 8], strides = [1, 1]} : vector<96x8xf32> to vector<32x8xf32>
    %394 = arith.addf %393, %184 : vector<32x8xf32>
    %395 = arith.mulf %383, %394 : vector<32x8xf32>
    %396 = arith.addf %392, %395 : vector<32x8xf32>
    %397 = math.tanh %396 : vector<32x8xf32>
    %cst_137 = arith.constant 1.000000e+00 : f32
    %398 = vector.broadcast %cst_137 : f32 to vector<32x8xf32>
    %399 = arith.subf %398, %391 : vector<32x8xf32>
    %400 = arith.mulf %399, %397 : vector<32x8xf32>
    %401 = arith.mulf %391, %371 : vector<32x8xf32>
    %402 = arith.addf %400, %401 : vector<32x8xf32>
    %c7_i32_138 = arith.constant 7 : i32
    %cst_139 = arith.constant dense<0.000000e+00> : vector<96x8xf32>
    %403 = tpu.matmul %181, %402, %cst_139 {dimension_numbers = #tpu.dot_dimension_numbers<[1], [0], [0], [1], [0, 0, 1, 1], [], []>} : vector<96x32xf32>, vector<32x8xf32>, vector<96x8xf32> -> vector<96x8xf32>
    %404 = arith.index_cast %c7_i32_138 : i32 to index
    %c0_140 = arith.constant 0 : index
    %c0_141 = arith.constant 0 : index
    %405 = vector.load %arg11[%404, %c0_140, %c0_141] : memref<8x96x8xf32, #tpu.memory_space<vmem>>, vector<1x96x8xf32>
    %406 = vector.shape_cast %405 : vector<1x96x8xf32> to vector<96x8xf32>
    %407 = vector.extract_strided_slice %406 {offsets = [0, 0], sizes = [32, 8], strides = [1, 1]} : vector<96x8xf32> to vector<32x8xf32>
    %408 = vector.extract_strided_slice %403 {offsets = [0, 0], sizes = [32, 8], strides = [1, 1]} : vector<96x8xf32> to vector<32x8xf32>
    %409 = arith.addf %407, %408 : vector<32x8xf32>
    %410 = arith.negf %409 : vector<32x8xf32>
    %411 = math.exp %410 : vector<32x8xf32>
    %cst_142 = arith.constant 1.000000e+00 : f32
    %412 = vector.broadcast %cst_142 : f32 to vector<32x8xf32>
    %413 = arith.addf %412, %411 : vector<32x8xf32>
    %414 = arith.divf %412, %413 : vector<32x8xf32>
    %415 = vector.extract_strided_slice %406 {offsets = [32, 0], sizes = [32, 8], strides = [1, 1]} : vector<96x8xf32> to vector<32x8xf32>
    %416 = vector.extract_strided_slice %403 {offsets = [32, 0], sizes = [32, 8], strides = [1, 1]} : vector<96x8xf32> to vector<32x8xf32>
    %417 = arith.addf %415, %416 : vector<32x8xf32>
    %418 = arith.negf %417 : vector<32x8xf32>
    %419 = math.exp %418 : vector<32x8xf32>
    %cst_143 = arith.constant 1.000000e+00 : f32
    %420 = vector.broadcast %cst_143 : f32 to vector<32x8xf32>
    %421 = arith.addf %420, %419 : vector<32x8xf32>
    %422 = arith.divf %420, %421 : vector<32x8xf32>
    %423 = vector.extract_strided_slice %406 {offsets = [64, 0], sizes = [32, 8], strides = [1, 1]} : vector<96x8xf32> to vector<32x8xf32>
    %424 = vector.extract_strided_slice %403 {offsets = [64, 0], sizes = [32, 8], strides = [1, 1]} : vector<96x8xf32> to vector<32x8xf32>
    %425 = arith.addf %424, %184 : vector<32x8xf32>
    %426 = arith.mulf %414, %425 : vector<32x8xf32>
    %427 = arith.addf %423, %426 : vector<32x8xf32>
    %428 = math.tanh %427 : vector<32x8xf32>
    %cst_144 = arith.constant 1.000000e+00 : f32
    %429 = vector.broadcast %cst_144 : f32 to vector<32x8xf32>
    %430 = arith.subf %429, %422 : vector<32x8xf32>
    %431 = arith.mulf %430, %428 : vector<32x8xf32>
    %432 = arith.mulf %422, %402 : vector<32x8xf32>
    %433 = arith.addf %431, %432 : vector<32x8xf32>
    %c8_i32_145 = arith.constant 8 : i32
    %c0_146 = arith.constant 0 : index
    %c0_147 = arith.constant 0 : index
    %434 = vector.load %arg10[%c0_146, %c0_147] : memref<32x8xf32, #tpu.memory_space<vmem>>, vector<32x8xf32>
    tpu.vector_store %arg10[%c0_146, %c0_147], %433 {strides = array<i32>} : memref<32x8xf32, #tpu.memory_space<vmem>>, vector<32x8xf32>,
    %c0_148 = arith.constant 0 : index
    %c0_149 = arith.constant 0 : index
    %435 = vector.load %arg7[%c0_148, %c0_149] : memref<7x32xf32, #tpu.memory_space<vmem>>, vector<7x32xf32>
    %cst_150 = arith.constant dense<0.000000e+00> : vector<7x8xf32>
    %436 = tpu.matmul %435, %433, %cst_150 {dimension_numbers = #tpu.dot_dimension_numbers<[1], [0], [0], [1], [0, 0, 1, 1], [], []>} : vector<7x32xf32>, vector<32x8xf32>, vector<7x8xf32> -> vector<7x8xf32>
    %c0_151 = arith.constant 0 : index
    %c0_152 = arith.constant 0 : index
    %437 = vector.load %arg8[%c0_151, %c0_152] : memref<7x1xf32, #tpu.memory_space<vmem>>, vector<7x1xf32>
    %438 = vector.broadcast %437 : vector<7x1xf32> to vector<7x8xf32>
    %439 = arith.addf %436, %438 : vector<7x8xf32>
    %cst_153 = arith.constant dense<0xFF800000> : vector<8xf32>
    %440 = vector.multi_reduction <maximumf>, %439, %cst_153 [0] : vector<7x8xf32> to vector<8xf32>
    %441 = vector.shape_cast %440 : vector<8xf32> to vector<1x8xf32>
    %442 = vector.broadcast %441 : vector<1x8xf32> to vector<7x8xf32>
    %443 = arith.subf %439, %442 : vector<7x8xf32>
    %444 = math.exp %443 : vector<7x8xf32>
    %cst_154 = arith.constant dense<0.000000e+00> : vector<8xf32>
    %445 = vector.multi_reduction <add>, %444, %cst_154 [0] : vector<7x8xf32> to vector<8xf32>
    %446 = vector.shape_cast %445 : vector<8xf32> to vector<1x8xf32>
    %447 = vector.broadcast %446 : vector<1x8xf32> to vector<7x8xf32>
    %448 = arith.divf %444, %447 : vector<7x8xf32>
    %449 = vector.extract_strided_slice %448 {offsets = [0, 0], sizes = [3, 8], strides = [1, 1]} : vector<7x8xf32> to vector<3x8xf32>
    %cst_155 = arith.constant dense<0.000000e+00> : vector<8xf32>
    %450 = vector.multi_reduction <add>, %449, %cst_155 [0] : vector<3x8xf32> to vector<8xf32>
    %451 = vector.shape_cast %450 : vector<8xf32> to vector<1x8xf32>
    %cst_156 = arith.constant 1.000000e+00 : f32
    %452 = vector.broadcast %cst_156 : f32 to vector<1x8xf32>
    %453 = arith.subf %452, %451 : vector<1x8xf32>
    %c0_157 = arith.constant 0 : index
    %c0_158 = arith.constant 0 : index
    %454 = vector.load %arg9[%c0_157, %c0_158] : memref<1x8xf32, #tpu.memory_space<vmem>>, vector<1x8xf32>
    tpu.vector_store %arg9[%c0_157, %c0_158], %453 {strides = array<i32>} : memref<1x8xf32, #tpu.memory_space<vmem>>, vector<1x8xf32>,
    return
  }
  func.func @transform_0(%arg0: i32) -> (i32, i32, i32) {
    %c0_i32 = arith.constant 0 : i32
    %c0_i32_0 = arith.constant 0 : i32
    %c0_i32_1 = arith.constant 0 : i32
    return %c0_i32, %c0_i32_0, %arg0 : i32, i32, i32
  }
  func.func @transform_1(%arg0: i32) -> (i32, i32) {
    %c0_i32 = arith.constant 0 : i32
    %c0_i32_0 = arith.constant 0 : i32
    %c0_i32_1 = arith.constant 0 : i32
    return %c0_i32, %c0_i32_0 : i32, i32
  }
  func.func @transform_2(%arg0: i32) -> (i32, i32) {
    %c0_i32 = arith.constant 0 : i32
    %c0_i32_0 = arith.constant 0 : i32
    %c0_i32_1 = arith.constant 0 : i32
    return %c0_i32, %c0_i32_0 : i32, i32
  }
  func.func @transform_3(%arg0: i32) -> (i32, i32) {
    %c0_i32 = arith.constant 0 : i32
    %c0_i32_0 = arith.constant 0 : i32
    %c0_i32_1 = arith.constant 0 : i32
    return %c0_i32, %c0_i32_0 : i32, i32
  }
  func.func @transform_4(%arg0: i32) -> (i32, i32) {
    %c0_i32 = arith.constant 0 : i32
    %c0_i32_0 = arith.constant 0 : i32
    %c0_i32_1 = arith.constant 0 : i32
    return %c0_i32, %c0_i32_0 : i32, i32
  }
  func.func @transform_5(%arg0: i32) -> (i32, i32) {
    %c0_i32 = arith.constant 0 : i32
    %c0_i32_0 = arith.constant 0 : i32
    %c0_i32_1 = arith.constant 0 : i32
    return %c0_i32, %c0_i32_0 : i32, i32
  }
  func.func @transform_6(%arg0: i32) -> (i32, i32) {
    %c0_i32 = arith.constant 0 : i32
    %c0_i32_0 = arith.constant 0 : i32
    %c0_i32_1 = arith.constant 0 : i32
    return %c0_i32, %c0_i32_0 : i32, i32
  }
  func.func @transform_7(%arg0: i32) -> (i32, i32) {
    %c0_i32 = arith.constant 0 : i32
    %c0_i32_0 = arith.constant 0 : i32
    %c0_i32_1 = arith.constant 0 : i32
    return %c0_i32, %c0_i32_0 : i32, i32
  }
  func.func @transform_8(%arg0: i32) -> (i32, i32) {
    %c0_i32 = arith.constant 0 : i32
    %c0_i32_0 = arith.constant 0 : i32
    return %c0_i32, %arg0 : i32, i32
  }
  func.func @transform_9(%arg0: i32) -> (i32, i32) {
    %c0_i32 = arith.constant 0 : i32
    %c0_i32_0 = arith.constant 0 : i32
    return %c0_i32, %arg0 : i32, i32
  }
}

</mosaic_0001>

<llo_original>
// kernel: tpu_custom_call.1
$region0: #{tpu_custom_call.1}
  #allocation0 [shape = 'u32[]', space=smem, size = 0x4, offset = 0x4, fixed_abs, tag = 'smem constant byte address 0x4 - core index']
  #allocation1 [shape = 'u32[144,128]{1,0:T(1,128)}', space=vmem, size = 0x12000, scoped, tag = 'internal scratch']
  #allocation2 [shape = 'f32[8,96,8]{2,1,0:T(8,128)}', space=vmem, size = 0x60000, scoped, tag = 'scratch operand']
  %s0 = inlined_call_operand.vmem [shape: f32[8,24,8], index: 0, kind: input, shape index: {}]
  %s1 = inlined_call_operand.vmem [shape: f32[33,24], index: 1, kind: input, shape index: {}]
  %s2 = inlined_call_operand.vmem [shape: f32[96,32], index: 2, kind: input, shape index: {}]
  %s3 = inlined_call_operand.vmem [shape: f32[96,1], index: 3, kind: input, shape index: {}]
  %s4 = inlined_call_operand.vmem [shape: f32[32,1], index: 4, kind: input, shape index: {}]
  %s5 = inlined_call_operand.vmem [shape: f32[96,32], index: 5, kind: input, shape index: {}]
  %s6 = inlined_call_operand.vmem [shape: f32[7,32], index: 6, kind: input, shape index: {}]
  %s7 = inlined_call_operand.vmem [shape: f32[7,1], index: 7, kind: input, shape index: {}]
  %s8 = inlined_call_operand.hbm [shape: f32[1,8], index: 8, kind: output, shape index: {0}]
  %s9 = inlined_call_operand.vmem [shape: f32[32,8], index: 9, kind: output, shape index: {1}]
  %10 = xla_tuple %s8, %s9
  %s11 = sld [smem:[#allocation0]]
  $region50: #{tpu_custom_call.1} parent=0
    _
  %s13 = ssub.s32 1, %s11
  %s14 = scalar_select 0, %s13, %s11
  $region1: #{tpu_custom_call.1} parent=0
    #allocation3 [shape = 'u8[512]{0}', space=vmem, size = 0x400, scoped, tag = 'output window, operand 0, single buffered']
    #allocation4 [shape = 's32[1]{0}', space=sflag, size = 0x4, scoped, tag = 'scoped memory for tpu_custom_call.1']
    %15 = vsyncpa [#allocation4], 0
    // Predicated region
    $region2: #{tpu_custom_call.1} parent=1 // pred_check
      _
    $region3: #{tpu_custom_call.1} parent=1 // pred_check_branch
      %17 = sbr.rel (0) target = $region5
    $region4: #{tpu_custom_call.1} parent=1 // pred_region
      _
    $region5: #{tpu_custom_call.1} parent=1 // pred_fallthru
      _
    // Predicated region
    $region6: #{tpu_custom_call.1} parent=1 // pred_check
      _
    $region7: #{tpu_custom_call.1} parent=1 // pred_check_branch
      %19 = sbr.rel (0) target = $region9
    $region8: #{tpu_custom_call.1} parent=1 // pred_region
      _
    $region9: #{tpu_custom_call.1} parent=1 // pred_fallthru
      _
    // Predicated region
    $region10: #{tpu_custom_call.1} parent=1 // pred_check
      _
    $region11: #{tpu_custom_call.1} parent=1 // pred_check_branch
      %21 = sbr.rel (0) target = $region13
    $region12: #{tpu_custom_call.1} parent=1 // pred_region
      _
    $region13: #{tpu_custom_call.1} parent=1 // pred_fallthru
      _
    // Predicated region
    $region14: #{tpu_custom_call.1} parent=1 // pred_check
      _
    $region15: #{tpu_custom_call.1} parent=1 // pred_check_branch
      %23 = sbr.rel (0) target = $region17
    $region16: #{tpu_custom_call.1} parent=1 // pred_region
      _
    $region17: #{tpu_custom_call.1} parent=1 // pred_fallthru
      _
    // Predicated region
    $region18: #{tpu_custom_call.1} parent=1 // pred_check
      _
    $region19: #{tpu_custom_call.1} parent=1 // pred_check_branch
      %25 = sbr.rel (0) target = $region21
    $region20: #{tpu_custom_call.1} parent=1 // pred_region
      _
    $region21: #{tpu_custom_call.1} parent=1 // pred_fallthru
      _
    // Predicated region
    $region22: #{tpu_custom_call.1} parent=1 // pred_check
      _
    $region23: #{tpu_custom_call.1} parent=1 // pred_check_branch
      %27 = sbr.rel (0) target = $region25
    $region24: #{tpu_custom_call.1} parent=1 // pred_region
      _
    $region25: #{tpu_custom_call.1} parent=1 // pred_fallthru
      _
    // Predicated region
    $region26: #{tpu_custom_call.1} parent=1 // pred_check
      _
    $region27: #{tpu_custom_call.1} parent=1 // pred_check_branch
      %29 = sbr.rel (0) target = $region29
    $region28: #{tpu_custom_call.1} parent=1 // pred_region
      _
    $region29: #{tpu_custom_call.1} parent=1 // pred_fallthru
      _
    // Predicated region
    $region30: #{tpu_custom_call.1} parent=1 // pred_check
      _
    $region31: #{tpu_custom_call.1} parent=1 // pred_check_branch
      %31 = sbr.rel (0) target = $region33
    $region32: #{tpu_custom_call.1} parent=1 // pred_region
      _
    $region33: #{tpu_custom_call.1} parent=1 // pred_fallthru
      _
    %v32 = vld [vmem:[%s1] sm:$0xff]
    %v33 = vld [vmem:[%s1 + $0x8] sm:$0xff]
    %v34 = vld [vmem:[%s1 + $0x10] sm:$0xff]
    %v35 = vld [vmem:[%s1 + $0x18] sm:$0xff]
    %v36 = vld [vmem:[%s1 + $0x20] sm:$0x1]
    %v37 = vld [vmem:[%s2] sm:$0xff]
    %v38 = vld [vmem:[%s2 + $0x8] sm:$0xff]
    %v39 = vld [vmem:[%s2 + $0x10] sm:$0xff]
    %v40 = vld [vmem:[%s2 + $0x18] sm:$0xff]
    %v41 = vld [vmem:[%s2 + $0x20] sm:$0xff]
    %v42 = vld [vmem:[%s2 + $0x28] sm:$0xff]
    %v43 = vld [vmem:[%s2 + $0x30] sm:$0xff]
    %v44 = vld [vmem:[%s2 + $0x38] sm:$0xff]
    %v45 = vld [vmem:[%s2 + $0x40] sm:$0xff]
    %v46 = vld [vmem:[%s2 + $0x48] sm:$0xff]
    %v47 = vld [vmem:[%s2 + $0x50] sm:$0xff]
    %v48 = vld [vmem:[%s2 + $0x58] sm:$0xff]
    %v49 = vld [vmem:[%s3] sm:$0xff]
    %v50 = vld [vmem:[%s3 + $0x8] sm:$0xff]
    %v51 = vld [vmem:[%s3 + $0x10] sm:$0xff]
    %v52 = vld [vmem:[%s3 + $0x18] sm:$0xff]
    %v53 = vld [vmem:[%s3 + $0x20] sm:$0xff]
    %v54 = vld [vmem:[%s3 + $0x28] sm:$0xff]
    %v55 = vld [vmem:[%s3 + $0x30] sm:$0xff]
    %v56 = vld [vmem:[%s3 + $0x38] sm:$0xff]
    %v57 = vld [vmem:[%s3 + $0x40] sm:$0xff]
    %v58 = vld [vmem:[%s3 + $0x48] sm:$0xff]
    %v59 = vld [vmem:[%s3 + $0x50] sm:$0xff]
    %v60 = vld [vmem:[%s3 + $0x58] sm:$0xff]
    %62 = vset.pattern.permute.xlu0 0
    %63 = vperm.xlu0 %62, %v49
    %v64 = vpop.permute.xlu0 %63
    %67 = vset.pattern.permute.xlu0 0
    %68 = vperm.xlu0 %67, %v50
    %v69 = vpop.permute.xlu0 %68
    %72 = vset.pattern.permute.xlu0 0
    %73 = vperm.xlu0 %72, %v51
    %v74 = vpop.permute.xlu0 %73
    %77 = vset.pattern.permute.xlu0 0
    %78 = vperm.xlu0 %77, %v52
    %v79 = vpop.permute.xlu0 %78
    %82 = vset.pattern.permute.xlu0 0
    %83 = vperm.xlu0 %82, %v53
    %v84 = vpop.permute.xlu0 %83
    %87 = vset.pattern.permute.xlu0 0
    %88 = vperm.xlu0 %87, %v54
    %v89 = vpop.permute.xlu0 %88
    %92 = vset.pattern.permute.xlu0 0
    %93 = vperm.xlu0 %92, %v55
    %v94 = vpop.permute.xlu0 %93
    %97 = vset.pattern.permute.xlu0 0
    %98 = vperm.xlu0 %97, %v56
    %v99 = vpop.permute.xlu0 %98
    %102 = vset.pattern.permute.xlu0 0
    %103 = vperm.xlu0 %102, %v57
    %v104 = vpop.permute.xlu0 %103
    %107 = vset.pattern.permute.xlu0 0
    %108 = vperm.xlu0 %107, %v58
    %v109 = vpop.permute.xlu0 %108
    %112 = vset.pattern.permute.xlu0 0
    %113 = vperm.xlu0 %112, %v59
    %v114 = vpop.permute.xlu0 %113
    %117 = vset.pattern.permute.xlu0 0
    %118 = vperm.xlu0 %117, %v60
    %v119 = vpop.permute.xlu0 %118
    %v121 = vld [vmem:[%s0] sm:$0xff]
    %v122 = vld [vmem:[%s0 + $0x8] sm:$0xff]
    %v123 = vld [vmem:[%s0 + $0x10] sm:$0xff]
    %vm124 = vcmask 195584
    %v126 = vsel %vm124, %v32, 0
    %v129 = vsel %vm124, %v33, 0
    %v132 = vsel %vm124, %v34, 0
    %v135 = vsel %vm124, %v35, 0
    %v138 = vsel %vm124, %v36, 0
    %140 = vmatprep.subr.mxu0 0.0
    %141 = vmatpush1.msra.mxu0 %v121
    %142 = vmatprep.subr.mxu0 0.0
    %143 = vmatpush1.msra.mxu0 %v122
    %144 = vmatprep.subr.mxu0 0.0
    %145 = vmatpush1.msra.mxu0 %v123
    %146 = vmatprep.subr.mxu0 0.0
    %147 = vmatpush1.msra.mxu0 0.0
    %148 = vmatprep.subr.mxu0 0.0
    %149 = vmatpush1.msra.mxu0 0.0
    %150 = vmatprep.subr.mxu0 0.0
    %151 = vmatpush1.msra.mxu0 0.0
    %152 = vmatprep.subr.mxu0 0.0
    %153 = vmatpush1.msra.mxu0 0.0
    %154 = vmatprep.subr.mxu0 0.0
    %155 = vmatpush1.msra.mxu0 0.0
    %156 = vmatprep.subr.mxu0 0.0
    %157 = vmatpush1.msra.mxu0 0.0
    %158 = vmatprep.subr.mxu0 0.0
    %159 = vmatpush1.msra.mxu0 0.0
    %160 = vmatprep.subr.mxu0 0.0
    %161 = vmatpush1.msra.mxu0 0.0
    %162 = vmatprep.subr.mxu0 0.0
    %163 = vmatpush1.msra.mxu0 0.0
    %164 = vmatprep.subr.mxu0 0.0
    %165 = vmatpush1.msra.mxu0 0.0
    %166 = vmatprep.subr.mxu0 0.0
    %167 = vmatpush1.msra.mxu0 0.0
    %168 = vmatprep.subr.mxu0 0.0
    %169 = vmatpush1.msra.mxu0 0.0
    %170 = vmatprep.subr.mxu0 0.0
    %171 = vmatpush1.msra.mxu0 0.0
    %172 = vmatprep.subr.mxu0 0.0
    %173 = vmatpush1.msra.mxu0 0.0
    %174 = vmatprep.subr.mxu0 0.0
    %175 = vmatpush1.msra.mxu0 0.0
    %176 = vmatprep.subr.mxu0 0.0
    %177 = vmatpush1.msra.mxu0 0.0
    %178 = vmatprep.subr.mxu0 0.0
    %179 = vmatpush1.msra.mxu0 0.0
    %180 = vmatprep.subr.mxu0 0.0
    %181 = vmatpush1.msra.mxu0 0.0
    %182 = vmatprep.subr.mxu0 0.0
    %183 = vmatpush1.msra.mxu0 0.0
    %184 = vmatprep.subr.mxu0 0.0
    %185 = vmatpush1.msra.mxu0 0.0
    %186 = vmatprep.subr.mxu0 0.0
    %187 = vmatpush1.msra.mxu0 0.0
    %188 = vmatprep.subr.mxu0 0.0
    %189 = vmatpush1.msra.mxu0 0.0
    %190 = vmatprep.subr.mxu0 0.0
    %191 = vmatpush1.msra.mxu0 0.0
    %192 = vmatprep.subr.mxu0 0.0
    %193 = vmatpush1.msra.mxu0 0.0
    %194 = vmatprep.subr.mxu0 0.0
    %195 = vmatpush1.msra.mxu0 0.0
    %196 = vmatprep.subr.mxu0 0.0
    %197 = vmatpush1.msra.mxu0 0.0
    %198 = vmatprep.subr.mxu0 0.0
    %199 = vmatpush1.msra.mxu0 0.0
    %200 = vmatprep.subr.mxu0 0.0
    %201 = vmatpush1.msra.mxu0 0.0
    %202 = vmatprep.subr.mxu0 0.0
    %203 = vmatpush1.msra.mxu0 0.0
    %204 = vmatprep.mubr.f32.mxu0 0.0
    %205 = vmatmul.mubr.f32.gmra.mrb[0].mxu0 %v126
    %v206 = vpop.f32.mrb[0].mxu0
    %v207 = vadd.f32 0.0, %v206
    %v208 = vpop.f32.mrb[0].mxu0
    %209 = vmatprep.mubr.f32.mxu0 0.0
    %210 = vmatmul.mubr.f32.gmra.mrb[0].mxu0 %v129
    %v211 = vpop.f32.mrb[0].mxu0
    %v212 = vadd.f32 0.0, %v211
    %v213 = vpop.f32.mrb[0].mxu0
    %214 = vmatprep.mubr.f32.mxu0 0.0
    %215 = vmatmul.mubr.f32.gmra.mrb[0].mxu0 %v132
    %v216 = vpop.f32.mrb[0].mxu0
    %v217 = vadd.f32 0.0, %v216
    %v218 = vpop.f32.mrb[0].mxu0
    %219 = vmatprep.mubr.f32.mxu0 0.0
    %220 = vmatmul.mubr.f32.gmra.mrb[0].mxu0 %v135
    %v221 = vpop.f32.mrb[0].mxu0
    %v222 = vadd.f32 0.0, %v221
    %v223 = vpop.f32.mrb[0].mxu0
    %224 = vmatprep.mubr.f32.mxu0 0.0
    %225 = vmatmul.mubr.f32.gmra.mrb[0].mxu0 %v138
    %v226 = vpop.f32.mrb[0].mxu0
    %v227 = vadd.f32 0.0, %v226
    %v228 = vpop.f32.mrb[0].mxu0
    %229 = vdwg.mxu0
    %vm230 = vcmp.eq.f32.partialorder %v227, 0.0
    %v231 = vsel %vm230, 1.0, %v227
    %v232 = vrcp.pop %v231
    %v233 = vmul.f32 1.0, %v232
    %v234 = vlaneseq
    %v235 = vshrl.u32 %v234, 7
    %v236 = vsub.s32 0, %v235
    %v237 = vrot.slane %v233, %v236
    %v238 = vmul.f32 %v207, %v237
    %v239 = vmul.f32 %v212, %v237
    %v240 = vmul.f32 %v217, %v237
    %v241 = vmul.f32 %v222, %v237
    %v242 = vmax.f32 %v238, 0.0
    %v243 = vmax.f32 %v239, 0.0
    %v244 = vmax.f32 %v240, 0.0
    %v245 = vmax.f32 %v241, 0.0
    %vm246 = vcmask 261120
    %v248 = vsel %vm246, %v37, 0
    %v251 = vsel %vm246, %v38, 0
    %v254 = vsel %vm246, %v39, 0
    %v257 = vsel %vm246, %v40, 0
    %v260 = vsel %vm246, %v41, 0
    %v263 = vsel %vm246, %v42, 0
    %v266 = vsel %vm246, %v43, 0
    %v269 = vsel %vm246, %v44, 0
    %v272 = vsel %vm246, %v45, 0
    %v275 = vsel %vm246, %v46, 0
    %v278 = vsel %vm246, %v47, 0
    %v281 = vsel %vm246, %v48, 0
    %283 = vmatprep.subr.mxu0 0.0
    %284 = vmatpush1.msra.mxu0 %v242
    %285 = vmatprep.subr.mxu0 0.0
    %286 = vmatpush1.msra.mxu0 %v243
    %287 = vmatprep.subr.mxu0 0.0
    %288 = vmatpush1.msra.mxu0 %v244
    %289 = vmatprep.subr.mxu0 0.0
    %290 = vmatpush1.msra.mxu0 %v245
    %291 = vmatprep.subr.mxu0 0.0
    %292 = vmatpush1.msra.mxu0 0.0
    %293 = vmatprep.subr.mxu0 0.0
    %294 = vmatpush1.msra.mxu0 0.0
    %295 = vmatprep.subr.mxu0 0.0
    %296 = vmatpush1.msra.mxu0 0.0
    %297 = vmatprep.subr.mxu0 0.0
    %298 = vmatpush1.msra.mxu0 0.0
    %299 = vmatprep.subr.mxu0 0.0
    %300 = vmatpush1.msra.mxu0 0.0
    %301 = vmatprep.subr.mxu0 0.0
    %302 = vmatpush1.msra.mxu0 0.0
    %303 = vmatprep.subr.mxu0 0.0
    %304 = vmatpush1.msra.mxu0 0.0
    %305 = vmatprep.subr.mxu0 0.0
    %306 = vmatpush1.msra.mxu0 0.0
    %307 = vmatprep.subr.mxu0 0.0
    %308 = vmatpush1.msra.mxu0 0.0
    %309 = vmatprep.subr.mxu0 0.0
    %310 = vmatpush1.msra.mxu0 0.0
    %311 = vmatprep.subr.mxu0 0.0
    %312 = vmatpush1.msra.mxu0 0.0
    %313 = vmatprep.subr.mxu0 0.0
    %314 = vmatpush1.msra.mxu0 0.0
    %315 = vmatprep.subr.mxu0 0.0
    %316 = vmatpush1.msra.mxu0 0.0
    %317 = vmatprep.subr.mxu0 0.0
    %318 = vmatpush1.msra.mxu0 0.0
    %319 = vmatprep.subr.mxu0 0.0
    %320 = vmatpush1.msra.mxu0 0.0
    %321 = vmatprep.subr.mxu0 0.0
    %322 = vmatpush1.msra.mxu0 0.0
    %323 = vmatprep.subr.mxu0 0.0
    %324 = vmatpush1.msra.mxu0 0.0
    %325 = vmatprep.subr.mxu0 0.0
    %326 = vmatpush1.msra.mxu0 0.0
    %327 = vmatprep.subr.mxu0 0.0
    %328 = vmatpush1.msra.mxu0 0.0
    %329 = vmatprep.subr.mxu0 0.0
    %330 = vmatpush1.msra.mxu0 0.0
    %331 = vmatprep.subr.mxu0 0.0
    %332 = vmatpush1.msra.mxu0 0.0
    %333 = vmatprep.subr.mxu0 0.0
    %334 = vmatpush1.msra.mxu0 0.0
    %335 = vmatprep.subr.mxu0 0.0
    %336 = vmatpush1.msra.mxu0 0.0
    %337 = vmatprep.subr.mxu0 0.0
    %338 = vmatpush1.msra.mxu0 0.0
    %339 = vmatprep.subr.mxu0 0.0
    %340 = vmatpush1.msra.mxu0 0.0
    %341 = vmatprep.subr.mxu0 0.0
    %342 = vmatpush1.msra.mxu0 0.0
    %343 = vmatprep.subr.mxu0 0.0
    %344 = vmatpush1.msra.mxu0 0.0
    %345 = vmatprep.subr.mxu0 0.0
    %346 = vmatpush1.msra.mxu0 0.0
    %347 = vmatprep.mubr.f32.mxu0 0.0
    %348 = vmatmul.mubr.f32.gmra.mrb[0].mxu0 %v248
    %v349 = vpop.f32.mrb[0].mxu0
    %v350 = vadd.f32 %v64, %v349
    %v351 = vpop.f32.mrb[0].mxu0
    %352 = vmatprep.mubr.f32.mxu0 0.0
    %353 = vmatmul.mubr.f32.gmra.mrb[0].mxu0 %v251
    %v354 = vpop.f32.mrb[0].mxu0
    %v355 = vadd.f32 %v69, %v354
    %v356 = vpop.f32.mrb[0].mxu0
    %357 = vmatprep.mubr.f32.mxu0 0.0
    %358 = vmatmul.mubr.f32.gmra.mrb[0].mxu0 %v254
    %v359 = vpop.f32.mrb[0].mxu0
    %v360 = vadd.f32 %v74, %v359
    %v361 = vpop.f32.mrb[0].mxu0
    %362 = vmatprep.mubr.f32.mxu0 0.0
    %363 = vmatmul.mubr.f32.gmra.mrb[0].mxu0 %v257
    %v364 = vpop.f32.mrb[0].mxu0
    %v365 = vadd.f32 %v79, %v364
    %v366 = vpop.f32.mrb[0].mxu0
    %367 = vmatprep.mubr.f32.mxu0 0.0
    %368 = vmatmul.mubr.f32.gmra.mrb[0].mxu0 %v260
    %v369 = vpop.f32.mrb[0].mxu0
    %v370 = vadd.f32 %v84, %v369
    %v371 = vpop.f32.mrb[0].mxu0
    %372 = vmatprep.mubr.f32.mxu0 0.0
    %373 = vmatmul.mubr.f32.gmra.mrb[0].mxu0 %v263
    %v374 = vpop.f32.mrb[0].mxu0
    %v375 = vadd.f32 %v89, %v374
    %v376 = vpop.f32.mrb[0].mxu0
    %377 = vmatprep.mubr.f32.mxu0 0.0
    %378 = vmatmul.mubr.f32.gmra.mrb[0].mxu0 %v266
    %v379 = vpop.f32.mrb[0].mxu0
    %v380 = vadd.f32 %v94, %v379
    %v381 = vpop.f32.mrb[0].mxu0
    %382 = vmatprep.mubr.f32.mxu0 0.0
    %383 = vmatmul.mubr.f32.gmra.mrb[0].mxu0 %v269
    %v384 = vpop.f32.mrb[0].mxu0
    %v385 = vadd.f32 %v99, %v384
    %v386 = vpop.f32.mrb[0].mxu0
    %387 = vmatprep.mubr.f32.mxu0 0.0
    %388 = vmatmul.mubr.f32.gmra.mrb[0].mxu0 %v272
    %v389 = vpop.f32.mrb[0].mxu0
    %v390 = vadd.f32 %v104, %v389
    %v391 = vpop.f32.mrb[0].mxu0
    %392 = vmatprep.mubr.f32.mxu0 0.0
    %393 = vmatmul.mubr.f32.gmra.mrb[0].mxu0 %v275
    %v394 = vpop.f32.mrb[0].mxu0
    %v395 = vadd.f32 %v109, %v394
    %v396 = vpop.f32.mrb[0].mxu0
    %397 = vmatprep.mubr.f32.mxu0 0.0
    %398 = vmatmul.mubr.f32.gmra.mrb[0].mxu0 %v278
    %v399 = vpop.f32.mrb[0].mxu0
    %v400 = vadd.f32 %v114, %v399
    %v401 = vpop.f32.mrb[0].mxu0
    %402 = vmatprep.mubr.f32.mxu0 0.0
    %403 = vmatmul.mubr.f32.gmra.mrb[0].mxu0 %v281
    %v404 = vpop.f32.mrb[0].mxu0
    %v405 = vadd.f32 %v119, %v404
    %v406 = vpop.f32.mrb[0].mxu0
    %407 = vdwg.mxu0
    %vm408 = vcmask 64512
    %409 = vst.msk [vmem:[#allocation2] sm:$0xff] %vm408, %v350
    %410 = vst.msk [vmem:[#allocation2 + $0x8] sm:$0xff] %vm408, %v355
    %411 = vst.msk [vmem:[#allocation2 + $0x10] sm:$0xff] %vm408, %v360
    %412 = vst.msk [vmem:[#allocation2 + $0x18] sm:$0xff] %vm408, %v365
    %413 = vst.msk [vmem:[#allocation2 + $0x20] sm:$0xff] %vm408, %v370
    %414 = vst.msk [vmem:[#allocation2 + $0x28] sm:$0xff] %vm408, %v375
    %415 = vst.msk [vmem:[#allocation2 + $0x30] sm:$0xff] %vm408, %v380
    %416 = vst.msk [vmem:[#allocation2 + $0x38] sm:$0xff] %vm408, %v385
    %417 = vst.msk [vmem:[#allocation2 + $0x40] sm:$0xff] %vm408, %v390
    %418 = vst.msk [vmem:[#allocation2 + $0x48] sm:$0xff] %vm408, %v395
    %419 = vst.msk [vmem:[#allocation2 + $0x50] sm:$0xff] %vm408, %v400
    %420 = vst.msk [vmem:[#allocation2 + $0x58] sm:$0xff] %vm408, %v405
    %s421 = scalar_lea.vmem %s0, 24
    %v422 = vld [vmem:[%s421] sm:$0xff]
    %v423 = vld [vmem:[%s421 + $0x8] sm:$0xff]
    %v424 = vld [vmem:[%s421 + $0x10] sm:$0xff]
    %425 = vmatprep.subr.mxu0 0.0
    %426 = vmatpush1.msra.mxu0 %v422
    %427 = vmatprep.subr.mxu0 0.0
    %428 = vmatpush1.msra.mxu0 %v423
    %429 = vmatprep.subr.mxu0 0.0
    %430 = vmatpush1.msra.mxu0 %v424
    %431 = vmatprep.subr.mxu0 0.0
    %432 = vmatpush1.msra.mxu0 0.0
    %433 = vmatprep.subr.mxu0 0.0
    %434 = vmatpush1.msra.mxu0 0.0
    %435 = vmatprep.subr.mxu0 0.0
    %436 = vmatpush1.msra.mxu0 0.0
    %437 = vmatprep.subr.mxu0 0.0
    %438 = vmatpush1.msra.mxu0 0.0
    %439 = vmatprep.subr.mxu0 0.0
    %440 = vmatpush1.msra.mxu0 0.0
    %441 = vmatprep.subr.mxu0 0.0
    %442 = vmatpush1.msra.mxu0 0.0
    %443 = vmatprep.subr.mxu0 0.0
    %444 = vmatpush1.msra.mxu0 0.0
    %445 = vmatprep.subr.mxu0 0.0
    %446 = vmatpush1.msra.mxu0 0.0
    %447 = vmatprep.subr.mxu0 0.0
    %448 = vmatpush1.msra.mxu0 0.0
    %449 = vmatprep.subr.mxu0 0.0
    %450 = vmatpush1.msra.mxu0 0.0
    %451 = vmatprep.subr.mxu0 0.0
    %452 = vmatpush1.msra.mxu0 0.0
    %453 = vmatprep.subr.mxu0 0.0
    %454 = vmatpush1.msra.mxu0 0.0
    %455 = vmatprep.subr.mxu0 0.0
    %456 = vmatpush1.msra.mxu0 0.0
    %457 = vmatprep.subr.mxu0 0.0
    %458 = vmatpush1.msra.mxu0 0.0
    %459 = vmatprep.subr.mxu0 0.0
    %460 = vmatpush1.msra.mxu0 0.0
    %461 = vmatprep.subr.mxu0 0.0
    %462 = vmatpush1.msra.mxu0 0.0
    %463 = vmatprep.subr.mxu0 0.0
    %464 = vmatpush1.msra.mxu0 0.0
    %465 = vmatprep.subr.mxu0 0.0
    %466 = vmatpush1.msra.mxu0 0.0
    %467 = vmatprep.subr.mxu0 0.0
    %468 = vmatpush1.msra.mxu0 0.0
    %469 = vmatprep.subr.mxu0 0.0
    %470 = vmatpush1.msra.mxu0 0.0
    %471 = vmatprep.subr.mxu0 0.0
    %472 = vmatpush1.msra.mxu0 0.0
    %473 = vmatprep.subr.mxu0 0.0
    %474 = vmatpush1.msra.mxu0 0.0
    %475 = vmatprep.subr.mxu0 0.0
    %476 = vmatpush1.msra.mxu0 0.0
    %477 = vmatprep.subr.mxu0 0.0
    %478 = vmatpush1.msra.mxu0 0.0
    %479 = vmatprep.subr.mxu0 0.0
    %480 = vmatpush1.msra.mxu0 0.0
    %481 = vmatprep.subr.mxu0 0.0
    %482 = vmatpush1.msra.mxu0 0.0
    %483 = vmatprep.subr.mxu0 0.0
    %484 = vmatpush1.msra.mxu0 0.0
    %485 = vmatprep.subr.mxu0 0.0
    %486 = vmatpush1.msra.mxu0 0.0
    %487 = vmatprep.subr.mxu0 0.0
    %488 = vmatpush1.msra.mxu0 0.0
    %489 = vmatprep.mubr.f32.mxu0 0.0
    %490 = vmatmul.mubr.f32.gmra.mrb[0].mxu0 %v126
    %v491 = vpop.f32.mrb[0].mxu0
    %v492 = vadd.f32 0.0, %v491
    %v493 = vpop.f32.mrb[0].mxu0
    %494 = vmatprep.mubr.f32.mxu0 0.0
    %495 = vmatmul.mubr.f32.gmra.mrb[0].mxu0 %v129
    %v496 = vpop.f32.mrb[0].mxu0
    %v497 = vadd.f32 0.0, %v496
    %v498 = vpop.f32.mrb[0].mxu0
    %499 = vmatprep.mubr.f32.mxu0 0.0
    %500 = vmatmul.mubr.f32.gmra.mrb[0].mxu0 %v132
    %v501 = vpop.f32.mrb[0].mxu0
    %v502 = vadd.f32 0.0, %v501
    %v503 = vpop.f32.mrb[0].mxu0
    %504 = vmatprep.mubr.f32.mxu0 0.0
    %505 = vmatmul.mubr.f32.gmra.mrb[0].mxu0 %v135
    %v506 = vpop.f32.mrb[0].mxu0
    %v507 = vadd.f32 0.0, %v506
    %v508 = vpop.f32.mrb[0].mxu0
    %509 = vmatprep.mubr.f32.mxu0 0.0
    %510 = vmatmul.mubr.f32.gmra.mrb[0].mxu0 %v138
    %v511 = vpop.f32.mrb[0].mxu0
    %v512 = vadd.f32 0.0, %v511
    %v513 = vpop.f32.mrb[0].mxu0
    %514 = vdwg.mxu0
    %vm515 = vcmp.eq.f32.partialorder %v512, 0.0
    %v516 = vsel %vm515, 1.0, %v512
    %v517 = vrcp.pop %v516
    %v518 = vmul.f32 1.0, %v517
    %v519 = vlaneseq
    %v520 = vshrl.u32 %v519, 7
    %v521 = vsub.s32 0, %v520
    %v522 = vrot.slane %v518, %v521
    %v523 = vmul.f32 %v492, %v522
    %v524 = vmul.f32 %v497, %v522
    %v525 = vmul.f32 %v502, %v522
    %v526 = vmul.f32 %v507, %v522
    %v527 = vmax.f32 %v523, 0.0
    %v528 = vmax.f32 %v524, 0.0
    %v529 = vmax.f32 %v525, 0.0
    %v530 = vmax.f32 %v526, 0.0
    %531 = vmatprep.subr.mxu0 0.0
    %532 = vmatpush1.msra.mxu0 %v527
    %533 = vmatprep.subr.mxu0 0.0
    %534 = vmatpush1.msra.mxu0 %v528
    %535 = vmatprep.subr.mxu0 0.0
    %536 = vmatpush1.msra.mxu0 %v529
    %537 = vmatprep.subr.mxu0 0.0
    %538 = vmatpush1.msra.mxu0 %v530
    %539 = vmatprep.subr.mxu0 0.0
    %540 = vmatpush1.msra.mxu0 0.0
    %541 = vmatprep.subr.mxu0 0.0
    %542 = vmatpush1.msra.mxu0 0.0
    %543 = vmatprep.subr.mxu0 0.0
    %544 = vmatpush1.msra.mxu0 0.0
    %545 = vmatprep.subr.mxu0 0.0
    %546 = vmatpush1.msra.mxu0 0.0
    %547 = vmatprep.subr.mxu0 0.0
    %548 = vmatpush1.msra.mxu0 0.0
    %549 = vmatprep.subr.mxu0 0.0
    %550 = vmatpush1.msra.mxu0 0.0
    %551 = vmatprep.subr.mxu0 0.0
    %552 = vmatpush1.msra.mxu0 0.0
    %553 = vmatprep.subr.mxu0 0.0
    %554 = vmatpush1.msra.mxu0 0.0
    %555 = vmatprep.subr.mxu0 0.0
    %556 = vmatpush1.msra.mxu0 0.0
    %557 = vmatprep.subr.mxu0 0.0
    %558 = vmatpush1.msra.mxu0 0.0
    %559 = vmatprep.subr.mxu0 0.0
    %560 = vmatpush1.msra.mxu0 0.0
    %561 = vmatprep.subr.mxu0 0.0
    %562 = vmatpush1.msra.mxu0 0.0
    %563 = vmatprep.subr.mxu0 0.0
    %564 = vmatpush1.msra.mxu0 0.0
    %565 = vmatprep.subr.mxu0 0.0
    %566 = vmatpush1.msra.mxu0 0.0
    %567 = vmatprep.subr.mxu0 0.0
    %568 = vmatpush1.msra.mxu0 0.0
    %569 = vmatprep.subr.mxu0 0.0
    %570 = vmatpush1.msra.mxu0 0.0
    %571 = vmatprep.subr.mxu0 0.0
    %572 = vmatpush1.msra.mxu0 0.0
    %573 = vmatprep.subr.mxu0 0.0
    %574 = vmatpush1.msra.mxu0 0.0
    %575 = vmatprep.subr.mxu0 0.0
    %576 = vmatpush1.msra.mxu0 0.0
    %577 = vmatprep.subr.mxu0 0.0
    %578 = vmatpush1.msra.mxu0 0.0
    %579 = vmatprep.subr.mxu0 0.0
    %580 = vmatpush1.msra.mxu0 0.0
    %581 = vmatprep.subr.mxu0 0.0
    %582 = vmatpush1.msra.mxu0 0.0
    %583 = vmatprep.subr.mxu0 0.0
    %584 = vmatpush1.msra.mxu0 0.0
    %585 = vmatprep.subr.mxu0 0.0
    %586 = vmatpush1.msra.mxu0 0.0
    %587 = vmatprep.subr.mxu0 0.0
    %588 = vmatpush1.msra.mxu0 0.0
    %589 = vmatprep.subr.mxu0 0.0
    %590 = vmatpush1.msra.mxu0 0.0
    %591 = vmatprep.subr.mxu0 0.0
    %592 = vmatpush1.msra.mxu0 0.0
    %593 = vmatprep.subr.mxu0 0.0
    %594 = vmatpush1.msra.mxu0 0.0
    %595 = vmatprep.mubr.f32.mxu0 0.0
    %596 = vmatmul.mubr.f32.gmra.mrb[0].mxu0 %v248
    %v597 = vpop.f32.mrb[0].mxu0
    %v598 = vadd.f32 %v64, %v597
    %v599 = vpop.f32.mrb[0].mxu0
    %600 = vmatprep.mubr.f32.mxu0 0.0
    %601 = vmatmul.mubr.f32.gmra.mrb[0].mxu0 %v251
    %v602 = vpop.f32.mrb[0].mxu0
    %v603 = vadd.f32 %v69, %v602
    %v604 = vpop.f32.mrb[0].mxu0
    %605 = vmatprep.mubr.f32.mxu0 0.0
    %606 = vmatmul.mubr.f32.gmra.mrb[0].mxu0 %v254
    %v607 = vpop.f32.mrb[0].mxu0
    %v608 = vadd.f32 %v74, %v607
    %v609 = vpop.f32.mrb[0].mxu0
    %610 = vmatprep.mubr.f32.mxu0 0.0
    %611 = vmatmul.mubr.f32.gmra.mrb[0].mxu0 %v257
    %v612 = vpop.f32.mrb[0].mxu0
    %v613 = vadd.f32 %v79, %v612
    %v614 = vpop.f32.mrb[0].mxu0
    %615 = vmatprep.mubr.f32.mxu0 0.0
    %616 = vmatmul.mubr.f32.gmra.mrb[0].mxu0 %v260
    %v617 = vpop.f32.mrb[0].mxu0
    %v618 = vadd.f32 %v84, %v617
    %v619 = vpop.f32.mrb[0].mxu0
    %620 = vmatprep.mubr.f32.mxu0 0.0
    %621 = vmatmul.mubr.f32.gmra.mrb[0].mxu0 %v263
    %v622 = vpop.f32.mrb[0].mxu0
    %v623 = vadd.f32 %v89, %v622
    %v624 = vpop.f32.mrb[0].mxu0
    %625 = vmatprep.mubr.f32.mxu0 0.0
    %626 = vmatmul.mubr.f32.gmra.mrb[0].mxu0 %v266
    %v627 = vpop.f32.mrb[0].mxu0
    %v628 = vadd.f32 %v94, %v627
    %v629 = vpop.f32.mrb[0].mxu0
    %630 = vmatprep.mubr.f32.mxu0 0.0
    %631 = vmatmul.mubr.f32.gmra.mrb[0].mxu0 %v269
    %v632 = vpop.f32.mrb[0].mxu0
    %v633 = vadd.f32 %v99, %v632
    %v634 = vpop.f32.mrb[0].mxu0
    %635 = vmatprep.mubr.f32.mxu0 0.0
    %636 = vmatmul.mubr.f32.gmra.mrb[0].mxu0 %v272
    %v637 = vpop.f32.mrb[0].mxu0
    %v638 = vadd.f32 %v104, %v637
    %v639 = vpop.f32.mrb[0].mxu0
    %640 = vmatprep.mubr.f32.mxu0 0.0
    %641 = vmatmul.mubr.f32.gmra.mrb[0].mxu0 %v275
    %v642 = vpop.f32.mrb[0].mxu0
    %v643 = vadd.f32 %v109, %v642
    %v644 = vpop.f32.mrb[0].mxu0
    %645 = vmatprep.mubr.f32.mxu0 0.0
    %646 = vmatmul.mubr.f32.gmra.mrb[0].mxu0 %v278
    %v647 = vpop.f32.mrb[0].mxu0
    %v648 = vadd.f32 %v114, %v647
    %v649 = vpop.f32.mrb[0].mxu0
    %650 = vmatprep.mubr.f32.mxu0 0.0
    %651 = vmatmul.mubr.f32.gmra.mrb[0].mxu0 %v281
    %v652 = vpop.f32.mrb[0].mxu0
    %v653 = vadd.f32 %v119, %v652
    %v654 = vpop.f32.mrb[0].mxu0
    %655 = vdwg.mxu0
    %s656 = scalar_lea.vmem [#allocation2], 96
    %657 = vst.msk [vmem:[%s656] sm:$0xff] %vm408, %v598
    %658 = vst.msk [vmem:[%s656 + $0x8] sm:$0xff] %vm408, %v603
    %659 = vst.msk [vmem:[%s656 + $0x10] sm:$0xff] %vm408, %v608
    %660 = vst.msk [vmem:[%s656 + $0x18] sm:$0xff] %vm408, %v613
    %661 = vst.msk [vmem:[%s656 + $0x20] sm:$0xff] %vm408, %v618
    %662 = vst.msk [vmem:[%s656 + $0x28] sm:$0xff] %vm408, %v623
    %663 = vst.msk [vmem:[%s656 + $0x30] sm:$0xff] %vm408, %v628
    %664 = vst.msk [vmem:[%s656 + $0x38] sm:$0xff] %vm408, %v633
    %665 = vst.msk [vmem:[%s656 + $0x40] sm:$0xff] %vm408, %v638
    %666 = vst.msk [vmem:[%s656 + $0x48] sm:$0xff] %vm408, %v643
    %667 = vst.msk [vmem:[%s656 + $0x50] sm:$0xff] %vm408, %v648
    %668 = vst.msk [vmem:[%s656 + $0x58] sm:$0xff] %vm408, %v653
    %s669 = scalar_lea.vmem %s0, 48
    %v670 = vld [vmem:[%s669] sm:$0xff]
    %v671 = vld [vmem:[%s669 + $0x8] sm:$0xff]
    %v672 = vld [vmem:[%s669 + $0x10] sm:$0xff]
    %673 = vmatprep.subr.mxu0 0.0
    %674 = vmatpush1.msra.mxu0 %v670
    %675 = vmatprep.subr.mxu0 0.0
    %676 = vmatpush1.msra.mxu0 %v671
    %677 = vmatprep.subr.mxu0 0.0
    %678 = vmatpush1.msra.mxu0 %v672
    %679 = vmatprep.subr.mxu0 0.0
    %680 = vmatpush1.msra.mxu0 0.0
    %681 = vmatprep.subr.mxu0 0.0
    %682 = vmatpush1.msra.mxu0 0.0
    %683 = vmatprep.subr.mxu0 0.0
    %684 = vmatpush1.msra.mxu0 0.0
    %685 = vmatprep.subr.mxu0 0.0
    %686 = vmatpush1.msra.mxu0 0.0
    %687 = vmatprep.subr.mxu0 0.0
    %688 = vmatpush1.msra.mxu0 0.0
    %689 = vmatprep.subr.mxu0 0.0
    %690 = vmatpush1.msra.mxu0 0.0
    %691 = vmatprep.subr.mxu0 0.0
    %692 = vmatpush1.msra.mxu0 0.0
    %693 = vmatprep.subr.mxu0 0.0
    %694 = vmatpush1.msra.mxu0 0.0
    %695 = vmatprep.subr.mxu0 0.0
    %696 = vmatpush1.msra.mxu0 0.0
    %697 = vmatprep.subr.mxu0 0.0
    %698 = vmatpush1.msra.mxu0 0.0
    %699 = vmatprep.subr.mxu0 0.0
    %700 = vmatpush1.msra.mxu0 0.0
    %701 = vmatprep.subr.mxu0 0.0
    %702 = vmatpush1.msra.mxu0 0.0
    %703 = vmatprep.subr.mxu0 0.0
    %704 = vmatpush1.msra.mxu0 0.0
    %705 = vmatprep.subr.mxu0 0.0
    %706 = vmatpush1.msra.mxu0 0.0
    %707 = vmatprep.subr.mxu0 0.0
    %708 = vmatpush1.msra.mxu0 0.0
    %709 = vmatprep.subr.mxu0 0.0
    %710 = vmatpush1.msra.mxu0 0.0
    %711 = vmatprep.subr.mxu0 0.0
    %712 = vmatpush1.msra.mxu0 0.0
    %713 = vmatprep.subr.mxu0 0.0
    %714 = vmatpush1.msra.mxu0 0.0
    %715 = vmatprep.subr.mxu0 0.0
    %716 = vmatpush1.msra.mxu0 0.0
    %717 = vmatprep.subr.mxu0 0.0
    %718 = vmatpush1.msra.mxu0 0.0
    %719 = vmatprep.subr.mxu0 0.0
    %720 = vmatpush1.msra.mxu0 0.0
    %721 = vmatprep.subr.mxu0 0.0
    %722 = vmatpush1.msra.mxu0 0.0
    %723 = vmatprep.subr.mxu0 0.0
    %724 = vmatpush1.msra.mxu0 0.0
    %725 = vmatprep.subr.mxu0 0.0
    %726 = vmatpush1.msra.mxu0 0.0
    %727 = vmatprep.subr.mxu0 0.0
    %728 = vmatpush1.msra.mxu0 0.0
    %729 = vmatprep.subr.mxu0 0.0
    %730 = vmatpush1.msra.mxu0 0.0
    %731 = vmatprep.subr.mxu0 0.0
    %732 = vmatpush1.msra.mxu0 0.0
    %733 = vmatprep.subr.mxu0 0.0
    %734 = vmatpush1.msra.mxu0 0.0
    %735 = vmatprep.subr.mxu0 0.0
    %736 = vmatpush1.msra.mxu0 0.0
    %737 = vmatprep.mubr.f32.mxu0 0.0
    %738 = vmatmul.mubr.f32.gmra.mrb[0].mxu0 %v126
    %v739 = vpop.f32.mrb[0].mxu0
    %v740 = vadd.f32 0.0, %v739
    %v741 = vpop.f32.mrb[0].mxu0
    %742 = vmatprep.mubr.f32.mxu0 0.0
    %743 = vmatmul.mubr.f32.gmra.mrb[0].mxu0 %v129
    %v744 = vpop.f32.mrb[0].mxu0
    %v745 = vadd.f32 0.0, %v744
    %v746 = vpop.f32.mrb[0].mxu0
    %747 = vmatprep.mubr.f32.mxu0 0.0
    %748 = vmatmul.mubr.f32.gmra.mrb[0].mxu0 %v132
    %v749 = vpop.f32.mrb[0].mxu0
    %v750 = vadd.f32 0.0, %v749
    %v751 = vpop.f32.mrb[0].mxu0
    %752 = vmatprep.mubr.f32.mxu0 0.0
    %753 = vmatmul.mubr.f32.gmra.mrb[0].mxu0 %v135
    %v754 = vpop.f32.mrb[0].mxu0
    %v755 = vadd.f32 0.0, %v754
    %v756 = vpop.f32.mrb[0].mxu0
    %757 = vmatprep.mubr.f32.mxu0 0.0
    %758 = vmatmul.mubr.f32.gmra.mrb[0].mxu0 %v138
    %v759 = vpop.f32.mrb[0].mxu0
    %v760 = vadd.f32 0.0, %v759
    %v761 = vpop.f32.mrb[0].mxu0
    %762 = vdwg.mxu0
    %vm763 = vcmp.eq.f32.partialorder %v760, 0.0
    %v764 = vsel %vm763, 1.0, %v760
    %v765 = vrcp.pop %v764
    %v766 = vmul.f32 1.0, %v765
    %v767 = vlaneseq
    %v768 = vshrl.u32 %v767, 7
    %v769 = vsub.s32 0, %v768
    %v770 = vrot.slane %v766, %v769
    %v771 = vmul.f32 %v740, %v770
    %v772 = vmul.f32 %v745, %v770
    %v773 = vmul.f32 %v750, %v770
    %v774 = vmul.f32 %v755, %v770
    %v775 = vmax.f32 %v771, 0.0
    %v776 = vmax.f32 %v772, 0.0
    %v777 = vmax.f32 %v773, 0.0
    %v778 = vmax.f32 %v774, 0.0
    %779 = vmatprep.subr.mxu0 0.0
    %780 = vmatpush1.msra.mxu0 %v775
    %781 = vmatprep.subr.mxu0 0.0
    %782 = vmatpush1.msra.mxu0 %v776
    %783 = vmatprep.subr.mxu0 0.0
    %784 = vmatpush1.msra.mxu0 %v777
    %785 = vmatprep.subr.mxu0 0.0
    %786 = vmatpush1.msra.mxu0 %v778
    %787 = vmatprep.subr.mxu0 0.0
    %788 = vmatpush1.msra.mxu0 0.0
    %789 = vmatprep.subr.mxu0 0.0
    %790 = vmatpush1.msra.mxu0 0.0
    %791 = vmatprep.subr.mxu0 0.0
    %792 = vmatpush1.msra.mxu0 0.0
    %793 = vmatprep.subr.mxu0 0.0
    %794 = vmatpush1.msra.mxu0 0.0
    %795 = vmatprep.subr.mxu0 0.0
    %796 = vmatpush1.msra.mxu0 0.0
    %797 = vmatprep.subr.mxu0 0.0
    %798 = vmatpush1.msra.mxu0 0.0
    %799 = vmatprep.subr.mxu0 0.0
    %800 = vmatpush1.msra.mxu0 0.0
    %801 = vmatprep.subr.mxu0 0.0
    %802 = vmatpush1.msra.mxu0 0.0
    %803 = vmatprep.subr.mxu0 0.0
    %804 = vmatpush1.msra.mxu0 0.0
    %805 = vmatprep.subr.mxu0 0.0
    %806 = vmatpush1.msra.mxu0 0.0
    %807 = vmatprep.subr.mxu0 0.0
    %808 = vmatpush1.msra.mxu0 0.0
    %809 = vmatprep.subr.mxu0 0.0
    %810 = vmatpush1.msra.mxu0 0.0
    %811 = vmatprep.subr.mxu0 0.0
    %812 = vmatpush1.msra.mxu0 0.0
    %813 = vmatprep.subr.mxu0 0.0
    %814 = vmatpush1.msra.mxu0 0.0
    %815 = vmatprep.subr.mxu0 0.0
    %816 = vmatpush1.msra.mxu0 0.0
    %817 = vmatprep.subr.mxu0 0.0
    %818 = vmatpush1.msra.mxu0 0.0
    %819 = vmatprep.subr.mxu0 0.0
    %820 = vmatpush1.msra.mxu0 0.0
    %821 = vmatprep.subr.mxu0 0.0
    %822 = vmatpush1.msra.mxu0 0.0
    %823 = vmatprep.subr.mxu0 0.0
    %824 = vmatpush1.msra.mxu0 0.0
    %825 = vmatprep.subr.mxu0 0.0
    %826 = vmatpush1.msra.mxu0 0.0
    %827 = vmatprep.subr.mxu0 0.0
    %828 = vmatpush1.msra.mxu0 0.0
    %829 = vmatprep.subr.mxu0 0.0
    %830 = vmatpush1.msra.mxu0 0.0
    %831 = vmatprep.subr.mxu0 0.0
    %832 = vmatpush1.msra.mxu0 0.0
    %833 = vmatprep.subr.mxu0 0.0
    %834 = vmatpush1.msra.mxu0 0.0
    %835 = vmatprep.subr.mxu0 0.0
    %836 = vmatpush1.msra.mxu0 0.0
    %837 = vmatprep.subr.mxu0 0.0
    %838 = vmatpush1.msra.mxu0 0.0
    %839 = vmatprep.subr.mxu0 0.0
    %840 = vmatpush1.msra.mxu0 0.0
    %841 = vmatprep.subr.mxu0 0.0
    %842 = vmatpush1.msra.mxu0 0.0
    %843 = vmatprep.mubr.f32.mxu0 0.0
    %844 = vmatmul.mubr.f32.gmra.mrb[0].mxu0 %v248
    %v845 = vpop.f32.mrb[0].mxu0
    %v846 = vadd.f32 %v64, %v845
    %v847 = vpop.f32.mrb[0].mxu0
    %848 = vmatprep.mubr.f32.mxu0 0.0
    %849 = vmatmul.mubr.f32.gmra.mrb[0].mxu0 %v251
    %v850 = vpop.f32.mrb[0].mxu0
    %v851 = vadd.f32 %v69, %v850
    %v852 = vpop.f32.mrb[0].mxu0
    %853 = vmatprep.mubr.f32.mxu0 0.0
    %854 = vmatmul.mubr.f32.gmra.mrb[0].mxu0 %v254
    %v855 = vpop.f32.mrb[0].mxu0
    %v856 = vadd.f32 %v74, %v855
    %v857 = vpop.f32.mrb[0].mxu0
    %858 = vmatprep.mubr.f32.mxu0 0.0
    %859 = vmatmul.mubr.f32.gmra.mrb[0].mxu0 %v257
    %v860 = vpop.f32.mrb[0].mxu0
    %v861 = vadd.f32 %v79, %v860
    %v862 = vpop.f32.mrb[0].mxu0
    %863 = vmatprep.mubr.f32.mxu0 0.0
    %864 = vmatmul.mubr.f32.gmra.mrb[0].mxu0 %v260
    %v865 = vpop.f32.mrb[0].mxu0
    %v866 = vadd.f32 %v84, %v865
    %v867 = vpop.f32.mrb[0].mxu0
    %868 = vmatprep.mubr.f32.mxu0 0.0
    %869 = vmatmul.mubr.f32.gmra.mrb[0].mxu0 %v263
    %v870 = vpop.f32.mrb[0].mxu0
    %v871 = vadd.f32 %v89, %v870
    %v872 = vpop.f32.mrb[0].mxu0
    %873 = vmatprep.mubr.f32.mxu0 0.0
    %874 = vmatmul.mubr.f32.gmra.mrb[0].mxu0 %v266
    %v875 = vpop.f32.mrb[0].mxu0
    %v876 = vadd.f32 %v94, %v875
    %v877 = vpop.f32.mrb[0].mxu0
    %878 = vmatprep.mubr.f32.mxu0 0.0
    %879 = vmatmul.mubr.f32.gmra.mrb[0].mxu0 %v269
    %v880 = vpop.f32.mrb[0].mxu0
    %v881 = vadd.f32 %v99, %v880
    %v882 = vpop.f32.mrb[0].mxu0
    %883 = vmatprep.mubr.f32.mxu0 0.0
    %884 = vmatmul.mubr.f32.gmra.mrb[0].mxu0 %v272
    %v885 = vpop.f32.mrb[0].mxu0
    %v886 = vadd.f32 %v104, %v885
    %v887 = vpop.f32.mrb[0].mxu0
    %888 = vmatprep.mubr.f32.mxu0 0.0
    %889 = vmatmul.mubr.f32.gmra.mrb[0].mxu0 %v275
    %v890 = vpop.f32.mrb[0].mxu0
    %v891 = vadd.f32 %v109, %v890
    %v892 = vpop.f32.mrb[0].mxu0
    %893 = vmatprep.mubr.f32.mxu0 0.0
    %894 = vmatmul.mubr.f32.gmra.mrb[0].mxu0 %v278
    %v895 = vpop.f32.mrb[0].mxu0
    %v896 = vadd.f32 %v114, %v895
    %v897 = vpop.f32.mrb[0].mxu0
    %898 = vmatprep.mubr.f32.mxu0 0.0
    %899 = vmatmul.mubr.f32.gmra.mrb[0].mxu0 %v281
    %v900 = vpop.f32.mrb[0].mxu0
    %v901 = vadd.f32 %v119, %v900
    %v902 = vpop.f32.mrb[0].mxu0
    %903 = vdwg.mxu0
    %s904 = scalar_lea.vmem [#allocation2], 192
    %905 = vst.msk [vmem:[%s904] sm:$0xff] %vm408, %v846
    %906 = vst.msk [vmem:[%s904 + $0x8] sm:$0xff] %vm408, %v851
    %907 = vst.msk [vmem:[%s904 + $0x10] sm:$0xff] %vm408, %v856
    %908 = vst.msk [vmem:[%s904 + $0x18] sm:$0xff] %vm408, %v861
    %909 = vst.msk [vmem:[%s904 + $0x20] sm:$0xff] %vm408, %v866
    %910 = vst.msk [vmem:[%s904 + $0x28] sm:$0xff] %vm408, %v871
    %911 = vst.msk [vmem:[%s904 + $0x30] sm:$0xff] %vm408, %v876
    %912 = vst.msk [vmem:[%s904 + $0x38] sm:$0xff] %vm408, %v881
    %913 = vst.msk [vmem:[%s904 + $0x40] sm:$0xff] %vm408, %v886
    %914 = vst.msk [vmem:[%s904 + $0x48] sm:$0xff] %vm408, %v891
    %915 = vst.msk [vmem:[%s904 + $0x50] sm:$0xff] %vm408, %v896
    %916 = vst.msk [vmem:[%s904 + $0x58] sm:$0xff] %vm408, %v901
    %s917 = scalar_lea.vmem %s0, 72
    %v918 = vld [vmem:[%s917] sm:$0xff]
    %v919 = vld [vmem:[%s917 + $0x8] sm:$0xff]
    %v920 = vld [vmem:[%s917 + $0x10] sm:$0xff]
    %921 = vmatprep.subr.mxu0 0.0
    %922 = vmatpush1.msra.mxu0 %v918
    %923 = vmatprep.subr.mxu0 0.0
    %924 = vmatpush1.msra.mxu0 %v919
    %925 = vmatprep.subr.mxu0 0.0
    %926 = vmatpush1.msra.mxu0 %v920
    %927 = vmatprep.subr.mxu0 0.0
    %928 = vmatpush1.msra.mxu0 0.0
    %929 = vmatprep.subr.mxu0 0.0
    %930 = vmatpush1.msra.mxu0 0.0
    %931 = vmatprep.subr.mxu0 0.0
    %932 = vmatpush1.msra.mxu0 0.0
    %933 = vmatprep.subr.mxu0 0.0
    %934 = vmatpush1.msra.mxu0 0.0
    %935 = vmatprep.subr.mxu0 0.0
    %936 = vmatpush1.msra.mxu0 0.0
    %937 = vmatprep.subr.mxu0 0.0
    %938 = vmatpush1.msra.mxu0 0.0
    %939 = vmatprep.subr.mxu0 0.0
    %940 = vmatpush1.msra.mxu0 0.0
    %941 = vmatprep.subr.mxu0 0.0
    %942 = vmatpush1.msra.mxu0 0.0
    %943 = vmatprep.subr.mxu0 0.0
    %944 = vmatpush1.msra.mxu0 0.0
    %945 = vmatprep.subr.mxu0 0.0
    %946 = vmatpush1.msra.mxu0 0.0
    %947 = vmatprep.subr.mxu0 0.0
    %948 = vmatpush1.msra.mxu0 0.0
    %949 = vmatprep.subr.mxu0 0.0
    %950 = vmatpush1.msra.mxu0 0.0
    %951 = vmatprep.subr.mxu0 0.0
    %952 = vmatpush1.msra.mxu0 0.0
    %953 = vmatprep.subr.mxu0 0.0
    %954 = vmatpush1.msra.mxu0 0.0
    %955 = vmatprep.subr.mxu0 0.0
    %956 = vmatpush1.msra.mxu0 0.0
    %957 = vmatprep.subr.mxu0 0.0
    %958 = vmatpush1.msra.mxu0 0.0
    %959 = vmatprep.subr.mxu0 0.0
    %960 = vmatpush1.msra.mxu0 0.0
    %961 = vmatprep.subr.mxu0 0.0
    %962 = vmatpush1.msra.mxu0 0.0
    %963 = vmatprep.subr.mxu0 0.0
    %964 = vmatpush1.msra.mxu0 0.0
    %965 = vmatprep.subr.mxu0 0.0
    %966 = vmatpush1.msra.mxu0 0.0
    %967 = vmatprep.subr.mxu0 0.0
    %968 = vmatpush1.msra.mxu0 0.0
    %969 = vmatprep.subr.mxu0 0.0
    %970 = vmatpush1.msra.mxu0 0.0
    %971 = vmatprep.subr.mxu0 0.0
    %972 = vmatpush1.msra.mxu0 0.0
    %973 = vmatprep.subr.mxu0 0.0
    %974 = vmatpush1.msra.mxu0 0.0
    %975 = vmatprep.subr.mxu0 0.0
    %976 = vmatpush1.msra.mxu0 0.0
    %977 = vmatprep.subr.mxu0 0.0
    %978 = vmatpush1.msra.mxu0 0.0
    %979 = vmatprep.subr.mxu0 0.0
    %980 = vmatpush1.msra.mxu0 0.0
    %981 = vmatprep.subr.mxu0 0.0
    %982 = vmatpush1.msra.mxu0 0.0
    %983 = vmatprep.subr.mxu0 0.0
    %984 = vmatpush1.msra.mxu0 0.0
    %985 = vmatprep.mubr.f32.mxu0 0.0
    %986 = vmatmul.mubr.f32.gmra.mrb[0].mxu0 %v126
    %v987 = vpop.f32.mrb[0].mxu0
    %v988 = vadd.f32 0.0, %v987
    %v989 = vpop.f32.mrb[0].mxu0
    %990 = vmatprep.mubr.f32.mxu0 0.0
    %991 = vmatmul.mubr.f32.gmra.mrb[0].mxu0 %v129
    %v992 = vpop.f32.mrb[0].mxu0
    %v993 = vadd.f32 0.0, %v992
    %v994 = vpop.f32.mrb[0].mxu0
    %995 = vmatprep.mubr.f32.mxu0 0.0
    %996 = vmatmul.mubr.f32.gmra.mrb[0].mxu0 %v132
    %v997 = vpop.f32.mrb[0].mxu0
    %v998 = vadd.f32 0.0, %v997
    %v999 = vpop.f32.mrb[0].mxu0
    %1000 = vmatprep.mubr.f32.mxu0 0.0
    %1001 = vmatmul.mubr.f32.gmra.mrb[0].mxu0 %v135
    %v1002 = vpop.f32.mrb[0].mxu0
    %v1003 = vadd.f32 0.0, %v1002
    %v1004 = vpop.f32.mrb[0].mxu0
    %1005 = vmatprep.mubr.f32.mxu0 0.0
    %1006 = vmatmul.mubr.f32.gmra.mrb[0].mxu0 %v138
    %v1007 = vpop.f32.mrb[0].mxu0
    %v1008 = vadd.f32 0.0, %v1007
    %v1009 = vpop.f32.mrb[0].mxu0
    %1010 = vdwg.mxu0
    %vm1011 = vcmp.eq.f32.partialorder %v1008, 0.0
    %v1012 = vsel %vm1011, 1.0, %v1008
    %v1013 = vrcp.pop %v1012
    %v1014 = vmul.f32 1.0, %v1013
    %v1015 = vlaneseq
    %v1016 = vshrl.u32 %v1015, 7
    %v1017 = vsub.s32 0, %v1016
    %v1018 = vrot.slane %v1014, %v1017
    %v1019 = vmul.f32 %v988, %v1018
    %v1020 = vmul.f32 %v993, %v1018
    %v1021 = vmul.f32 %v998, %v1018
    %v1022 = vmul.f32 %v1003, %v1018
    %v1023 = vmax.f32 %v1019, 0.0
    %v1024 = vmax.f32 %v1020, 0.0
    %v1025 = vmax.f32 %v1021, 0.0
    %v1026 = vmax.f32 %v1022, 0.0
    %1027 = vmatprep.subr.mxu0 0.0
    %1028 = vmatpush1.msra.mxu0 %v1023
    %1029 = vmatprep.subr.mxu0 0.0
    %1030 = vmatpush1.msra.mxu0 %v1024
    %1031 = vmatprep.subr.mxu0 0.0
    %1032 = vmatpush1.msra.mxu0 %v1025
    %1033 = vmatprep.subr.mxu0 0.0
    %1034 = vmatpush1.msra.mxu0 %v1026
    %1035 = vmatprep.subr.mxu0 0.0
    %1036 = vmatpush1.msra.mxu0 0.0
    %1037 = vmatprep.subr.mxu0 0.0
    %1038 = vmatpush1.msra.mxu0 0.0
    %1039 = vmatprep.subr.mxu0 0.0
    %1040 = vmatpush1.msra.mxu0 0.0
    %1041 = vmatprep.subr.mxu0 0.0
    %1042 = vmatpush1.msra.mxu0 0.0
    %1043 = vmatprep.subr.mxu0 0.0
    %1044 = vmatpush1.msra.mxu0 0.0
    %1045 = vmatprep.subr.mxu0 0.0
    %1046 = vmatpush1.msra.mxu0 0.0
    %1047 = vmatprep.subr.mxu0 0.0
    %1048 = vmatpush1.msra.mxu0 0.0
    %1049 = vmatprep.subr.mxu0 0.0
    %1050 = vmatpush1.msra.mxu0 0.0
    %1051 = vmatprep.subr.mxu0 0.0
    %1052 = vmatpush1.msra.mxu0 0.0
    %1053 = vmatprep.subr.mxu0 0.0
    %1054 = vmatpush1.msra.mxu0 0.0
    %1055 = vmatprep.subr.mxu0 0.0
    %1056 = vmatpush1.msra.mxu0 0.0
    %1057 = vmatprep.subr.mxu0 0.0
    %1058 = vmatpush1.msra.mxu0 0.0
    %1059 = vmatprep.subr.mxu0 0.0
    %1060 = vmatpush1.msra.mxu0 0.0
    %1061 = vmatprep.subr.mxu0 0.0
    %1062 = vmatpush1.msra.mxu0 0.0
    %1063 = vmatprep.subr.mxu0 0.0
    %1064 = vmatpush1.msra.mxu0 0.0
    %1065 = vmatprep.subr.mxu0 0.0
    %1066 = vmatpush1.msra.mxu0 0.0
    %1067 = vmatprep.subr.mxu0 0.0
    %1068 = vmatpush1.msra.mxu0 0.0
    %1069 = vmatprep.subr.mxu0 0.0
    %1070 = vmatpush1.msra.mxu0 0.0
    %1071 = vmatprep.subr.mxu0 0.0
    %1072 = vmatpush1.msra.mxu0 0.0
    %1073 = vmatprep.subr.mxu0 0.0
    %1074 = vmatpush1.msra.mxu0 0.0
    %1075 = vmatprep.subr.mxu0 0.0
    %1076 = vmatpush1.msra.mxu0 0.0
    %1077 = vmatprep.subr.mxu0 0.0
    %1078 = vmatpush1.msra.mxu0 0.0
    %1079 = vmatprep.subr.mxu0 0.0
    %1080 = vmatpush1.msra.mxu0 0.0
    %1081 = vmatprep.subr.mxu0 0.0
    %1082 = vmatpush1.msra.mxu0 0.0
    %1083 = vmatprep.subr.mxu0 0.0
    %1084 = vmatpush1.msra.mxu0 0.0
    %1085 = vmatprep.subr.mxu0 0.0
    %1086 = vmatpush1.msra.mxu0 0.0
    %1087 = vmatprep.subr.mxu0 0.0
    %1088 = vmatpush1.msra.mxu0 0.0
    %1089 = vmatprep.subr.mxu0 0.0
    %1090 = vmatpush1.msra.mxu0 0.0
    %1091 = vmatprep.mubr.f32.mxu0 0.0
    %1092 = vmatmul.mubr.f32.gmra.mrb[0].mxu0 %v248
    %v1093 = vpop.f32.mrb[0].mxu0
    %v1094 = vadd.f32 %v64, %v1093
    %v1095 = vpop.f32.mrb[0].mxu0
    %1096 = vmatprep.mubr.f32.mxu0 0.0
    %1097 = vmatmul.mubr.f32.gmra.mrb[0].mxu0 %v251
    %v1098 = vpop.f32.mrb[0].mxu0
    %v1099 = vadd.f32 %v69, %v1098
    %v1100 = vpop.f32.mrb[0].mxu0
    %1101 = vmatprep.mubr.f32.mxu0 0.0
    %1102 = vmatmul.mubr.f32.gmra.mrb[0].mxu0 %v254
    %v1103 = vpop.f32.mrb[0].mxu0
    %v1104 = vadd.f32 %v74, %v1103
    %v1105 = vpop.f32.mrb[0].mxu0
    %1106 = vmatprep.mubr.f32.mxu0 0.0
    %1107 = vmatmul.mubr.f32.gmra.mrb[0].mxu0 %v257
    %v1108 = vpop.f32.mrb[0].mxu0
    %v1109 = vadd.f32 %v79, %v1108
    %v1110 = vpop.f32.mrb[0].mxu0
    %1111 = vmatprep.mubr.f32.mxu0 0.0
    %1112 = vmatmul.mubr.f32.gmra.mrb[0].mxu0 %v260
    %v1113 = vpop.f32.mrb[0].mxu0
    %v1114 = vadd.f32 %v84, %v1113
    %v1115 = vpop.f32.mrb[0].mxu0
    %1116 = vmatprep.mubr.f32.mxu0 0.0
    %1117 = vmatmul.mubr.f32.gmra.mrb[0].mxu0 %v263
    %v1118 = vpop.f32.mrb[0].mxu0
    %v1119 = vadd.f32 %v89, %v1118
    %v1120 = vpop.f32.mrb[0].mxu0
    %1121 = vmatprep.mubr.f32.mxu0 0.0
    %1122 = vmatmul.mubr.f32.gmra.mrb[0].mxu0 %v266
    %v1123 = vpop.f32.mrb[0].mxu0
    %v1124 = vadd.f32 %v94, %v1123
    %v1125 = vpop.f32.mrb[0].mxu0
    %1126 = vmatprep.mubr.f32.mxu0 0.0
    %1127 = vmatmul.mubr.f32.gmra.mrb[0].mxu0 %v269
    %v1128 = vpop.f32.mrb[0].mxu0
    %v1129 = vadd.f32 %v99, %v1128
    %v1130 = vpop.f32.mrb[0].mxu0
    %1131 = vmatprep.mubr.f32.mxu0 0.0
    %1132 = vmatmul.mubr.f32.gmra.mrb[0].mxu0 %v272
    %v1133 = vpop.f32.mrb[0].mxu0
    %v1134 = vadd.f32 %v104, %v1133
    %v1135 = vpop.f32.mrb[0].mxu0
    %1136 = vmatprep.mubr.f32.mxu0 0.0
    %1137 = vmatmul.mubr.f32.gmra.mrb[0].mxu0 %v275
    %v1138 = vpop.f32.mrb[0].mxu0
    %v1139 = vadd.f32 %v109, %v1138
    %v1140 = vpop.f32.mrb[0].mxu0
    %1141 = vmatprep.mubr.f32.mxu0 0.0
    %1142 = vmatmul.mubr.f32.gmra.mrb[0].mxu0 %v278
    %v1143 = vpop.f32.mrb[0].mxu0
    %v1144 = vadd.f32 %v114, %v1143
    %v1145 = vpop.f32.mrb[0].mxu0
    %1146 = vmatprep.mubr.f32.mxu0 0.0
    %1147 = vmatmul.mubr.f32.gmra.mrb[0].mxu0 %v281
    %v1148 = vpop.f32.mrb[0].mxu0
    %v1149 = vadd.f32 %v119, %v1148
    %v1150 = vpop.f32.mrb[0].mxu0
    %1151 = vdwg.mxu0
    %s1152 = scalar_lea.vmem [#allocation2], 288
    %1153 = vst.msk [vmem:[%s1152] sm:$0xff] %vm408, %v1094
    %1154 = vst.msk [vmem:[%s1152 + $0x8] sm:$0xff] %vm408, %v1099
    %1155 = vst.msk [vmem:[%s1152 + $0x10] sm:$0xff] %vm408, %v1104
    %1156 = vst.msk [vmem:[%s1152 + $0x18] sm:$0xff] %vm408, %v1109
    %1157 = vst.msk [vmem:[%s1152 + $0x20] sm:$0xff] %vm408, %v1114
    %1158 = vst.msk [vmem:[%s1152 + $0x28] sm:$0xff] %vm408, %v1119
    %1159 = vst.msk [vmem:[%s1152 + $0x30] sm:$0xff] %vm408, %v1124
    %1160 = vst.msk [vmem:[%s1152 + $0x38] sm:$0xff] %vm408, %v1129
    %1161 = vst.msk [vmem:[%s1152 + $0x40] sm:$0xff] %vm408, %v1134
    %1162 = vst.msk [vmem:[%s1152 + $0x48] sm:$0xff] %vm408, %v1139
    %1163 = vst.msk [vmem:[%s1152 + $0x50] sm:$0xff] %vm408, %v1144
    %1164 = vst.msk [vmem:[%s1152 + $0x58] sm:$0xff] %vm408, %v1149
    %s1165 = scalar_lea.vmem %s0, 96
    %v1166 = vld [vmem:[%s1165] sm:$0xff]
    %v1167 = vld [vmem:[%s1165 + $0x8] sm:$0xff]
    %v1168 = vld [vmem:[%s1165 + $0x10] sm:$0xff]
    %1169 = vmatprep.subr.mxu0 0.0
    %1170 = vmatpush1.msra.mxu0 %v1166
    %1171 = vmatprep.subr.mxu0 0.0
    %1172 = vmatpush1.msra.mxu0 %v1167
    %1173 = vmatprep.subr.mxu0 0.0
    %1174 = vmatpush1.msra.mxu0 %v1168
    %1175 = vmatprep.subr.mxu0 0.0
    %1176 = vmatpush1.msra.mxu0 0.0
    %1177 = vmatprep.subr.mxu0 0.0
    %1178 = vmatpush1.msra.mxu0 0.0
    %1179 = vmatprep.subr.mxu0 0.0
    %1180 = vmatpush1.msra.mxu0 0.0
    %1181 = vmatprep.subr.mxu0 0.0
    %1182 = vmatpush1.msra.mxu0 0.0
    %1183 = vmatprep.subr.mxu0 0.0
    %1184 = vmatpush1.msra.mxu0 0.0
    %1185 = vmatprep.subr.mxu0 0.0
    %1186 = vmatpush1.msra.mxu0 0.0
    %1187 = vmatprep.subr.mxu0 0.0
    %1188 = vmatpush1.msra.mxu0 0.0
    %1189 = vmatprep.subr.mxu0 0.0
    %1190 = vmatpush1.msra.mxu0 0.0
    %1191 = vmatprep.subr.mxu0 0.0
    %1192 = vmatpush1.msra.mxu0 0.0
    %1193 = vmatprep.subr.mxu0 0.0
    %1194 = vmatpush1.msra.mxu0 0.0
    %1195 = vmatprep.subr.mxu0 0.0
    %1196 = vmatpush1.msra.mxu0 0.0
    %1197 = vmatprep.subr.mxu0 0.0
    %1198 = vmatpush1.msra.mxu0 0.0
    %1199 = vmatprep.subr.mxu0 0.0
    %1200 = vmatpush1.msra.mxu0 0.0
    %1201 = vmatprep.subr.mxu0 0.0
    %1202 = vmatpush1.msra.mxu0 0.0
    %1203 = vmatprep.subr.mxu0 0.0
    %1204 = vmatpush1.msra.mxu0 0.0
    %1205 = vmatprep.subr.mxu0 0.0
    %1206 = vmatpush1.msra.mxu0 0.0
    %1207 = vmatprep.subr.mxu0 0.0
    %1208 = vmatpush1.msra.mxu0 0.0
    %1209 = vmatprep.subr.mxu0 0.0
    %1210 = vmatpush1.msra.mxu0 0.0
    %1211 = vmatprep.subr.mxu0 0.0
    %1212 = vmatpush1.msra.mxu0 0.0
    %1213 = vmatprep.subr.mxu0 0.0
    %1214 = vmatpush1.msra.mxu0 0.0
    %1215 = vmatprep.subr.mxu0 0.0
    %1216 = vmatpush1.msra.mxu0 0.0
    %1217 = vmatprep.subr.mxu0 0.0
    %1218 = vmatpush1.msra.mxu0 0.0
    %1219 = vmatprep.subr.mxu0 0.0
    %1220 = vmatpush1.msra.mxu0 0.0
    %1221 = vmatprep.subr.mxu0 0.0
    %1222 = vmatpush1.msra.mxu0 0.0
    %1223 = vmatprep.subr.mxu0 0.0
    %1224 = vmatpush1.msra.mxu0 0.0
    %1225 = vmatprep.subr.mxu0 0.0
    %1226 = vmatpush1.msra.mxu0 0.0
    %1227 = vmatprep.subr.mxu0 0.0
    %1228 = vmatpush1.msra.mxu0 0.0
    %1229 = vmatprep.subr.mxu0 0.0
    %1230 = vmatpush1.msra.mxu0 0.0
    %1231 = vmatprep.subr.mxu0 0.0
    %1232 = vmatpush1.msra.mxu0 0.0
    %1233 = vmatprep.mubr.f32.mxu0 0.0
    %1234 = vmatmul.mubr.f32.gmra.mrb[0].mxu0 %v126
    %v1235 = vpop.f32.mrb[0].mxu0
    %v1236 = vadd.f32 0.0, %v1235
    %v1237 = vpop.f32.mrb[0].mxu0
    %1238 = vmatprep.mubr.f32.mxu0 0.0
    %1239 = vmatmul.mubr.f32.gmra.mrb[0].mxu0 %v129
    %v1240 = vpop.f32.mrb[0].mxu0
    %v1241 = vadd.f32 0.0, %v1240
    %v1242 = vpop.f32.mrb[0].mxu0
    %1243 = vmatprep.mubr.f32.mxu0 0.0
    %1244 = vmatmul.mubr.f32.gmra.mrb[0].mxu0 %v132
    %v1245 = vpop.f32.mrb[0].mxu0
    %v1246 = vadd.f32 0.0, %v1245
    %v1247 = vpop.f32.mrb[0].mxu0
    %1248 = vmatprep.mubr.f32.mxu0 0.0
    %1249 = vmatmul.mubr.f32.gmra.mrb[0].mxu0 %v135
    %v1250 = vpop.f32.mrb[0].mxu0
    %v1251 = vadd.f32 0.0, %v1250
    %v1252 = vpop.f32.mrb[0].mxu0
    %1253 = vmatprep.mubr.f32.mxu0 0.0
    %1254 = vmatmul.mubr.f32.gmra.mrb[0].mxu0 %v138
    %v1255 = vpop.f32.mrb[0].mxu0
    %v1256 = vadd.f32 0.0, %v1255
    %v1257 = vpop.f32.mrb[0].mxu0
    %1258 = vdwg.mxu0
    %vm1259 = vcmp.eq.f32.partialorder %v1256, 0.0
    %v1260 = vsel %vm1259, 1.0, %v1256
    %v1261 = vrcp.pop %v1260
    %v1262 = vmul.f32 1.0, %v1261
    %v1263 = vlaneseq
    %v1264 = vshrl.u32 %v1263, 7
    %v1265 = vsub.s32 0, %v1264
    %v1266 = vrot.slane %v1262, %v1265
    %v1267 = vmul.f32 %v1236, %v1266
    %v1268 = vmul.f32 %v1241, %v1266
    %v1269 = vmul.f32 %v1246, %v1266
    %v1270 = vmul.f32 %v1251, %v1266
    %v1271 = vmax.f32 %v1267, 0.0
    %v1272 = vmax.f32 %v1268, 0.0
    %v1273 = vmax.f32 %v1269, 0.0
    %v1274 = vmax.f32 %v1270, 0.0
    %1275 = vmatprep.subr.mxu0 0.0
    %1276 = vmatpush1.msra.mxu0 %v1271
    %1277 = vmatprep.subr.mxu0 0.0
    %1278 = vmatpush1.msra.mxu0 %v1272
    %1279 = vmatprep.subr.mxu0 0.0
    %1280 = vmatpush1.msra.mxu0 %v1273
    %1281 = vmatprep.subr.mxu0 0.0
    %1282 = vmatpush1.msra.mxu0 %v1274
    %1283 = vmatprep.subr.mxu0 0.0
    %1284 = vmatpush1.msra.mxu0 0.0
    %1285 = vmatprep.subr.mxu0 0.0
    %1286 = vmatpush1.msra.mxu0 0.0
    %1287 = vmatprep.subr.mxu0 0.0
    %1288 = vmatpush1.msra.mxu0 0.0
    %1289 = vmatprep.subr.mxu0 0.0
    %1290 = vmatpush1.msra.mxu0 0.0
    %1291 = vmatprep.subr.mxu0 0.0
    %1292 = vmatpush1.msra.mxu0 0.0
    %1293 = vmatprep.subr.mxu0 0.0
    %1294 = vmatpush1.msra.mxu0 0.0
    %1295 = vmatprep.subr.mxu0 0.0
    %1296 = vmatpush1.msra.mxu0 0.0
    %1297 = vmatprep.subr.mxu0 0.0
    %1298 = vmatpush1.msra.mxu0 0.0
    %1299 = vmatprep.subr.mxu0 0.0
    %1300 = vmatpush1.msra.mxu0 0.0
    %1301 = vmatprep.subr.mxu0 0.0
    %1302 = vmatpush1.msra.mxu0 0.0
    %1303 = vmatprep.subr.mxu0 0.0
    %1304 = vmatpush1.msra.mxu0 0.0
    %1305 = vmatprep.subr.mxu0 0.0
    %1306 = vmatpush1.msra.mxu0 0.0
    %1307 = vmatprep.subr.mxu0 0.0
    %1308 = vmatpush1.msra.mxu0 0.0
    %1309 = vmatprep.subr.mxu0 0.0
    %1310 = vmatpush1.msra.mxu0 0.0
    %1311 = vmatprep.subr.mxu0 0.0
    %1312 = vmatpush1.msra.mxu0 0.0
    %1313 = vmatprep.subr.mxu0 0.0
    %1314 = vmatpush1.msra.mxu0 0.0
    %1315 = vmatprep.subr.mxu0 0.0
    %1316 = vmatpush1.msra.mxu0 0.0
    %1317 = vmatprep.subr.mxu0 0.0
    %1318 = vmatpush1.msra.mxu0 0.0
    %1319 = vmatprep.subr.mxu0 0.0
    %1320 = vmatpush1.msra.mxu0 0.0
    %1321 = vmatprep.subr.mxu0 0.0
    %1322 = vmatpush1.msra.mxu0 0.0
    %1323 = vmatprep.subr.mxu0 0.0
    %1324 = vmatpush1.msra.mxu0 0.0
    %1325 = vmatprep.subr.mxu0 0.0
    %1326 = vmatpush1.msra.mxu0 0.0
    %1327 = vmatprep.subr.mxu0 0.0
    %1328 = vmatpush1.msra.mxu0 0.0
    %1329 = vmatprep.subr.mxu0 0.0
    %1330 = vmatpush1.msra.mxu0 0.0
    %1331 = vmatprep.subr.mxu0 0.0
    %1332 = vmatpush1.msra.mxu0 0.0
    %1333 = vmatprep.subr.mxu0 0.0
    %1334 = vmatpush1.msra.mxu0 0.0
    %1335 = vmatprep.subr.mxu0 0.0
    %1336 = vmatpush1.msra.mxu0 0.0
    %1337 = vmatprep.subr.mxu0 0.0
    %1338 = vmatpush1.msra.mxu0 0.0
    %1339 = vmatprep.mubr.f32.mxu0 0.0
    %1340 = vmatmul.mubr.f32.gmra.mrb[0].mxu0 %v248
    %v1341 = vpop.f32.mrb[0].mxu0
    %v1342 = vadd.f32 %v64, %v1341
    %v1343 = vpop.f32.mrb[0].mxu0
    %1344 = vmatprep.mubr.f32.mxu0 0.0
    %1345 = vmatmul.mubr.f32.gmra.mrb[0].mxu0 %v251
    %v1346 = vpop.f32.mrb[0].mxu0
    %v1347 = vadd.f32 %v69, %v1346
    %v1348 = vpop.f32.mrb[0].mxu0
    %1349 = vmatprep.mubr.f32.mxu0 0.0
    %1350 = vmatmul.mubr.f32.gmra.mrb[0].mxu0 %v254
    %v1351 = vpop.f32.mrb[0].mxu0
    %v1352 = vadd.f32 %v74, %v1351
    %v1353 = vpop.f32.mrb[0].mxu0
    %1354 = vmatprep.mubr.f32.mxu0 0.0
    %1355 = vmatmul.mubr.f32.gmra.mrb[0].mxu0 %v257
    %v1356 = vpop.f32.mrb[0].mxu0
    %v1357 = vadd.f32 %v79, %v1356
    %v1358 = vpop.f32.mrb[0].mxu0
    %1359 = vmatprep.mubr.f32.mxu0 0.0
    %1360 = vmatmul.mubr.f32.gmra.mrb[0].mxu0 %v260
    %v1361 = vpop.f32.mrb[0].mxu0
    %v1362 = vadd.f32 %v84, %v1361
    %v1363 = vpop.f32.mrb[0].mxu0
    %1364 = vmatprep.mubr.f32.mxu0 0.0
    %1365 = vmatmul.mubr.f32.gmra.mrb[0].mxu0 %v263
    %v1366 = vpop.f32.mrb[0].mxu0
    %v1367 = vadd.f32 %v89, %v1366
    %v1368 = vpop.f32.mrb[0].mxu0
    %1369 = vmatprep.mubr.f32.mxu0 0.0
    %1370 = vmatmul.mubr.f32.gmra.mrb[0].mxu0 %v266
    %v1371 = vpop.f32.mrb[0].mxu0
    %v1372 = vadd.f32 %v94, %v1371
    %v1373 = vpop.f32.mrb[0].mxu0
    %1374 = vmatprep.mubr.f32.mxu0 0.0
    %1375 = vmatmul.mubr.f32.gmra.mrb[0].mxu0 %v269
    %v1376 = vpop.f32.mrb[0].mxu0
    %v1377 = vadd.f32 %v99, %v1376
    %v1378 = vpop.f32.mrb[0].mxu0
    %1379 = vmatprep.mubr.f32.mxu0 0.0
    %1380 = vmatmul.mubr.f32.gmra.mrb[0].mxu0 %v272
    %v1381 = vpop.f32.mrb[0].mxu0
    %v1382 = vadd.f32 %v104, %v1381
    %v1383 = vpop.f32.mrb[0].mxu0
    %1384 = vmatprep.mubr.f32.mxu0 0.0
    %1385 = vmatmul.mubr.f32.gmra.mrb[0].mxu0 %v275
    %v1386 = vpop.f32.mrb[0].mxu0
    %v1387 = vadd.f32 %v109, %v1386
    %v1388 = vpop.f32.mrb[0].mxu0
    %1389 = vmatprep.mubr.f32.mxu0 0.0
    %1390 = vmatmul.mubr.f32.gmra.mrb[0].mxu0 %v278
    %v1391 = vpop.f32.mrb[0].mxu0
    %v1392 = vadd.f32 %v114, %v1391
    %v1393 = vpop.f32.mrb[0].mxu0
    %1394 = vmatprep.mubr.f32.mxu0 0.0
    %1395 = vmatmul.mubr.f32.gmra.mrb[0].mxu0 %v281
    %v1396 = vpop.f32.mrb[0].mxu0
    %v1397 = vadd.f32 %v119, %v1396
    %v1398 = vpop.f32.mrb[0].mxu0
    %1399 = vdwg.mxu0
    %s1400 = scalar_lea.vmem [#allocation2], 384
    %1401 = vst.msk [vmem:[%s1400] sm:$0xff] %vm408, %v1342
    %1402 = vst.msk [vmem:[%s1400 + $0x8] sm:$0xff] %vm408, %v1347
    %1403 = vst.msk [vmem:[%s1400 + $0x10] sm:$0xff] %vm408, %v1352
    %1404 = vst.msk [vmem:[%s1400 + $0x18] sm:$0xff] %vm408, %v1357
    %1405 = vst.msk [vmem:[%s1400 + $0x20] sm:$0xff] %vm408, %v1362
    %1406 = vst.msk [vmem:[%s1400 + $0x28] sm:$0xff] %vm408, %v1367
    %1407 = vst.msk [vmem:[%s1400 + $0x30] sm:$0xff] %vm408, %v1372
    %1408 = vst.msk [vmem:[%s1400 + $0x38] sm:$0xff] %vm408, %v1377
    %1409 = vst.msk [vmem:[%s1400 + $0x40] sm:$0xff] %vm408, %v1382
    %1410 = vst.msk [vmem:[%s1400 + $0x48] sm:$0xff] %vm408, %v1387
    %1411 = vst.msk [vmem:[%s1400 + $0x50] sm:$0xff] %vm408, %v1392
    %1412 = vst.msk [vmem:[%s1400 + $0x58] sm:$0xff] %vm408, %v1397
    %s1413 = scalar_lea.vmem %s0, 120
    %v1414 = vld [vmem:[%s1413] sm:$0xff]
    %v1415 = vld [vmem:[%s1413 + $0x8] sm:$0xff]
    %v1416 = vld [vmem:[%s1413 + $0x10] sm:$0xff]
    %1417 = vmatprep.subr.mxu0 0.0
    %1418 = vmatpush1.msra.mxu0 %v1414
    %1419 = vmatprep.subr.mxu0 0.0
    %1420 = vmatpush1.msra.mxu0 %v1415
    %1421 = vmatprep.subr.mxu0 0.0
    %1422 = vmatpush1.msra.mxu0 %v1416
    %1423 = vmatprep.subr.mxu0 0.0
    %1424 = vmatpush1.msra.mxu0 0.0
    %1425 = vmatprep.subr.mxu0 0.0
    %1426 = vmatpush1.msra.mxu0 0.0
    %1427 = vmatprep.subr.mxu0 0.0
    %1428 = vmatpush1.msra.mxu0 0.0
    %1429 = vmatprep.subr.mxu0 0.0
    %1430 = vmatpush1.msra.mxu0 0.0
    %1431 = vmatprep.subr.mxu0 0.0
    %1432 = vmatpush1.msra.mxu0 0.0
    %1433 = vmatprep.subr.mxu0 0.0
    %1434 = vmatpush1.msra.mxu0 0.0
    %1435 = vmatprep.subr.mxu0 0.0
    %1436 = vmatpush1.msra.mxu0 0.0
    %1437 = vmatprep.subr.mxu0 0.0
    %1438 = vmatpush1.msra.mxu0 0.0
    %1439 = vmatprep.subr.mxu0 0.0
    %1440 = vmatpush1.msra.mxu0 0.0
    %1441 = vmatprep.subr.mxu0 0.0
    %1442 = vmatpush1.msra.mxu0 0.0
    %1443 = vmatprep.subr.mxu0 0.0
    %1444 = vmatpush1.msra.mxu0 0.0
    %1445 = vmatprep.subr.mxu0 0.0
    %1446 = vmatpush1.msra.mxu0 0.0
    %1447 = vmatprep.subr.mxu0 0.0
    %1448 = vmatpush1.msra.mxu0 0.0
    %1449 = vmatprep.subr.mxu0 0.0
    %1450 = vmatpush1.msra.mxu0 0.0
    %1451 = vmatprep.subr.mxu0 0.0
    %1452 = vmatpush1.msra.mxu0 0.0
    %1453 = vmatprep.subr.mxu0 0.0
    %1454 = vmatpush1.msra.mxu0 0.0
    %1455 = vmatprep.subr.mxu0 0.0
    %1456 = vmatpush1.msra.mxu0 0.0
    %1457 = vmatprep.subr.mxu0 0.0
    %1458 = vmatpush1.msra.mxu0 0.0
    %1459 = vmatprep.subr.mxu0 0.0
    %1460 = vmatpush1.msra.mxu0 0.0
    %1461 = vmatprep.subr.mxu0 0.0
    %1462 = vmatpush1.msra.mxu0 0.0
    %1463 = vmatprep.subr.mxu0 0.0
    %1464 = vmatpush1.msra.mxu0 0.0
    %1465 = vmatprep.subr.mxu0 0.0
    %1466 = vmatpush1.msra.mxu0 0.0
    %1467 = vmatprep.subr.mxu0 0.0
    %1468 = vmatpush1.msra.mxu0 0.0
    %1469 = vmatprep.subr.mxu0 0.0
    %1470 = vmatpush1.msra.mxu0 0.0
    %1471 = vmatprep.subr.mxu0 0.0
    %1472 = vmatpush1.msra.mxu0 0.0
    %1473 = vmatprep.subr.mxu0 0.0
    %1474 = vmatpush1.msra.mxu0 0.0
    %1475 = vmatprep.subr.mxu0 0.0
    %1476 = vmatpush1.msra.mxu0 0.0
    %1477 = vmatprep.subr.mxu0 0.0
    %1478 = vmatpush1.msra.mxu0 0.0
    %1479 = vmatprep.subr.mxu0 0.0
    %1480 = vmatpush1.msra.mxu0 0.0
    %1481 = vmatprep.mubr.f32.mxu0 0.0
    %1482 = vmatmul.mubr.f32.gmra.mrb[0].mxu0 %v126
    %v1483 = vpop.f32.mrb[0].mxu0
    %v1484 = vadd.f32 0.0, %v1483
    %v1485 = vpop.f32.mrb[0].mxu0
    %1486 = vmatprep.mubr.f32.mxu0 0.0
    %1487 = vmatmul.mubr.f32.gmra.mrb[0].mxu0 %v129
    %v1488 = vpop.f32.mrb[0].mxu0
    %v1489 = vadd.f32 0.0, %v1488
    %v1490 = vpop.f32.mrb[0].mxu0
    %1491 = vmatprep.mubr.f32.mxu0 0.0
    %1492 = vmatmul.mubr.f32.gmra.mrb[0].mxu0 %v132
    %v1493 = vpop.f32.mrb[0].mxu0
    %v1494 = vadd.f32 0.0, %v1493
    %v1495 = vpop.f32.mrb[0].mxu0
    %1496 = vmatprep.mubr.f32.mxu0 0.0
    %1497 = vmatmul.mubr.f32.gmra.mrb[0].mxu0 %v135
    %v1498 = vpop.f32.mrb[0].mxu0
    %v1499 = vadd.f32 0.0, %v1498
    %v1500 = vpop.f32.mrb[0].mxu0
    %1501 = vmatprep.mubr.f32.mxu0 0.0
    %1502 = vmatmul.mubr.f32.gmra.mrb[0].mxu0 %v138
    %v1503 = vpop.f32.mrb[0].mxu0
    %v1504 = vadd.f32 0.0, %v1503
    %v1505 = vpop.f32.mrb[0].mxu0
    %1506 = vdwg.mxu0
    %vm1507 = vcmp.eq.f32.partialorder %v1504, 0.0
    %v1508 = vsel %vm1507, 1.0, %v1504
    %v1509 = vrcp.pop %v1508
    %v1510 = vmul.f32 1.0, %v1509
    %v1511 = vlaneseq
    %v1512 = vshrl.u32 %v1511, 7
    %v1513 = vsub.s32 0, %v1512
    %v1514 = vrot.slane %v1510, %v1513
    %v1515 = vmul.f32 %v1484, %v1514
    %v1516 = vmul.f32 %v1489, %v1514
    %v1517 = vmul.f32 %v1494, %v1514
    %v1518 = vmul.f32 %v1499, %v1514
    %v1519 = vmax.f32 %v1515, 0.0
    %v1520 = vmax.f32 %v1516, 0.0
    %v1521 = vmax.f32 %v1517, 0.0
    %v1522 = vmax.f32 %v1518, 0.0
    %1523 = vmatprep.subr.mxu0 0.0
    %1524 = vmatpush1.msra.mxu0 %v1519
    %1525 = vmatprep.subr.mxu0 0.0
    %1526 = vmatpush1.msra.mxu0 %v1520
    %1527 = vmatprep.subr.mxu0 0.0
    %1528 = vmatpush1.msra.mxu0 %v1521
    %1529 = vmatprep.subr.mxu0 0.0
    %1530 = vmatpush1.msra.mxu0 %v1522
    %1531 = vmatprep.subr.mxu0 0.0
    %1532 = vmatpush1.msra.mxu0 0.0
    %1533 = vmatprep.subr.mxu0 0.0
    %1534 = vmatpush1.msra.mxu0 0.0
    %1535 = vmatprep.subr.mxu0 0.0
    %1536 = vmatpush1.msra.mxu0 0.0
    %1537 = vmatprep.subr.mxu0 0.0
    %1538 = vmatpush1.msra.mxu0 0.0
    %1539 = vmatprep.subr.mxu0 0.0
    %1540 = vmatpush1.msra.mxu0 0.0
    %1541 = vmatprep.subr.mxu0 0.0
    %1542 = vmatpush1.msra.mxu0 0.0
    %1543 = vmatprep.subr.mxu0 0.0
    %1544 = vmatpush1.msra.mxu0 0.0
    %1545 = vmatprep.subr.mxu0 0.0
    %1546 = vmatpush1.msra.mxu0 0.0
    %1547 = vmatprep.subr.mxu0 0.0
    %1548 = vmatpush1.msra.mxu0 0.0
    %1549 = vmatprep.subr.mxu0 0.0
    %1550 = vmatpush1.msra.mxu0 0.0
    %1551 = vmatprep.subr.mxu0 0.0
    %1552 = vmatpush1.msra.mxu0 0.0
    %1553 = vmatprep.subr.mxu0 0.0
    %1554 = vmatpush1.msra.mxu0 0.0
    %1555 = vmatprep.subr.mxu0 0.0
    %1556 = vmatpush1.msra.mxu0 0.0
    %1557 = vmatprep.subr.mxu0 0.0
    %1558 = vmatpush1.msra.mxu0 0.0
    %1559 = vmatprep.subr.mxu0 0.0
    %1560 = vmatpush1.msra.mxu0 0.0
    %1561 = vmatprep.subr.mxu0 0.0
    %1562 = vmatpush1.msra.mxu0 0.0
    %1563 = vmatprep.subr.mxu0 0.0
    %1564 = vmatpush1.msra.mxu0 0.0
    %1565 = vmatprep.subr.mxu0 0.0
    %1566 = vmatpush1.msra.mxu0 0.0
    %1567 = vmatprep.subr.mxu0 0.0
    %1568 = vmatpush1.msra.mxu0 0.0
    %1569 = vmatprep.subr.mxu0 0.0
    %1570 = vmatpush1.msra.mxu0 0.0
    %1571 = vmatprep.subr.mxu0 0.0
    %1572 = vmatpush1.msra.mxu0 0.0
    %1573 = vmatprep.subr.mxu0 0.0
    %1574 = vmatpush1.msra.mxu0 0.0
    %1575 = vmatprep.subr.mxu0 0.0
    %1576 = vmatpush1.msra.mxu0 0.0
    %1577 = vmatprep.subr.mxu0 0.0
    %1578 = vmatpush1.msra.mxu0 0.0
    %1579 = vmatprep.subr.mxu0 0.0
    %1580 = vmatpush1.msra.mxu0 0.0
    %1581 = vmatprep.subr.mxu0 0.0
    %1582 = vmatpush1.msra.mxu0 0.0
    %1583 = vmatprep.subr.mxu0 0.0
    %1584 = vmatpush1.msra.mxu0 0.0
    %1585 = vmatprep.subr.mxu0 0.0
    %1586 = vmatpush1.msra.mxu0 0.0
    %1587 = vmatprep.mubr.f32.mxu0 0.0
    %1588 = vmatmul.mubr.f32.gmra.mrb[0].mxu0 %v248
    %v1589 = vpop.f32.mrb[0].mxu0
    %v1590 = vadd.f32 %v64, %v1589
    %v1591 = vpop.f32.mrb[0].mxu0
    %1592 = vmatprep.mubr.f32.mxu0 0.0
    %1593 = vmatmul.mubr.f32.gmra.mrb[0].mxu0 %v251
    %v1594 = vpop.f32.mrb[0].mxu0
    %v1595 = vadd.f32 %v69, %v1594
    %v1596 = vpop.f32.mrb[0].mxu0
    %1597 = vmatprep.mubr.f32.mxu0 0.0
    %1598 = vmatmul.mubr.f32.gmra.mrb[0].mxu0 %v254
    %v1599 = vpop.f32.mrb[0].mxu0
    %v1600 = vadd.f32 %v74, %v1599
    %v1601 = vpop.f32.mrb[0].mxu0
    %1602 = vmatprep.mubr.f32.mxu0 0.0
    %1603 = vmatmul.mubr.f32.gmra.mrb[0].mxu0 %v257
    %v1604 = vpop.f32.mrb[0].mxu0
    %v1605 = vadd.f32 %v79, %v1604
    %v1606 = vpop.f32.mrb[0].mxu0
    %1607 = vmatprep.mubr.f32.mxu0 0.0
    %1608 = vmatmul.mubr.f32.gmra.mrb[0].mxu0 %v260
    %v1609 = vpop.f32.mrb[0].mxu0
    %v1610 = vadd.f32 %v84, %v1609
    %v1611 = vpop.f32.mrb[0].mxu0
    %1612 = vmatprep.mubr.f32.mxu0 0.0
    %1613 = vmatmul.mubr.f32.gmra.mrb[0].mxu0 %v263
    %v1614 = vpop.f32.mrb[0].mxu0
    %v1615 = vadd.f32 %v89, %v1614
    %v1616 = vpop.f32.mrb[0].mxu0
    %1617 = vmatprep.mubr.f32.mxu0 0.0
    %1618 = vmatmul.mubr.f32.gmra.mrb[0].mxu0 %v266
    %v1619 = vpop.f32.mrb[0].mxu0
    %v1620 = vadd.f32 %v94, %v1619
    %v1621 = vpop.f32.mrb[0].mxu0
    %1622 = vmatprep.mubr.f32.mxu0 0.0
    %1623 = vmatmul.mubr.f32.gmra.mrb[0].mxu0 %v269
    %v1624 = vpop.f32.mrb[0].mxu0
    %v1625 = vadd.f32 %v99, %v1624
    %v1626 = vpop.f32.mrb[0].mxu0
    %1627 = vmatprep.mubr.f32.mxu0 0.0
    %1628 = vmatmul.mubr.f32.gmra.mrb[0].mxu0 %v272
    %v1629 = vpop.f32.mrb[0].mxu0
    %v1630 = vadd.f32 %v104, %v1629
    %v1631 = vpop.f32.mrb[0].mxu0
    %1632 = vmatprep.mubr.f32.mxu0 0.0
    %1633 = vmatmul.mubr.f32.gmra.mrb[0].mxu0 %v275
    %v1634 = vpop.f32.mrb[0].mxu0
    %v1635 = vadd.f32 %v109, %v1634
    %v1636 = vpop.f32.mrb[0].mxu0
    %1637 = vmatprep.mubr.f32.mxu0 0.0
    %1638 = vmatmul.mubr.f32.gmra.mrb[0].mxu0 %v278
    %v1639 = vpop.f32.mrb[0].mxu0
    %v1640 = vadd.f32 %v114, %v1639
    %v1641 = vpop.f32.mrb[0].mxu0
    %1642 = vmatprep.mubr.f32.mxu0 0.0
    %1643 = vmatmul.mubr.f32.gmra.mrb[0].mxu0 %v281
    %v1644 = vpop.f32.mrb[0].mxu0
    %v1645 = vadd.f32 %v119, %v1644
    %v1646 = vpop.f32.mrb[0].mxu0
    %1647 = vdwg.mxu0
    %s1648 = scalar_lea.vmem [#allocation2], 480
    %1649 = vst.msk [vmem:[%s1648] sm:$0xff] %vm408, %v1590
    %1650 = vst.msk [vmem:[%s1648 + $0x8] sm:$0xff] %vm408, %v1595
    %1651 = vst.msk [vmem:[%s1648 + $0x10] sm:$0xff] %vm408, %v1600
    %1652 = vst.msk [vmem:[%s1648 + $0x18] sm:$0xff] %vm408, %v1605
    %1653 = vst.msk [vmem:[%s1648 + $0x20] sm:$0xff] %vm408, %v1610
    %1654 = vst.msk [vmem:[%s1648 + $0x28] sm:$0xff] %vm408, %v1615
    %1655 = vst.msk [vmem:[%s1648 + $0x30] sm:$0xff] %vm408, %v1620
    %1656 = vst.msk [vmem:[%s1648 + $0x38] sm:$0xff] %vm408, %v1625
    %1657 = vst.msk [vmem:[%s1648 + $0x40] sm:$0xff] %vm408, %v1630
    %1658 = vst.msk [vmem:[%s1648 + $0x48] sm:$0xff] %vm408, %v1635
    %1659 = vst.msk [vmem:[%s1648 + $0x50] sm:$0xff] %vm408, %v1640
    %1660 = vst.msk [vmem:[%s1648 + $0x58] sm:$0xff] %vm408, %v1645
    %s1661 = scalar_lea.vmem %s0, 144
    %v1662 = vld [vmem:[%s1661] sm:$0xff]
    %v1663 = vld [vmem:[%s1661 + $0x8] sm:$0xff]
    %v1664 = vld [vmem:[%s1661 + $0x10] sm:$0xff]
    %1665 = vmatprep.subr.mxu0 0.0
    %1666 = vmatpush1.msra.mxu0 %v1662
    %1667 = vmatprep.subr.mxu0 0.0
    %1668 = vmatpush1.msra.mxu0 %v1663
    %1669 = vmatprep.subr.mxu0 0.0
    %1670 = vmatpush1.msra.mxu0 %v1664
    %1671 = vmatprep.subr.mxu0 0.0
    %1672 = vmatpush1.msra.mxu0 0.0
    %1673 = vmatprep.subr.mxu0 0.0
    %1674 = vmatpush1.msra.mxu0 0.0
    %1675 = vmatprep.subr.mxu0 0.0
    %1676 = vmatpush1.msra.mxu0 0.0
    %1677 = vmatprep.subr.mxu0 0.0
    %1678 = vmatpush1.msra.mxu0 0.0
    %1679 = vmatprep.subr.mxu0 0.0
    %1680 = vmatpush1.msra.mxu0 0.0
    %1681 = vmatprep.subr.mxu0 0.0
    %1682 = vmatpush1.msra.mxu0 0.0
    %1683 = vmatprep.subr.mxu0 0.0
    %1684 = vmatpush1.msra.mxu0 0.0
    %1685 = vmatprep.subr.mxu0 0.0
    %1686 = vmatpush1.msra.mxu0 0.0
    %1687 = vmatprep.subr.mxu0 0.0
    %1688 = vmatpush1.msra.mxu0 0.0
    %1689 = vmatprep.subr.mxu0 0.0
    %1690 = vmatpush1.msra.mxu0 0.0
    %1691 = vmatprep.subr.mxu0 0.0
    %1692 = vmatpush1.msra.mxu0 0.0
    %1693 = vmatprep.subr.mxu0 0.0
    %1694 = vmatpush1.msra.mxu0 0.0
    %1695 = vmatprep.subr.mxu0 0.0
    %1696 = vmatpush1.msra.mxu0 0.0
    %1697 = vmatprep.subr.mxu0 0.0
    %1698 = vmatpush1.msra.mxu0 0.0
    %1699 = vmatprep.subr.mxu0 0.0
    %1700 = vmatpush1.msra.mxu0 0.0
    %1701 = vmatprep.subr.mxu0 0.0
    %1702 = vmatpush1.msra.mxu0 0.0
    %1703 = vmatprep.subr.mxu0 0.0
    %1704 = vmatpush1.msra.mxu0 0.0
    %1705 = vmatprep.subr.mxu0 0.0
    %1706 = vmatpush1.msra.mxu0 0.0
    %1707 = vmatprep.subr.mxu0 0.0
    %1708 = vmatpush1.msra.mxu0 0.0
    %1709 = vmatprep.subr.mxu0 0.0
    %1710 = vmatpush1.msra.mxu0 0.0
    %1711 = vmatprep.subr.mxu0 0.0
    %1712 = vmatpush1.msra.mxu0 0.0
    %1713 = vmatprep.subr.mxu0 0.0
    %1714 = vmatpush1.msra.mxu0 0.0
    %1715 = vmatprep.subr.mxu0 0.0
    %1716 = vmatpush1.msra.mxu0 0.0
    %1717 = vmatprep.subr.mxu0 0.0
    %1718 = vmatpush1.msra.mxu0 0.0
    %1719 = vmatprep.subr.mxu0 0.0
    %1720 = vmatpush1.msra.mxu0 0.0
    %1721 = vmatprep.subr.mxu0 0.0
    %1722 = vmatpush1.msra.mxu0 0.0
    %1723 = vmatprep.subr.mxu0 0.0
    %1724 = vmatpush1.msra.mxu0 0.0
    %1725 = vmatprep.subr.mxu0 0.0
    %1726 = vmatpush1.msra.mxu0 0.0
    %1727 = vmatprep.subr.mxu0 0.0
    %1728 = vmatpush1.msra.mxu0 0.0
    %1729 = vmatprep.mubr.f32.mxu0 0.0
    %1730 = vmatmul.mubr.f32.gmra.mrb[0].mxu0 %v126
    %v1731 = vpop.f32.mrb[0].mxu0
    %v1732 = vadd.f32 0.0, %v1731
    %v1733 = vpop.f32.mrb[0].mxu0
    %1734 = vmatprep.mubr.f32.mxu0 0.0
    %1735 = vmatmul.mubr.f32.gmra.mrb[0].mxu0 %v129
    %v1736 = vpop.f32.mrb[0].mxu0
    %v1737 = vadd.f32 0.0, %v1736
    %v1738 = vpop.f32.mrb[0].mxu0
    %1739 = vmatprep.mubr.f32.mxu0 0.0
    %1740 = vmatmul.mubr.f32.gmra.mrb[0].mxu0 %v132
    %v1741 = vpop.f32.mrb[0].mxu0
    %v1742 = vadd.f32 0.0, %v1741
    %v1743 = vpop.f32.mrb[0].mxu0
    %1744 = vmatprep.mubr.f32.mxu0 0.0
    %1745 = vmatmul.mubr.f32.gmra.mrb[0].mxu0 %v135
    %v1746 = vpop.f32.mrb[0].mxu0
    %v1747 = vadd.f32 0.0, %v1746
    %v1748 = vpop.f32.mrb[0].mxu0
    %1749 = vmatprep.mubr.f32.mxu0 0.0
    %1750 = vmatmul.mubr.f32.gmra.mrb[0].mxu0 %v138
    %v1751 = vpop.f32.mrb[0].mxu0
    %v1752 = vadd.f32 0.0, %v1751
    %v1753 = vpop.f32.mrb[0].mxu0
    %1754 = vdwg.mxu0
    %vm1755 = vcmp.eq.f32.partialorder %v1752, 0.0
    %v1756 = vsel %vm1755, 1.0, %v1752
    %v1757 = vrcp.pop %v1756
    %v1758 = vmul.f32 1.0, %v1757
    %v1759 = vlaneseq
    %v1760 = vshrl.u32 %v1759, 7
    %v1761 = vsub.s32 0, %v1760
    %v1762 = vrot.slane %v1758, %v1761
    %v1763 = vmul.f32 %v1732, %v1762
    %v1764 = vmul.f32 %v1737, %v1762
    %v1765 = vmul.f32 %v1742, %v1762
    %v1766 = vmul.f32 %v1747, %v1762
    %v1767 = vmax.f32 %v1763, 0.0
    %v1768 = vmax.f32 %v1764, 0.0
    %v1769 = vmax.f32 %v1765, 0.0
    %v1770 = vmax.f32 %v1766, 0.0
    %1771 = vmatprep.subr.mxu0 0.0
    %1772 = vmatpush1.msra.mxu0 %v1767
    %1773 = vmatprep.subr.mxu0 0.0
    %1774 = vmatpush1.msra.mxu0 %v1768
    %1775 = vmatprep.subr.mxu0 0.0
    %1776 = vmatpush1.msra.mxu0 %v1769
    %1777 = vmatprep.subr.mxu0 0.0
    %1778 = vmatpush1.msra.mxu0 %v1770
    %1779 = vmatprep.subr.mxu0 0.0
    %1780 = vmatpush1.msra.mxu0 0.0
    %1781 = vmatprep.subr.mxu0 0.0
    %1782 = vmatpush1.msra.mxu0 0.0
    %1783 = vmatprep.subr.mxu0 0.0
    %1784 = vmatpush1.msra.mxu0 0.0
    %1785 = vmatprep.subr.mxu0 0.0
    %1786 = vmatpush1.msra.mxu0 0.0
    %1787 = vmatprep.subr.mxu0 0.0
    %1788 = vmatpush1.msra.mxu0 0.0
    %1789 = vmatprep.subr.mxu0 0.0
    %1790 = vmatpush1.msra.mxu0 0.0
    %1791 = vmatprep.subr.mxu0 0.0
    %1792 = vmatpush1.msra.mxu0 0.0
    %1793 = vmatprep.subr.mxu0 0.0
    %1794 = vmatpush1.msra.mxu0 0.0
    %1795 = vmatprep.subr.mxu0 0.0
    %1796 = vmatpush1.msra.mxu0 0.0
    %1797 = vmatprep.subr.mxu0 0.0
    %1798 = vmatpush1.msra.mxu0 0.0
    %1799 = vmatprep.subr.mxu0 0.0
    %1800 = vmatpush1.msra.mxu0 0.0
    %1801 = vmatprep.subr.mxu0 0.0
    %1802 = vmatpush1.msra.mxu0 0.0
    %1803 = vmatprep.subr.mxu0 0.0
    %1804 = vmatpush1.msra.mxu0 0.0
    %1805 = vmatprep.subr.mxu0 0.0
    %1806 = vmatpush1.msra.mxu0 0.0
    %1807 = vmatprep.subr.mxu0 0.0
    %1808 = vmatpush1.msra.mxu0 0.0
    %1809 = vmatprep.subr.mxu0 0.0
    %1810 = vmatpush1.msra.mxu0 0.0
    %1811 = vmatprep.subr.mxu0 0.0
    %1812 = vmatpush1.msra.mxu0 0.0
    %1813 = vmatprep.subr.mxu0 0.0
    %1814 = vmatpush1.msra.mxu0 0.0
    %1815 = vmatprep.subr.mxu0 0.0
    %1816 = vmatpush1.msra.mxu0 0.0
    %1817 = vmatprep.subr.mxu0 0.0
    %1818 = vmatpush1.msra.mxu0 0.0
    %1819 = vmatprep.subr.mxu0 0.0
    %1820 = vmatpush1.msra.mxu0 0.0
    %1821 = vmatprep.subr.mxu0 0.0
    %1822 = vmatpush1.msra.mxu0 0.0
    %1823 = vmatprep.subr.mxu0 0.0
    %1824 = vmatpush1.msra.mxu0 0.0
    %1825 = vmatprep.subr.mxu0 0.0
    %1826 = vmatpush1.msra.mxu0 0.0
    %1827 = vmatprep.subr.mxu0 0.0
    %1828 = vmatpush1.msra.mxu0 0.0
    %1829 = vmatprep.subr.mxu0 0.0
    %1830 = vmatpush1.msra.mxu0 0.0
    %1831 = vmatprep.subr.mxu0 0.0
    %1832 = vmatpush1.msra.mxu0 0.0
    %1833 = vmatprep.subr.mxu0 0.0
    %1834 = vmatpush1.msra.mxu0 0.0
    %1835 = vmatprep.mubr.f32.mxu0 0.0
    %1836 = vmatmul.mubr.f32.gmra.mrb[0].mxu0 %v248
    %v1837 = vpop.f32.mrb[0].mxu0
    %v1838 = vadd.f32 %v64, %v1837
    %v1839 = vpop.f32.mrb[0].mxu0
    %1840 = vmatprep.mubr.f32.mxu0 0.0
    %1841 = vmatmul.mubr.f32.gmra.mrb[0].mxu0 %v251
    %v1842 = vpop.f32.mrb[0].mxu0
    %v1843 = vadd.f32 %v69, %v1842
    %v1844 = vpop.f32.mrb[0].mxu0
    %1845 = vmatprep.mubr.f32.mxu0 0.0
    %1846 = vmatmul.mubr.f32.gmra.mrb[0].mxu0 %v254
    %v1847 = vpop.f32.mrb[0].mxu0
    %v1848 = vadd.f32 %v74, %v1847
    %v1849 = vpop.f32.mrb[0].mxu0
    %1850 = vmatprep.mubr.f32.mxu0 0.0
    %1851 = vmatmul.mubr.f32.gmra.mrb[0].mxu0 %v257
    %v1852 = vpop.f32.mrb[0].mxu0
    %v1853 = vadd.f32 %v79, %v1852
    %v1854 = vpop.f32.mrb[0].mxu0
    %1855 = vmatprep.mubr.f32.mxu0 0.0
    %1856 = vmatmul.mubr.f32.gmra.mrb[0].mxu0 %v260
    %v1857 = vpop.f32.mrb[0].mxu0
    %v1858 = vadd.f32 %v84, %v1857
    %v1859 = vpop.f32.mrb[0].mxu0
    %1860 = vmatprep.mubr.f32.mxu0 0.0
    %1861 = vmatmul.mubr.f32.gmra.mrb[0].mxu0 %v263
    %v1862 = vpop.f32.mrb[0].mxu0
    %v1863 = vadd.f32 %v89, %v1862
    %v1864 = vpop.f32.mrb[0].mxu0
    %1865 = vmatprep.mubr.f32.mxu0 0.0
    %1866 = vmatmul.mubr.f32.gmra.mrb[0].mxu0 %v266
    %v1867 = vpop.f32.mrb[0].mxu0
    %v1868 = vadd.f32 %v94, %v1867
    %v1869 = vpop.f32.mrb[0].mxu0
    %1870 = vmatprep.mubr.f32.mxu0 0.0
    %1871 = vmatmul.mubr.f32.gmra.mrb[0].mxu0 %v269
    %v1872 = vpop.f32.mrb[0].mxu0
    %v1873 = vadd.f32 %v99, %v1872
    %v1874 = vpop.f32.mrb[0].mxu0
    %1875 = vmatprep.mubr.f32.mxu0 0.0
    %1876 = vmatmul.mubr.f32.gmra.mrb[0].mxu0 %v272
    %v1877 = vpop.f32.mrb[0].mxu0
    %v1878 = vadd.f32 %v104, %v1877
    %v1879 = vpop.f32.mrb[0].mxu0
    %1880 = vmatprep.mubr.f32.mxu0 0.0
    %1881 = vmatmul.mubr.f32.gmra.mrb[0].mxu0 %v275
    %v1882 = vpop.f32.mrb[0].mxu0
    %v1883 = vadd.f32 %v109, %v1882
    %v1884 = vpop.f32.mrb[0].mxu0
    %1885 = vmatprep.mubr.f32.mxu0 0.0
    %1886 = vmatmul.mubr.f32.gmra.mrb[0].mxu0 %v278
    %v1887 = vpop.f32.mrb[0].mxu0
    %v1888 = vadd.f32 %v114, %v1887
    %v1889 = vpop.f32.mrb[0].mxu0
    %1890 = vmatprep.mubr.f32.mxu0 0.0
    %1891 = vmatmul.mubr.f32.gmra.mrb[0].mxu0 %v281
    %v1892 = vpop.f32.mrb[0].mxu0
    %v1893 = vadd.f32 %v119, %v1892
    %v1894 = vpop.f32.mrb[0].mxu0
    %1895 = vdwg.mxu0
    %s1896 = scalar_lea.vmem [#allocation2], 576
    %1897 = vst.msk [vmem:[%s1896] sm:$0xff] %vm408, %v1838
    %1898 = vst.msk [vmem:[%s1896 + $0x8] sm:$0xff] %vm408, %v1843
    %1899 = vst.msk [vmem:[%s1896 + $0x10] sm:$0xff] %vm408, %v1848
    %1900 = vst.msk [vmem:[%s1896 + $0x18] sm:$0xff] %vm408, %v1853
    %1901 = vst.msk [vmem:[%s1896 + $0x20] sm:$0xff] %vm408, %v1858
    %1902 = vst.msk [vmem:[%s1896 + $0x28] sm:$0xff] %vm408, %v1863
    %1903 = vst.msk [vmem:[%s1896 + $0x30] sm:$0xff] %vm408, %v1868
    %1904 = vst.msk [vmem:[%s1896 + $0x38] sm:$0xff] %vm408, %v1873
    %1905 = vst.msk [vmem:[%s1896 + $0x40] sm:$0xff] %vm408, %v1878
    %1906 = vst.msk [vmem:[%s1896 + $0x48] sm:$0xff] %vm408, %v1883
    %1907 = vst.msk [vmem:[%s1896 + $0x50] sm:$0xff] %vm408, %v1888
    %1908 = vst.msk [vmem:[%s1896 + $0x58] sm:$0xff] %vm408, %v1893
    %s1909 = scalar_lea.vmem %s0, 168
    %v1910 = vld [vmem:[%s1909] sm:$0xff]
    %v1911 = vld [vmem:[%s1909 + $0x8] sm:$0xff]
    %v1912 = vld [vmem:[%s1909 + $0x10] sm:$0xff]
    %1913 = vmatprep.subr.mxu0 0.0
    %1914 = vmatpush1.msra.mxu0 %v1910
    %1915 = vmatprep.subr.mxu0 0.0
    %1916 = vmatpush1.msra.mxu0 %v1911
    %1917 = vmatprep.subr.mxu0 0.0
    %1918 = vmatpush1.msra.mxu0 %v1912
    %1919 = vmatprep.subr.mxu0 0.0
    %1920 = vmatpush1.msra.mxu0 0.0
    %1921 = vmatprep.subr.mxu0 0.0
    %1922 = vmatpush1.msra.mxu0 0.0
    %1923 = vmatprep.subr.mxu0 0.0
    %1924 = vmatpush1.msra.mxu0 0.0
    %1925 = vmatprep.subr.mxu0 0.0
    %1926 = vmatpush1.msra.mxu0 0.0
    %1927 = vmatprep.subr.mxu0 0.0
    %1928 = vmatpush1.msra.mxu0 0.0
    %1929 = vmatprep.subr.mxu0 0.0
    %1930 = vmatpush1.msra.mxu0 0.0
    %1931 = vmatprep.subr.mxu0 0.0
    %1932 = vmatpush1.msra.mxu0 0.0
    %1933 = vmatprep.subr.mxu0 0.0
    %1934 = vmatpush1.msra.mxu0 0.0
    %1935 = vmatprep.subr.mxu0 0.0
    %1936 = vmatpush1.msra.mxu0 0.0
    %1937 = vmatprep.subr.mxu0 0.0
    %1938 = vmatpush1.msra.mxu0 0.0
    %1939 = vmatprep.subr.mxu0 0.0
    %1940 = vmatpush1.msra.mxu0 0.0
    %1941 = vmatprep.subr.mxu0 0.0
    %1942 = vmatpush1.msra.mxu0 0.0
    %1943 = vmatprep.subr.mxu0 0.0
    %1944 = vmatpush1.msra.mxu0 0.0
    %1945 = vmatprep.subr.mxu0 0.0
    %1946 = vmatpush1.msra.mxu0 0.0
    %1947 = vmatprep.subr.mxu0 0.0
    %1948 = vmatpush1.msra.mxu0 0.0
    %1949 = vmatprep.subr.mxu0 0.0
    %1950 = vmatpush1.msra.mxu0 0.0
    %1951 = vmatprep.subr.mxu0 0.0
    %1952 = vmatpush1.msra.mxu0 0.0
    %1953 = vmatprep.subr.mxu0 0.0
    %1954 = vmatpush1.msra.mxu0 0.0
    %1955 = vmatprep.subr.mxu0 0.0
    %1956 = vmatpush1.msra.mxu0 0.0
    %1957 = vmatprep.subr.mxu0 0.0
    %1958 = vmatpush1.msra.mxu0 0.0
    %1959 = vmatprep.subr.mxu0 0.0
    %1960 = vmatpush1.msra.mxu0 0.0
    %1961 = vmatprep.subr.mxu0 0.0
    %1962 = vmatpush1.msra.mxu0 0.0
    %1963 = vmatprep.subr.mxu0 0.0
    %1964 = vmatpush1.msra.mxu0 0.0
    %1965 = vmatprep.subr.mxu0 0.0
    %1966 = vmatpush1.msra.mxu0 0.0
    %1967 = vmatprep.subr.mxu0 0.0
    %1968 = vmatpush1.msra.mxu0 0.0
    %1969 = vmatprep.subr.mxu0 0.0
    %1970 = vmatpush1.msra.mxu0 0.0
    %1971 = vmatprep.subr.mxu0 0.0
    %1972 = vmatpush1.msra.mxu0 0.0
    %1973 = vmatprep.subr.mxu0 0.0
    %1974 = vmatpush1.msra.mxu0 0.0
    %1975 = vmatprep.subr.mxu0 0.0
    %1976 = vmatpush1.msra.mxu0 0.0
    %1977 = vmatprep.mubr.f32.mxu0 0.0
    %1978 = vmatmul.mubr.f32.gmra.mrb[0].mxu0 %v126
    %v1979 = vpop.f32.mrb[0].mxu0
    %v1980 = vadd.f32 0.0, %v1979
    %v1981 = vpop.f32.mrb[0].mxu0
    %1982 = vmatprep.mubr.f32.mxu0 0.0
    %1983 = vmatmul.mubr.f32.gmra.mrb[0].mxu0 %v129
    %v1984 = vpop.f32.mrb[0].mxu0
    %v1985 = vadd.f32 0.0, %v1984
    %v1986 = vpop.f32.mrb[0].mxu0
    %1987 = vmatprep.mubr.f32.mxu0 0.0
    %1988 = vmatmul.mubr.f32.gmra.mrb[0].mxu0 %v132
    %v1989 = vpop.f32.mrb[0].mxu0
    %v1990 = vadd.f32 0.0, %v1989
    %v1991 = vpop.f32.mrb[0].mxu0
    %1992 = vmatprep.mubr.f32.mxu0 0.0
    %1993 = vmatmul.mubr.f32.gmra.mrb[0].mxu0 %v135
    %v1994 = vpop.f32.mrb[0].mxu0
    %v1995 = vadd.f32 0.0, %v1994
    %v1996 = vpop.f32.mrb[0].mxu0
    %1997 = vmatprep.mubr.f32.mxu0 0.0
    %1998 = vmatmul.mubr.f32.gmra.mrb[0].mxu0 %v138
    %v1999 = vpop.f32.mrb[0].mxu0
    %v2000 = vadd.f32 0.0, %v1999
    %v2001 = vpop.f32.mrb[0].mxu0
    %2002 = vdwg.mxu0
    %vm2003 = vcmp.eq.f32.partialorder %v2000, 0.0
    %v2004 = vsel %vm2003, 1.0, %v2000
    %v2005 = vrcp.pop %v2004
    %v2006 = vmul.f32 1.0, %v2005
    %v2007 = vlaneseq
    %v2008 = vshrl.u32 %v2007, 7
    %v2009 = vsub.s32 0, %v2008
    %v2010 = vrot.slane %v2006, %v2009
    %v2011 = vmul.f32 %v1980, %v2010
    %v2012 = vmul.f32 %v1985, %v2010
    %v2013 = vmul.f32 %v1990, %v2010
    %v2014 = vmul.f32 %v1995, %v2010
    %v2015 = vmax.f32 %v2011, 0.0
    %v2016 = vmax.f32 %v2012, 0.0
    %v2017 = vmax.f32 %v2013, 0.0
    %v2018 = vmax.f32 %v2014, 0.0
    %2019 = vmatprep.subr.mxu0 0.0
    %2020 = vmatpush1.msra.mxu0 %v2015
    %2021 = vmatprep.subr.mxu0 0.0
    %2022 = vmatpush1.msra.mxu0 %v2016
    %2023 = vmatprep.subr.mxu0 0.0
    %2024 = vmatpush1.msra.mxu0 %v2017
    %2025 = vmatprep.subr.mxu0 0.0
    %2026 = vmatpush1.msra.mxu0 %v2018
    %2027 = vmatprep.subr.mxu0 0.0
    %2028 = vmatpush1.msra.mxu0 0.0
    %2029 = vmatprep.subr.mxu0 0.0
    %2030 = vmatpush1.msra.mxu0 0.0
    %2031 = vmatprep.subr.mxu0 0.0
    %2032 = vmatpush1.msra.mxu0 0.0
    %2033 = vmatprep.subr.mxu0 0.0
    %2034 = vmatpush1.msra.mxu0 0.0
    %2035 = vmatprep.subr.mxu0 0.0
    %2036 = vmatpush1.msra.mxu0 0.0
    %2037 = vmatprep.subr.mxu0 0.0
    %2038 = vmatpush1.msra.mxu0 0.0
    %2039 = vmatprep.subr.mxu0 0.0
    %2040 = vmatpush1.msra.mxu0 0.0
    %2041 = vmatprep.subr.mxu0 0.0
    %2042 = vmatpush1.msra.mxu0 0.0
    %2043 = vmatprep.subr.mxu0 0.0
    %2044 = vmatpush1.msra.mxu0 0.0
    %2045 = vmatprep.subr.mxu0 0.0
    %2046 = vmatpush1.msra.mxu0 0.0
    %2047 = vmatprep.subr.mxu0 0.0
    %2048 = vmatpush1.msra.mxu0 0.0
    %2049 = vmatprep.subr.mxu0 0.0
    %2050 = vmatpush1.msra.mxu0 0.0
    %2051 = vmatprep.subr.mxu0 0.0
    %2052 = vmatpush1.msra.mxu0 0.0
    %2053 = vmatprep.subr.mxu0 0.0
    %2054 = vmatpush1.msra.mxu0 0.0
    %2055 = vmatprep.subr.mxu0 0.0
    %2056 = vmatpush1.msra.mxu0 0.0
    %2057 = vmatprep.subr.mxu0 0.0
    %2058 = vmatpush1.msra.mxu0 0.0
    %2059 = vmatprep.subr.mxu0 0.0
    %2060 = vmatpush1.msra.mxu0 0.0
    %2061 = vmatprep.subr.mxu0 0.0
    %2062 = vmatpush1.msra.mxu0 0.0
    %2063 = vmatprep.subr.mxu0 0.0
    %2064 = vmatpush1.msra.mxu0 0.0
    %2065 = vmatprep.subr.mxu0 0.0
    %2066 = vmatpush1.msra.mxu0 0.0
    %2067 = vmatprep.subr.mxu0 0.0
    %2068 = vmatpush1.msra.mxu0 0.0
    %2069 = vmatprep.subr.mxu0 0.0
    %2070 = vmatpush1.msra.mxu0 0.0
    %2071 = vmatprep.subr.mxu0 0.0
    %2072 = vmatpush1.msra.mxu0 0.0
    %2073 = vmatprep.subr.mxu0 0.0
    %2074 = vmatpush1.msra.mxu0 0.0
    %2075 = vmatprep.subr.mxu0 0.0
    %2076 = vmatpush1.msra.mxu0 0.0
    %2077 = vmatprep.subr.mxu0 0.0
    %2078 = vmatpush1.msra.mxu0 0.0
    %2079 = vmatprep.subr.mxu0 0.0
    %2080 = vmatpush1.msra.mxu0 0.0
    %2081 = vmatprep.subr.mxu0 0.0
    %2082 = vmatpush1.msra.mxu0 0.0
    %2083 = vmatprep.mubr.f32.mxu0 0.0
    %2084 = vmatmul.mubr.f32.gmra.mrb[0].mxu0 %v248
    %v2085 = vpop.f32.mrb[0].mxu0
    %v2086 = vadd.f32 %v64, %v2085
    %v2087 = vpop.f32.mrb[0].mxu0
    %2088 = vmatprep.mubr.f32.mxu0 0.0
    %2089 = vmatmul.mubr.f32.gmra.mrb[0].mxu0 %v251
    %v2090 = vpop.f32.mrb[0].mxu0
    %v2091 = vadd.f32 %v69, %v2090
    %v2092 = vpop.f32.mrb[0].mxu0
    %2093 = vmatprep.mubr.f32.mxu0 0.0
    %2094 = vmatmul.mubr.f32.gmra.mrb[0].mxu0 %v254
    %v2095 = vpop.f32.mrb[0].mxu0
    %v2096 = vadd.f32 %v74, %v2095
    %v2097 = vpop.f32.mrb[0].mxu0
    %2098 = vmatprep.mubr.f32.mxu0 0.0
    %2099 = vmatmul.mubr.f32.gmra.mrb[0].mxu0 %v257
    %v2100 = vpop.f32.mrb[0].mxu0
    %v2101 = vadd.f32 %v79, %v2100
    %v2102 = vpop.f32.mrb[0].mxu0
    %2103 = vmatprep.mubr.f32.mxu0 0.0
    %2104 = vmatmul.mubr.f32.gmra.mrb[0].mxu0 %v260
    %v2105 = vpop.f32.mrb[0].mxu0
    %v2106 = vadd.f32 %v84, %v2105
    %v2107 = vpop.f32.mrb[0].mxu0
    %2108 = vmatprep.mubr.f32.mxu0 0.0
    %2109 = vmatmul.mubr.f32.gmra.mrb[0].mxu0 %v263
    %v2110 = vpop.f32.mrb[0].mxu0
    %v2111 = vadd.f32 %v89, %v2110
    %v2112 = vpop.f32.mrb[0].mxu0
    %2113 = vmatprep.mubr.f32.mxu0 0.0
    %2114 = vmatmul.mubr.f32.gmra.mrb[0].mxu0 %v266
    %v2115 = vpop.f32.mrb[0].mxu0
    %v2116 = vadd.f32 %v94, %v2115
    %v2117 = vpop.f32.mrb[0].mxu0
    %2118 = vmatprep.mubr.f32.mxu0 0.0
    %2119 = vmatmul.mubr.f32.gmra.mrb[0].mxu0 %v269
    %v2120 = vpop.f32.mrb[0].mxu0
    %v2121 = vadd.f32 %v99, %v2120
    %v2122 = vpop.f32.mrb[0].mxu0
    %2123 = vmatprep.mubr.f32.mxu0 0.0
    %2124 = vmatmul.mubr.f32.gmra.mrb[0].mxu0 %v272
    %v2125 = vpop.f32.mrb[0].mxu0
    %v2126 = vadd.f32 %v104, %v2125
    %v2127 = vpop.f32.mrb[0].mxu0
    %2128 = vmatprep.mubr.f32.mxu0 0.0
    %2129 = vmatmul.mubr.f32.gmra.mrb[0].mxu0 %v275
    %v2130 = vpop.f32.mrb[0].mxu0
    %v2131 = vadd.f32 %v109, %v2130
    %v2132 = vpop.f32.mrb[0].mxu0
    %2133 = vmatprep.mubr.f32.mxu0 0.0
    %2134 = vmatmul.mubr.f32.gmra.mrb[0].mxu0 %v278
    %v2135 = vpop.f32.mrb[0].mxu0
    %v2136 = vadd.f32 %v114, %v2135
    %v2137 = vpop.f32.mrb[0].mxu0
    %2138 = vmatprep.mubr.f32.mxu0 0.0
    %2139 = vmatmul.mubr.f32.gmra.mrb[0].mxu0 %v281
    %v2140 = vpop.f32.mrb[0].mxu0
    %v2141 = vadd.f32 %v119, %v2140
    %v2142 = vpop.f32.mrb[0].mxu0
    %2143 = vdwg.mxu0
    %s2144 = scalar_lea.vmem [#allocation2], 672
    %2145 = vst.msk [vmem:[%s2144] sm:$0xff] %vm408, %v2086
    %2146 = vst.msk [vmem:[%s2144 + $0x8] sm:$0xff] %vm408, %v2091
    %2147 = vst.msk [vmem:[%s2144 + $0x10] sm:$0xff] %vm408, %v2096
    %2148 = vst.msk [vmem:[%s2144 + $0x18] sm:$0xff] %vm408, %v2101
    %2149 = vst.msk [vmem:[%s2144 + $0x20] sm:$0xff] %vm408, %v2106
    %2150 = vst.msk [vmem:[%s2144 + $0x28] sm:$0xff] %vm408, %v2111
    %2151 = vst.msk [vmem:[%s2144 + $0x30] sm:$0xff] %vm408, %v2116
    %2152 = vst.msk [vmem:[%s2144 + $0x38] sm:$0xff] %vm408, %v2121
    %2153 = vst.msk [vmem:[%s2144 + $0x40] sm:$0xff] %vm408, %v2126
    %2154 = vst.msk [vmem:[%s2144 + $0x48] sm:$0xff] %vm408, %v2131
    %2155 = vst.msk [vmem:[%s2144 + $0x50] sm:$0xff] %vm408, %v2136
    %2156 = vst.msk [vmem:[%s2144 + $0x58] sm:$0xff] %vm408, %v2141
    %v2157 = vld [vmem:[%s5] sm:$0xff]
    %v2158 = vld [vmem:[%s5 + $0x8] sm:$0xff]
    %v2159 = vld [vmem:[%s5 + $0x10] sm:$0xff]
    %v2160 = vld [vmem:[%s5 + $0x18] sm:$0xff]
    %v2161 = vld [vmem:[%s5 + $0x20] sm:$0xff]
    %v2162 = vld [vmem:[%s5 + $0x28] sm:$0xff]
    %v2163 = vld [vmem:[%s5 + $0x30] sm:$0xff]
    %v2164 = vld [vmem:[%s5 + $0x38] sm:$0xff]
    %v2165 = vld [vmem:[%s5 + $0x40] sm:$0xff]
    %v2166 = vld [vmem:[%s5 + $0x48] sm:$0xff]
    %v2167 = vld [vmem:[%s5 + $0x50] sm:$0xff]
    %v2168 = vld [vmem:[%s5 + $0x58] sm:$0xff]
    %v2169 = vld [vmem:[%s4] sm:$0xff]
    %v2170 = vld [vmem:[%s4 + $0x8] sm:$0xff]
    %v2171 = vld [vmem:[%s4 + $0x10] sm:$0xff]
    %v2172 = vld [vmem:[%s4 + $0x18] sm:$0xff]
    %2174 = vset.pattern.permute.xlu0 0
    %2175 = vperm.xlu0 %2174, %v2169
    %v2176 = vpop.permute.xlu0 %2175
    %2179 = vset.pattern.permute.xlu0 0
    %2180 = vperm.xlu0 %2179, %v2170
    %v2181 = vpop.permute.xlu0 %2180
    %2184 = vset.pattern.permute.xlu0 0
    %2185 = vperm.xlu0 %2184, %v2171
    %v2186 = vpop.permute.xlu0 %2185
    %2189 = vset.pattern.permute.xlu0 0
    %2190 = vperm.xlu0 %2189, %v2172
    %v2191 = vpop.permute.xlu0 %2190
    %v2194 = vsel %vm246, %v2157, 0
    %v2197 = vsel %vm246, %v2158, 0
    %v2200 = vsel %vm246, %v2159, 0
    %v2203 = vsel %vm246, %v2160, 0
    %v2206 = vsel %vm246, %v2161, 0
    %v2209 = vsel %vm246, %v2162, 0
    %v2212 = vsel %vm246, %v2163, 0
    %v2215 = vsel %vm246, %v2164, 0
    %v2218 = vsel %vm246, %v2165, 0
    %v2221 = vsel %vm246, %v2166, 0
    %v2224 = vsel %vm246, %v2167, 0
    %v2227 = vsel %vm246, %v2168, 0
    %2229 = vmatprep.subr.mxu0 0.0
    %2230 = vmatpush1.msra.mxu0 0.0
    %2231 = vmatprep.subr.mxu0 0.0
    %2232 = vmatpush1.msra.mxu0 0.0
    %2233 = vmatprep.subr.mxu0 0.0
    %2234 = vmatpush1.msra.mxu0 0.0
    %2235 = vmatprep.subr.mxu0 0.0
    %2236 = vmatpush1.msra.mxu0 0.0
    %2237 = vmatprep.subr.mxu0 0.0
    %2238 = vmatpush1.msra.mxu0 0.0
    %2239 = vmatprep.subr.mxu0 0.0
    %2240 = vmatpush1.msra.mxu0 0.0
    %2241 = vmatprep.subr.mxu0 0.0
    %2242 = vmatpush1.msra.mxu0 0.0
    %2243 = vmatprep.subr.mxu0 0.0
    %2244 = vmatpush1.msra.mxu0 0.0
    %2245 = vmatprep.subr.mxu0 0.0
    %2246 = vmatpush1.msra.mxu0 0.0
    %2247 = vmatprep.subr.mxu0 0.0
    %2248 = vmatpush1.msra.mxu0 0.0
    %2249 = vmatprep.subr.mxu0 0.0
    %2250 = vmatpush1.msra.mxu0 0.0
    %2251 = vmatprep.subr.mxu0 0.0
    %2252 = vmatpush1.msra.mxu0 0.0
    %2253 = vmatprep.subr.mxu0 0.0
    %2254 = vmatpush1.msra.mxu0 0.0
    %2255 = vmatprep.subr.mxu0 0.0
    %2256 = vmatpush1.msra.mxu0 0.0
    %2257 = vmatprep.subr.mxu0 0.0
    %2258 = vmatpush1.msra.mxu0 0.0
    %2259 = vmatprep.subr.mxu0 0.0
    %2260 = vmatpush1.msra.mxu0 0.0
    %2261 = vmatprep.subr.mxu0 0.0
    %2262 = vmatpush1.msra.mxu0 0.0
    %2263 = vmatprep.subr.mxu0 0.0
    %2264 = vmatpush1.msra.mxu0 0.0
    %2265 = vmatprep.subr.mxu0 0.0
    %2266 = vmatpush1.msra.mxu0 0.0
    %2267 = vmatprep.subr.mxu0 0.0
    %2268 = vmatpush1.msra.mxu0 0.0
    %2269 = vmatprep.subr.mxu0 0.0
    %2270 = vmatpush1.msra.mxu0 0.0
    %2271 = vmatprep.subr.mxu0 0.0
    %2272 = vmatpush1.msra.mxu0 0.0
    %2273 = vmatprep.subr.mxu0 0.0
    %2274 = vmatpush1.msra.mxu0 0.0
    %2275 = vmatprep.subr.mxu0 0.0
    %2276 = vmatpush1.msra.mxu0 0.0
    %2277 = vmatprep.subr.mxu0 0.0
    %2278 = vmatpush1.msra.mxu0 0.0
    %2279 = vmatprep.subr.mxu0 0.0
    %2280 = vmatpush1.msra.mxu0 0.0
    %2281 = vmatprep.subr.mxu0 0.0
    %2282 = vmatpush1.msra.mxu0 0.0
    %2283 = vmatprep.subr.mxu0 0.0
    %2284 = vmatpush1.msra.mxu0 0.0
    %2285 = vmatprep.subr.mxu0 0.0
    %2286 = vmatpush1.msra.mxu0 0.0
    %2287 = vmatprep.subr.mxu0 0.0
    %2288 = vmatpush1.msra.mxu0 0.0
    %2289 = vmatprep.subr.mxu0 0.0
    %2290 = vmatpush1.msra.mxu0 0.0
    %2291 = vmatprep.subr.mxu0 0.0
    %2292 = vmatpush1.msra.mxu0 0.0
    %2293 = vmatprep.mubr.f32.mxu0 0.0
    %2294 = vmatmul.mubr.f32.gmra.mrb[0].mxu0 %v2194
    %v2295 = vpop.f32.mrb[0].mxu0
    %v2296 = vadd.f32 0.0, %v2295
    %v2297 = vpop.f32.mrb[0].mxu0
    %2298 = vmatprep.mubr.f32.mxu0 0.0
    %2299 = vmatmul.mubr.f32.gmra.mrb[0].mxu0 %v2197
    %v2300 = vpop.f32.mrb[0].mxu0
    %v2301 = vadd.f32 0.0, %v2300
    %v2302 = vpop.f32.mrb[0].mxu0
    %2303 = vmatprep.mubr.f32.mxu0 0.0
    %2304 = vmatmul.mubr.f32.gmra.mrb[0].mxu0 %v2200
    %v2305 = vpop.f32.mrb[0].mxu0
    %v2306 = vadd.f32 0.0, %v2305
    %v2307 = vpop.f32.mrb[0].mxu0
    %2308 = vmatprep.mubr.f32.mxu0 0.0
    %2309 = vmatmul.mubr.f32.gmra.mrb[0].mxu0 %v2203
    %v2310 = vpop.f32.mrb[0].mxu0
    %v2311 = vadd.f32 0.0, %v2310
    %v2312 = vpop.f32.mrb[0].mxu0
    %2313 = vmatprep.mubr.f32.mxu0 0.0
    %2314 = vmatmul.mubr.f32.gmra.mrb[0].mxu0 %v2206
    %v2315 = vpop.f32.mrb[0].mxu0
    %v2316 = vadd.f32 0.0, %v2315
    %v2317 = vpop.f32.mrb[0].mxu0
    %2318 = vmatprep.mubr.f32.mxu0 0.0
    %2319 = vmatmul.mubr.f32.gmra.mrb[0].mxu0 %v2209
    %v2320 = vpop.f32.mrb[0].mxu0
    %v2321 = vadd.f32 0.0, %v2320
    %v2322 = vpop.f32.mrb[0].mxu0
    %2323 = vmatprep.mubr.f32.mxu0 0.0
    %2324 = vmatmul.mubr.f32.gmra.mrb[0].mxu0 %v2212
    %v2325 = vpop.f32.mrb[0].mxu0
    %v2326 = vadd.f32 0.0, %v2325
    %v2327 = vpop.f32.mrb[0].mxu0
    %2328 = vmatprep.mubr.f32.mxu0 0.0
    %2329 = vmatmul.mubr.f32.gmra.mrb[0].mxu0 %v2215
    %v2330 = vpop.f32.mrb[0].mxu0
    %v2331 = vadd.f32 0.0, %v2330
    %v2332 = vpop.f32.mrb[0].mxu0
    %2333 = vmatprep.mubr.f32.mxu0 0.0
    %2334 = vmatmul.mubr.f32.gmra.mrb[0].mxu0 %v2218
    %v2335 = vpop.f32.mrb[0].mxu0
    %v2336 = vadd.f32 0.0, %v2335
    %v2337 = vpop.f32.mrb[0].mxu0
    %2338 = vmatprep.mubr.f32.mxu0 0.0
    %2339 = vmatmul.mubr.f32.gmra.mrb[0].mxu0 %v2221
    %v2340 = vpop.f32.mrb[0].mxu0
    %v2341 = vadd.f32 0.0, %v2340
    %v2342 = vpop.f32.mrb[0].mxu0
    %2343 = vmatprep.mubr.f32.mxu0 0.0
    %2344 = vmatmul.mubr.f32.gmra.mrb[0].mxu0 %v2224
    %v2345 = vpop.f32.mrb[0].mxu0
    %v2346 = vadd.f32 0.0, %v2345
    %v2347 = vpop.f32.mrb[0].mxu0
    %2348 = vmatprep.mubr.f32.mxu0 0.0
    %2349 = vmatmul.mubr.f32.gmra.mrb[0].mxu0 %v2227
    %v2350 = vpop.f32.mrb[0].mxu0
    %v2351 = vadd.f32 0.0, %v2350
    %v2352 = vpop.f32.mrb[0].mxu0
    %2353 = vdwg.mxu0
    %v2354 = vld [vmem:[#allocation2] sm:$0xff]
    %v2355 = vld [vmem:[#allocation2 + $0x8] sm:$0xff]
    %v2356 = vld [vmem:[#allocation2 + $0x10] sm:$0xff]
    %v2357 = vld [vmem:[#allocation2 + $0x18] sm:$0xff]
    %v2358 = vld [vmem:[#allocation2 + $0x20] sm:$0xff]
    %v2359 = vld [vmem:[#allocation2 + $0x28] sm:$0xff]
    %v2360 = vld [vmem:[#allocation2 + $0x30] sm:$0xff]
    %v2361 = vld [vmem:[#allocation2 + $0x38] sm:$0xff]
    %v2362 = vld [vmem:[#allocation2 + $0x40] sm:$0xff]
    %v2363 = vld [vmem:[#allocation2 + $0x48] sm:$0xff]
    %v2364 = vld [vmem:[#allocation2 + $0x50] sm:$0xff]
    %v2365 = vld [vmem:[#allocation2 + $0x58] sm:$0xff]
    %v2366 = vadd.f32 %v2354, %v2296
    %v2367 = vadd.f32 %v2355, %v2301
    %v2368 = vadd.f32 %v2356, %v2306
    %v2369 = vadd.f32 %v2357, %v2311
    %v2370 = vxor.u32 %v2366, 2147483648
    %v2371 = vxor.u32 %v2367, 2147483648
    %v2372 = vxor.u32 %v2368, 2147483648
    %v2373 = vxor.u32 %v2369, 2147483648
    %v2374 = vmul.f32 %v2370, 1.442695
    %v2375 = vpow.pop %v2374
    %v2376 = vmul.f32 %v2371, 1.442695
    %v2377 = vpow.pop %v2376
    %v2378 = vmul.f32 %v2372, 1.442695
    %v2379 = vpow.pop %v2378
    %v2380 = vmul.f32 %v2373, 1.442695
    %v2381 = vpow.pop %v2380
    %v2382 = vadd.f32 %v2375, 1.0
    %v2383 = vadd.f32 %v2377, 1.0
    %v2384 = vadd.f32 %v2379, 1.0
    %v2385 = vadd.f32 %v2381, 1.0
    %v2386 = vrcp.pop %v2382
    %v2387 = vmul.f32 1.0, %v2386
    %v2388 = vrcp.pop %v2383
    %v2389 = vmul.f32 1.0, %v2388
    %v2390 = vrcp.pop %v2384
    %v2391 = vmul.f32 1.0, %v2390
    %v2392 = vrcp.pop %v2385
    %v2393 = vmul.f32 1.0, %v2392
    %v2394 = vadd.f32 %v2358, %v2316
    %v2395 = vadd.f32 %v2359, %v2321
    %v2396 = vadd.f32 %v2360, %v2326
    %v2397 = vadd.f32 %v2361, %v2331
    %v2398 = vxor.u32 %v2394, 2147483648
    %v2399 = vxor.u32 %v2395, 2147483648
    %v2400 = vxor.u32 %v2396, 2147483648
    %v2401 = vxor.u32 %v2397, 2147483648
    %v2402 = vmul.f32 %v2398, 1.442695
    %v2403 = vpow.pop %v2402
    %v2404 = vmul.f32 %v2399, 1.442695
    %v2405 = vpow.pop %v2404
    %v2406 = vmul.f32 %v2400, 1.442695
    %v2407 = vpow.pop %v2406
    %v2408 = vmul.f32 %v2401, 1.442695
    %v2409 = vpow.pop %v2408
    %v2410 = vadd.f32 %v2403, 1.0
    %v2411 = vadd.f32 %v2405, 1.0
    %v2412 = vadd.f32 %v2407, 1.0
    %v2413 = vadd.f32 %v2409, 1.0
    %v2414 = vrcp.pop %v2410
    %v2415 = vmul.f32 1.0, %v2414
    %v2416 = vrcp.pop %v2411
    %v2417 = vmul.f32 1.0, %v2416
    %v2418 = vrcp.pop %v2412
    %v2419 = vmul.f32 1.0, %v2418
    %v2420 = vrcp.pop %v2413
    %v2421 = vmul.f32 1.0, %v2420
    %v2422 = vadd.f32 %v2336, %v2176
    %v2423 = vadd.f32 %v2341, %v2181
    %v2424 = vadd.f32 %v2346, %v2186
    %v2425 = vadd.f32 %v2351, %v2191
    %v2426 = vmul.f32 %v2387, %v2422
    %v2427 = vmul.f32 %v2389, %v2423
    %v2428 = vmul.f32 %v2391, %v2424
    %v2429 = vmul.f32 %v2393, %v2425
    %v2430 = vadd.f32 %v2362, %v2426
    %v2431 = vadd.f32 %v2363, %v2427
    %v2432 = vadd.f32 %v2364, %v2428
    %v2433 = vadd.f32 %v2365, %v2429
    %v2434 = vtanh.pop %v2430
    %v2435 = vtanh.pop %v2431
    %v2436 = vtanh.pop %v2432
    %v2437 = vtanh.pop %v2433
    %v2438 = vsub.f32 1.0, %v2415
    %v2439 = vsub.f32 1.0, %v2417
    %v2440 = vsub.f32 1.0, %v2419
    %v2441 = vsub.f32 1.0, %v2421
    %v2442 = vmul.f32 %v2438, %v2434
    %v2443 = vmul.f32 %v2439, %v2435
    %v2444 = vmul.f32 %v2440, %v2436
    %v2445 = vmul.f32 %v2441, %v2437
    %v2446 = vmul.f32 %v2415, 0.0
    %v2447 = vmul.f32 %v2417, 0.0
    %v2448 = vmul.f32 %v2419, 0.0
    %v2449 = vmul.f32 %v2421, 0.0
    %v2450 = vadd.f32 %v2442, %v2446
    %v2451 = vadd.f32 %v2443, %v2447
    %v2452 = vadd.f32 %v2444, %v2448
    %v2453 = vadd.f32 %v2445, %v2449
    %2454 = vmatprep.subr.mxu0 0.0
    %2455 = vmatpush1.msra.mxu0 %v2450
    %2456 = vmatprep.subr.mxu0 0.0
    %2457 = vmatpush1.msra.mxu0 %v2451
    %2458 = vmatprep.subr.mxu0 0.0
    %2459 = vmatpush1.msra.mxu0 %v2452
    %2460 = vmatprep.subr.mxu0 0.0
    %2461 = vmatpush1.msra.mxu0 %v2453
    %2462 = vmatprep.subr.mxu0 0.0
    %2463 = vmatpush1.msra.mxu0 0.0
    %2464 = vmatprep.subr.mxu0 0.0
    %2465 = vmatpush1.msra.mxu0 0.0
    %2466 = vmatprep.subr.mxu0 0.0
    %2467 = vmatpush1.msra.mxu0 0.0
    %2468 = vmatprep.subr.mxu0 0.0
    %2469 = vmatpush1.msra.mxu0 0.0
    %2470 = vmatprep.subr.mxu0 0.0
    %2471 = vmatpush1.msra.mxu0 0.0
    %2472 = vmatprep.subr.mxu0 0.0
    %2473 = vmatpush1.msra.mxu0 0.0
    %2474 = vmatprep.subr.mxu0 0.0
    %2475 = vmatpush1.msra.mxu0 0.0
    %2476 = vmatprep.subr.mxu0 0.0
    %2477 = vmatpush1.msra.mxu0 0.0
    %2478 = vmatprep.subr.mxu0 0.0
    %2479 = vmatpush1.msra.mxu0 0.0
    %2480 = vmatprep.subr.mxu0 0.0
    %2481 = vmatpush1.msra.mxu0 0.0
    %2482 = vmatprep.subr.mxu0 0.0
    %2483 = vmatpush1.msra.mxu0 0.0
    %2484 = vmatprep.subr.mxu0 0.0
    %2485 = vmatpush1.msra.mxu0 0.0
    %2486 = vmatprep.subr.mxu0 0.0
    %2487 = vmatpush1.msra.mxu0 0.0
    %2488 = vmatprep.subr.mxu0 0.0
    %2489 = vmatpush1.msra.mxu0 0.0
    %2490 = vmatprep.subr.mxu0 0.0
    %2491 = vmatpush1.msra.mxu0 0.0
    %2492 = vmatprep.subr.mxu0 0.0
    %2493 = vmatpush1.msra.mxu0 0.0
    %2494 = vmatprep.subr.mxu0 0.0
    %2495 = vmatpush1.msra.mxu0 0.0
    %2496 = vmatprep.subr.mxu0 0.0
    %2497 = vmatpush1.msra.mxu0 0.0
    %2498 = vmatprep.subr.mxu0 0.0
    %2499 = vmatpush1.msra.mxu0 0.0
    %2500 = vmatprep.subr.mxu0 0.0
    %2501 = vmatpush1.msra.mxu0 0.0
    %2502 = vmatprep.subr.mxu0 0.0
    %2503 = vmatpush1.msra.mxu0 0.0
    %2504 = vmatprep.subr.mxu0 0.0
    %2505 = vmatpush1.msra.mxu0 0.0
    %2506 = vmatprep.subr.mxu0 0.0
    %2507 = vmatpush1.msra.mxu0 0.0
    %2508 = vmatprep.subr.mxu0 0.0
    %2509 = vmatpush1.msra.mxu0 0.0
    %2510 = vmatprep.subr.mxu0 0.0
    %2511 = vmatpush1.msra.mxu0 0.0
    %2512 = vmatprep.subr.mxu0 0.0
    %2513 = vmatpush1.msra.mxu0 0.0
    %2514 = vmatprep.subr.mxu0 0.0
    %2515 = vmatpush1.msra.mxu0 0.0
    %2516 = vmatprep.subr.mxu0 0.0
    %2517 = vmatpush1.msra.mxu0 0.0
    %2518 = vmatprep.mubr.f32.mxu0 0.0
    %2519 = vmatmul.mubr.f32.gmra.mrb[0].mxu0 %v2194
    %v2520 = vpop.f32.mrb[0].mxu0
    %v2521 = vadd.f32 0.0, %v2520
    %v2522 = vpop.f32.mrb[0].mxu0
    %2523 = vmatprep.mubr.f32.mxu0 0.0
    %2524 = vmatmul.mubr.f32.gmra.mrb[0].mxu0 %v2197
    %v2525 = vpop.f32.mrb[0].mxu0
    %v2526 = vadd.f32 0.0, %v2525
    %v2527 = vpop.f32.mrb[0].mxu0
    %2528 = vmatprep.mubr.f32.mxu0 0.0
    %2529 = vmatmul.mubr.f32.gmra.mrb[0].mxu0 %v2200
    %v2530 = vpop.f32.mrb[0].mxu0
    %v2531 = vadd.f32 0.0, %v2530
    %v2532 = vpop.f32.mrb[0].mxu0
    %2533 = vmatprep.mubr.f32.mxu0 0.0
    %2534 = vmatmul.mubr.f32.gmra.mrb[0].mxu0 %v2203
    %v2535 = vpop.f32.mrb[0].mxu0
    %v2536 = vadd.f32 0.0, %v2535
    %v2537 = vpop.f32.mrb[0].mxu0
    %2538 = vmatprep.mubr.f32.mxu0 0.0
    %2539 = vmatmul.mubr.f32.gmra.mrb[0].mxu0 %v2206
    %v2540 = vpop.f32.mrb[0].mxu0
    %v2541 = vadd.f32 0.0, %v2540
    %v2542 = vpop.f32.mrb[0].mxu0
    %2543 = vmatprep.mubr.f32.mxu0 0.0
    %2544 = vmatmul.mubr.f32.gmra.mrb[0].mxu0 %v2209
    %v2545 = vpop.f32.mrb[0].mxu0
    %v2546 = vadd.f32 0.0, %v2545
    %v2547 = vpop.f32.mrb[0].mxu0
    %2548 = vmatprep.mubr.f32.mxu0 0.0
    %2549 = vmatmul.mubr.f32.gmra.mrb[0].mxu0 %v2212
    %v2550 = vpop.f32.mrb[0].mxu0
    %v2551 = vadd.f32 0.0, %v2550
    %v2552 = vpop.f32.mrb[0].mxu0
    %2553 = vmatprep.mubr.f32.mxu0 0.0
    %2554 = vmatmul.mubr.f32.gmra.mrb[0].mxu0 %v2215
    %v2555 = vpop.f32.mrb[0].mxu0
    %v2556 = vadd.f32 0.0, %v2555
    %v2557 = vpop.f32.mrb[0].mxu0
    %2558 = vmatprep.mubr.f32.mxu0 0.0
    %2559 = vmatmul.mubr.f32.gmra.mrb[0].mxu0 %v2218
    %v2560 = vpop.f32.mrb[0].mxu0
    %v2561 = vadd.f32 0.0, %v2560
    %v2562 = vpop.f32.mrb[0].mxu0
    %2563 = vmatprep.mubr.f32.mxu0 0.0
    %2564 = vmatmul.mubr.f32.gmra.mrb[0].mxu0 %v2221
    %v2565 = vpop.f32.mrb[0].mxu0
    %v2566 = vadd.f32 0.0, %v2565
    %v2567 = vpop.f32.mrb[0].mxu0
    %2568 = vmatprep.mubr.f32.mxu0 0.0
    %2569 = vmatmul.mubr.f32.gmra.mrb[0].mxu0 %v2224
    %v2570 = vpop.f32.mrb[0].mxu0
    %v2571 = vadd.f32 0.0, %v2570
    %v2572 = vpop.f32.mrb[0].mxu0
    %2573 = vmatprep.mubr.f32.mxu0 0.0
    %2574 = vmatmul.mubr.f32.gmra.mrb[0].mxu0 %v2227
    %v2575 = vpop.f32.mrb[0].mxu0
    %v2576 = vadd.f32 0.0, %v2575
    %v2577 = vpop.f32.mrb[0].mxu0
    %2578 = vdwg.mxu0
    %v2579 = vld [vmem:[%s656] sm:$0xff]
    %v2580 = vld [vmem:[%s656 + $0x8] sm:$0xff]
    %v2581 = vld [vmem:[%s656 + $0x10] sm:$0xff]
    %v2582 = vld [vmem:[%s656 + $0x18] sm:$0xff]
    %v2583 = vld [vmem:[%s656 + $0x20] sm:$0xff]
    %v2584 = vld [vmem:[%s656 + $0x28] sm:$0xff]
    %v2585 = vld [vmem:[%s656 + $0x30] sm:$0xff]
    %v2586 = vld [vmem:[%s656 + $0x38] sm:$0xff]
    %v2587 = vld [vmem:[%s656 + $0x40] sm:$0xff]
    %v2588 = vld [vmem:[%s656 + $0x48] sm:$0xff]
    %v2589 = vld [vmem:[%s656 + $0x50] sm:$0xff]
    %v2590 = vld [vmem:[%s656 + $0x58] sm:$0xff]
    %v2591 = vadd.f32 %v2579, %v2521
    %v2592 = vadd.f32 %v2580, %v2526
    %v2593 = vadd.f32 %v2581, %v2531
    %v2594 = vadd.f32 %v2582, %v2536
    %v2595 = vxor.u32 %v2591, 2147483648
    %v2596 = vxor.u32 %v2592, 2147483648
    %v2597 = vxor.u32 %v2593, 2147483648
    %v2598 = vxor.u32 %v2594, 2147483648
    %v2599 = vmul.f32 %v2595, 1.442695
    %v2600 = vpow.pop %v2599
    %v2601 = vmul.f32 %v2596, 1.442695
    %v2602 = vpow.pop %v2601
    %v2603 = vmul.f32 %v2597, 1.442695
    %v2604 = vpow.pop %v2603
    %v2605 = vmul.f32 %v2598, 1.442695
    %v2606 = vpow.pop %v2605
    %v2607 = vadd.f32 %v2600, 1.0
    %v2608 = vadd.f32 %v2602, 1.0
    %v2609 = vadd.f32 %v2604, 1.0
    %v2610 = vadd.f32 %v2606, 1.0
    %v2611 = vrcp.pop %v2607
    %v2612 = vmul.f32 1.0, %v2611
    %v2613 = vrcp.pop %v2608
    %v2614 = vmul.f32 1.0, %v2613
    %v2615 = vrcp.pop %v2609
    %v2616 = vmul.f32 1.0, %v2615
    %v2617 = vrcp.pop %v2610
    %v2618 = vmul.f32 1.0, %v2617
    %v2619 = vadd.f32 %v2583, %v2541
    %v2620 = vadd.f32 %v2584, %v2546
    %v2621 = vadd.f32 %v2585, %v2551
    %v2622 = vadd.f32 %v2586, %v2556
    %v2623 = vxor.u32 %v2619, 2147483648
    %v2624 = vxor.u32 %v2620, 2147483648
    %v2625 = vxor.u32 %v2621, 2147483648
    %v2626 = vxor.u32 %v2622, 2147483648
    %v2627 = vmul.f32 %v2623, 1.442695
    %v2628 = vpow.pop %v2627
    %v2629 = vmul.f32 %v2624, 1.442695
    %v2630 = vpow.pop %v2629
    %v2631 = vmul.f32 %v2625, 1.442695
    %v2632 = vpow.pop %v2631
    %v2633 = vmul.f32 %v2626, 1.442695
    %v2634 = vpow.pop %v2633
    %v2635 = vadd.f32 %v2628, 1.0
    %v2636 = vadd.f32 %v2630, 1.0
    %v2637 = vadd.f32 %v2632, 1.0
    %v2638 = vadd.f32 %v2634, 1.0
    %v2639 = vrcp.pop %v2635
    %v2640 = vmul.f32 1.0, %v2639
    %v2641 = vrcp.pop %v2636
    %v2642 = vmul.f32 1.0, %v2641
    %v2643 = vrcp.pop %v2637
    %v2644 = vmul.f32 1.0, %v2643
    %v2645 = vrcp.pop %v2638
    %v2646 = vmul.f32 1.0, %v2645
    %v2647 = vadd.f32 %v2561, %v2176
    %v2648 = vadd.f32 %v2566, %v2181
    %v2649 = vadd.f32 %v2571, %v2186
    %v2650 = vadd.f32 %v2576, %v2191
    %v2651 = vmul.f32 %v2612, %v2647
    %v2652 = vmul.f32 %v2614, %v2648
    %v2653 = vmul.f32 %v2616, %v2649
    %v2654 = vmul.f32 %v2618, %v2650
    %v2655 = vadd.f32 %v2587, %v2651
    %v2656 = vadd.f32 %v2588, %v2652
    %v2657 = vadd.f32 %v2589, %v2653
    %v2658 = vadd.f32 %v2590, %v2654
    %v2659 = vtanh.pop %v2655
    %v2660 = vtanh.pop %v2656
    %v2661 = vtanh.pop %v2657
    %v2662 = vtanh.pop %v2658
    %v2663 = vsub.f32 1.0, %v2640
    %v2664 = vsub.f32 1.0, %v2642
    %v2665 = vsub.f32 1.0, %v2644
    %v2666 = vsub.f32 1.0, %v2646
    %v2667 = vmul.f32 %v2663, %v2659
    %v2668 = vmul.f32 %v2664, %v2660
    %v2669 = vmul.f32 %v2665, %v2661
    %v2670 = vmul.f32 %v2666, %v2662
    %v2671 = vmul.f32 %v2640, %v2450
    %v2672 = vmul.f32 %v2642, %v2451
    %v2673 = vmul.f32 %v2644, %v2452
    %v2674 = vmul.f32 %v2646, %v2453
    %v2675 = vadd.f32 %v2667, %v2671
    %v2676 = vadd.f32 %v2668, %v2672
    %v2677 = vadd.f32 %v2669, %v2673
    %v2678 = vadd.f32 %v2670, %v2674
    %2679 = vmatprep.subr.mxu0 0.0
    %2680 = vmatpush1.msra.mxu0 %v2675
    %2681 = vmatprep.subr.mxu0 0.0
    %2682 = vmatpush1.msra.mxu0 %v2676
    %2683 = vmatprep.subr.mxu0 0.0
    %2684 = vmatpush1.msra.mxu0 %v2677
    %2685 = vmatprep.subr.mxu0 0.0
    %2686 = vmatpush1.msra.mxu0 %v2678
    %2687 = vmatprep.subr.mxu0 0.0
    %2688 = vmatpush1.msra.mxu0 0.0
    %2689 = vmatprep.subr.mxu0 0.0
    %2690 = vmatpush1.msra.mxu0 0.0
    %2691 = vmatprep.subr.mxu0 0.0
    %2692 = vmatpush1.msra.mxu0 0.0
    %2693 = vmatprep.subr.mxu0 0.0
    %2694 = vmatpush1.msra.mxu0 0.0
    %2695 = vmatprep.subr.mxu0 0.0
    %2696 = vmatpush1.msra.mxu0 0.0
    %2697 = vmatprep.subr.mxu0 0.0
    %2698 = vmatpush1.msra.mxu0 0.0
    %2699 = vmatprep.subr.mxu0 0.0
    %2700 = vmatpush1.msra.mxu0 0.0
    %2701 = vmatprep.subr.mxu0 0.0
    %2702 = vmatpush1.msra.mxu0 0.0
    %2703 = vmatprep.subr.mxu0 0.0
    %2704 = vmatpush1.msra.mxu0 0.0
    %2705 = vmatprep.subr.mxu0 0.0
    %2706 = vmatpush1.msra.mxu0 0.0
    %2707 = vmatprep.subr.mxu0 0.0
    %2708 = vmatpush1.msra.mxu0 0.0
    %2709 = vmatprep.subr.mxu0 0.0
    %2710 = vmatpush1.msra.mxu0 0.0
    %2711 = vmatprep.subr.mxu0 0.0
    %2712 = vmatpush1.msra.mxu0 0.0
    %2713 = vmatprep.subr.mxu0 0.0
    %2714 = vmatpush1.msra.mxu0 0.0
    %2715 = vmatprep.subr.mxu0 0.0
    %2716 = vmatpush1.msra.mxu0 0.0
    %2717 = vmatprep.subr.mxu0 0.0
    %2718 = vmatpush1.msra.mxu0 0.0
    %2719 = vmatprep.subr.mxu0 0.0
    %2720 = vmatpush1.msra.mxu0 0.0
    %2721 = vmatprep.subr.mxu0 0.0
    %2722 = vmatpush1.msra.mxu0 0.0
    %2723 = vmatprep.subr.mxu0 0.0
    %2724 = vmatpush1.msra.mxu0 0.0
    %2725 = vmatprep.subr.mxu0 0.0
    %2726 = vmatpush1.msra.mxu0 0.0
    %2727 = vmatprep.subr.mxu0 0.0
    %2728 = vmatpush1.msra.mxu0 0.0
    %2729 = vmatprep.subr.mxu0 0.0
    %2730 = vmatpush1.msra.mxu0 0.0
    %2731 = vmatprep.subr.mxu0 0.0
    %2732 = vmatpush1.msra.mxu0 0.0
    %2733 = vmatprep.subr.mxu0 0.0
    %2734 = vmatpush1.msra.mxu0 0.0
    %2735 = vmatprep.subr.mxu0 0.0
    %2736 = vmatpush1.msra.mxu0 0.0
    %2737 = vmatprep.subr.mxu0 0.0
    %2738 = vmatpush1.msra.mxu0 0.0
    %2739 = vmatprep.subr.mxu0 0.0
    %2740 = vmatpush1.msra.mxu0 0.0
    %2741 = vmatprep.subr.mxu0 0.0
    %2742 = vmatpush1.msra.mxu0 0.0
    %2743 = vmatprep.mubr.f32.mxu0 0.0
    %2744 = vmatmul.mubr.f32.gmra.mrb[0].mxu0 %v2194
    %v2745 = vpop.f32.mrb[0].mxu0
    %v2746 = vadd.f32 0.0, %v2745
    %v2747 = vpop.f32.mrb[0].mxu0
    %2748 = vmatprep.mubr.f32.mxu0 0.0
    %2749 = vmatmul.mubr.f32.gmra.mrb[0].mxu0 %v2197
    %v2750 = vpop.f32.mrb[0].mxu0
    %v2751 = vadd.f32 0.0, %v2750
    %v2752 = vpop.f32.mrb[0].mxu0
    %2753 = vmatprep.mubr.f32.mxu0 0.0
    %2754 = vmatmul.mubr.f32.gmra.mrb[0].mxu0 %v2200
    %v2755 = vpop.f32.mrb[0].mxu0
    %v2756 = vadd.f32 0.0, %v2755
    %v2757 = vpop.f32.mrb[0].mxu0
    %2758 = vmatprep.mubr.f32.mxu0 0.0
    %2759 = vmatmul.mubr.f32.gmra.mrb[0].mxu0 %v2203
    %v2760 = vpop.f32.mrb[0].mxu0
    %v2761 = vadd.f32 0.0, %v2760
    %v2762 = vpop.f32.mrb[0].mxu0
    %2763 = vmatprep.mubr.f32.mxu0 0.0
    %2764 = vmatmul.mubr.f32.gmra.mrb[0].mxu0 %v2206
    %v2765 = vpop.f32.mrb[0].mxu0
    %v2766 = vadd.f32 0.0, %v2765
    %v2767 = vpop.f32.mrb[0].mxu0
    %2768 = vmatprep.mubr.f32.mxu0 0.0
    %2769 = vmatmul.mubr.f32.gmra.mrb[0].mxu0 %v2209
    %v2770 = vpop.f32.mrb[0].mxu0
    %v2771 = vadd.f32 0.0, %v2770
    %v2772 = vpop.f32.mrb[0].mxu0
    %2773 = vmatprep.mubr.f32.mxu0 0.0
    %2774 = vmatmul.mubr.f32.gmra.mrb[0].mxu0 %v2212
    %v2775 = vpop.f32.mrb[0].mxu0
    %v2776 = vadd.f32 0.0, %v2775
    %v2777 = vpop.f32.mrb[0].mxu0
    %2778 = vmatprep.mubr.f32.mxu0 0.0
    %2779 = vmatmul.mubr.f32.gmra.mrb[0].mxu0 %v2215
    %v2780 = vpop.f32.mrb[0].mxu0
    %v2781 = vadd.f32 0.0, %v2780
    %v2782 = vpop.f32.mrb[0].mxu0
    %2783 = vmatprep.mubr.f32.mxu0 0.0
    %2784 = vmatmul.mubr.f32.gmra.mrb[0].mxu0 %v2218
    %v2785 = vpop.f32.mrb[0].mxu0
    %v2786 = vadd.f32 0.0, %v2785
    %v2787 = vpop.f32.mrb[0].mxu0
    %2788 = vmatprep.mubr.f32.mxu0 0.0
    %2789 = vmatmul.mubr.f32.gmra.mrb[0].mxu0 %v2221
    %v2790 = vpop.f32.mrb[0].mxu0
    %v2791 = vadd.f32 0.0, %v2790
    %v2792 = vpop.f32.mrb[0].mxu0
    %2793 = vmatprep.mubr.f32.mxu0 0.0
    %2794 = vmatmul.mubr.f32.gmra.mrb[0].mxu0 %v2224
    %v2795 = vpop.f32.mrb[0].mxu0
    %v2796 = vadd.f32 0.0, %v2795
    %v2797 = vpop.f32.mrb[0].mxu0
    %2798 = vmatprep.mubr.f32.mxu0 0.0
    %2799 = vmatmul.mubr.f32.gmra.mrb[0].mxu0 %v2227
    %v2800 = vpop.f32.mrb[0].mxu0
    %v2801 = vadd.f32 0.0, %v2800
    %v2802 = vpop.f32.mrb[0].mxu0
    %2803 = vdwg.mxu0
    %v2804 = vld [vmem:[%s904] sm:$0xff]
    %v2805 = vld [vmem:[%s904 + $0x8] sm:$0xff]
    %v2806 = vld [vmem:[%s904 + $0x10] sm:$0xff]
    %v2807 = vld [vmem:[%s904 + $0x18] sm:$0xff]
    %v2808 = vld [vmem:[%s904 + $0x20] sm:$0xff]
    %v2809 = vld [vmem:[%s904 + $0x28] sm:$0xff]
    %v2810 = vld [vmem:[%s904 + $0x30] sm:$0xff]
    %v2811 = vld [vmem:[%s904 + $0x38] sm:$0xff]
    %v2812 = vld [vmem:[%s904 + $0x40] sm:$0xff]
    %v2813 = vld [vmem:[%s904 + $0x48] sm:$0xff]
    %v2814 = vld [vmem:[%s904 + $0x50] sm:$0xff]
    %v2815 = vld [vmem:[%s904 + $0x58] sm:$0xff]
    %v2816 = vadd.f32 %v2804, %v2746
    %v2817 = vadd.f32 %v2805, %v2751
    %v2818 = vadd.f32 %v2806, %v2756
    %v2819 = vadd.f32 %v2807, %v2761
    %v2820 = vxor.u32 %v2816, 2147483648
    %v2821 = vxor.u32 %v2817, 2147483648
    %v2822 = vxor.u32 %v2818, 2147483648
    %v2823 = vxor.u32 %v2819, 2147483648
    %v2824 = vmul.f32 %v2820, 1.442695
    %v2825 = vpow.pop %v2824
    %v2826 = vmul.f32 %v2821, 1.442695
    %v2827 = vpow.pop %v2826
    %v2828 = vmul.f32 %v2822, 1.442695
    %v2829 = vpow.pop %v2828
    %v2830 = vmul.f32 %v2823, 1.442695
    %v2831 = vpow.pop %v2830
    %v2832 = vadd.f32 %v2825, 1.0
    %v2833 = vadd.f32 %v2827, 1.0
    %v2834 = vadd.f32 %v2829, 1.0
    %v2835 = vadd.f32 %v2831, 1.0
    %v2836 = vrcp.pop %v2832
    %v2837 = vmul.f32 1.0, %v2836
    %v2838 = vrcp.pop %v2833
    %v2839 = vmul.f32 1.0, %v2838
    %v2840 = vrcp.pop %v2834
    %v2841 = vmul.f32 1.0, %v2840
    %v2842 = vrcp.pop %v2835
    %v2843 = vmul.f32 1.0, %v2842
    %v2844 = vadd.f32 %v2808, %v2766
    %v2845 = vadd.f32 %v2809, %v2771
    %v2846 = vadd.f32 %v2810, %v2776
    %v2847 = vadd.f32 %v2811, %v2781
    %v2848 = vxor.u32 %v2844, 2147483648
    %v2849 = vxor.u32 %v2845, 2147483648
    %v2850 = vxor.u32 %v2846, 2147483648
    %v2851 = vxor.u32 %v2847, 2147483648
    %v2852 = vmul.f32 %v2848, 1.442695
    %v2853 = vpow.pop %v2852
    %v2854 = vmul.f32 %v2849, 1.442695
    %v2855 = vpow.pop %v2854
    %v2856 = vmul.f32 %v2850, 1.442695
    %v2857 = vpow.pop %v2856
    %v2858 = vmul.f32 %v2851, 1.442695
    %v2859 = vpow.pop %v2858
    %v2860 = vadd.f32 %v2853, 1.0
    %v2861 = vadd.f32 %v2855, 1.0
    %v2862 = vadd.f32 %v2857, 1.0
    %v2863 = vadd.f32 %v2859, 1.0
    %v2864 = vrcp.pop %v2860
    %v2865 = vmul.f32 1.0, %v2864
    %v2866 = vrcp.pop %v2861
    %v2867 = vmul.f32 1.0, %v2866
    %v2868 = vrcp.pop %v2862
    %v2869 = vmul.f32 1.0, %v2868
    %v2870 = vrcp.pop %v2863
    %v2871 = vmul.f32 1.0, %v2870
    %v2872 = vadd.f32 %v2786, %v2176
    %v2873 = vadd.f32 %v2791, %v2181
    %v2874 = vadd.f32 %v2796, %v2186
    %v2875 = vadd.f32 %v2801, %v2191
    %v2876 = vmul.f32 %v2837, %v2872
    %v2877 = vmul.f32 %v2839, %v2873
    %v2878 = vmul.f32 %v2841, %v2874
    %v2879 = vmul.f32 %v2843, %v2875
    %v2880 = vadd.f32 %v2812, %v2876
    %v2881 = vadd.f32 %v2813, %v2877
    %v2882 = vadd.f32 %v2814, %v2878
    %v2883 = vadd.f32 %v2815, %v2879
    %v2884 = vtanh.pop %v2880
    %v2885 = vtanh.pop %v2881
    %v2886 = vtanh.pop %v2882
    %v2887 = vtanh.pop %v2883
    %v2888 = vsub.f32 1.0, %v2865
    %v2889 = vsub.f32 1.0, %v2867
    %v2890 = vsub.f32 1.0, %v2869
    %v2891 = vsub.f32 1.0, %v2871
    %v2892 = vmul.f32 %v2888, %v2884
    %v2893 = vmul.f32 %v2889, %v2885
    %v2894 = vmul.f32 %v2890, %v2886
    %v2895 = vmul.f32 %v2891, %v2887
    %v2896 = vmul.f32 %v2865, %v2675
    %v2897 = vmul.f32 %v2867, %v2676
    %v2898 = vmul.f32 %v2869, %v2677
    %v2899 = vmul.f32 %v2871, %v2678
    %v2900 = vadd.f32 %v2892, %v2896
    %v2901 = vadd.f32 %v2893, %v2897
    %v2902 = vadd.f32 %v2894, %v2898
    %v2903 = vadd.f32 %v2895, %v2899
    %2904 = vmatprep.subr.mxu0 0.0
    %2905 = vmatpush1.msra.mxu0 %v2900
    %2906 = vmatprep.subr.mxu0 0.0
    %2907 = vmatpush1.msra.mxu0 %v2901
    %2908 = vmatprep.subr.mxu0 0.0
    %2909 = vmatpush1.msra.mxu0 %v2902
    %2910 = vmatprep.subr.mxu0 0.0
    %2911 = vmatpush1.msra.mxu0 %v2903
    %2912 = vmatprep.subr.mxu0 0.0
    %2913 = vmatpush1.msra.mxu0 0.0
    %2914 = vmatprep.subr.mxu0 0.0
    %2915 = vmatpush1.msra.mxu0 0.0
    %2916 = vmatprep.subr.mxu0 0.0
    %2917 = vmatpush1.msra.mxu0 0.0
    %2918 = vmatprep.subr.mxu0 0.0
    %2919 = vmatpush1.msra.mxu0 0.0
    %2920 = vmatprep.subr.mxu0 0.0
    %2921 = vmatpush1.msra.mxu0 0.0
    %2922 = vmatprep.subr.mxu0 0.0
    %2923 = vmatpush1.msra.mxu0 0.0
    %2924 = vmatprep.subr.mxu0 0.0
    %2925 = vmatpush1.msra.mxu0 0.0
    %2926 = vmatprep.subr.mxu0 0.0
    %2927 = vmatpush1.msra.mxu0 0.0
    %2928 = vmatprep.subr.mxu0 0.0
    %2929 = vmatpush1.msra.mxu0 0.0
    %2930 = vmatprep.subr.mxu0 0.0
    %2931 = vmatpush1.msra.mxu0 0.0
    %2932 = vmatprep.subr.mxu0 0.0
    %2933 = vmatpush1.msra.mxu0 0.0
    %2934 = vmatprep.subr.mxu0 0.0
    %2935 = vmatpush1.msra.mxu0 0.0
    %2936 = vmatprep.subr.mxu0 0.0
    %2937 = vmatpush1.msra.mxu0 0.0
    %2938 = vmatprep.subr.mxu0 0.0
    %2939 = vmatpush1.msra.mxu0 0.0
    %2940 = vmatprep.subr.mxu0 0.0
    %2941 = vmatpush1.msra.mxu0 0.0
    %2942 = vmatprep.subr.mxu0 0.0
    %2943 = vmatpush1.msra.mxu0 0.0
    %2944 = vmatprep.subr.mxu0 0.0
    %2945 = vmatpush1.msra.mxu0 0.0
    %2946 = vmatprep.subr.mxu0 0.0
    %2947 = vmatpush1.msra.mxu0 0.0
    %2948 = vmatprep.subr.mxu0 0.0
    %2949 = vmatpush1.msra.mxu0 0.0
    %2950 = vmatprep.subr.mxu0 0.0
    %2951 = vmatpush1.msra.mxu0 0.0
    %2952 = vmatprep.subr.mxu0 0.0
    %2953 = vmatpush1.msra.mxu0 0.0
    %2954 = vmatprep.subr.mxu0 0.0
    %2955 = vmatpush1.msra.mxu0 0.0
    %2956 = vmatprep.subr.mxu0 0.0
    %2957 = vmatpush1.msra.mxu0 0.0
    %2958 = vmatprep.subr.mxu0 0.0
    %2959 = vmatpush1.msra.mxu0 0.0
    %2960 = vmatprep.subr.mxu0 0.0
    %2961 = vmatpush1.msra.mxu0 0.0
    %2962 = vmatprep.subr.mxu0 0.0
    %2963 = vmatpush1.msra.mxu0 0.0
    %2964 = vmatprep.subr.mxu0 0.0
    %2965 = vmatpush1.msra.mxu0 0.0
    %2966 = vmatprep.subr.mxu0 0.0
    %2967 = vmatpush1.msra.mxu0 0.0
    %2968 = vmatprep.mubr.f32.mxu0 0.0
    %2969 = vmatmul.mubr.f32.gmra.mrb[0].mxu0 %v2194
    %v2970 = vpop.f32.mrb[0].mxu0
    %v2971 = vadd.f32 0.0, %v2970
    %v2972 = vpop.f32.mrb[0].mxu0
    %2973 = vmatprep.mubr.f32.mxu0 0.0
    %2974 = vmatmul.mubr.f32.gmra.mrb[0].mxu0 %v2197
    %v2975 = vpop.f32.mrb[0].mxu0
    %v2976 = vadd.f32 0.0, %v2975
    %v2977 = vpop.f32.mrb[0].mxu0
    %2978 = vmatprep.mubr.f32.mxu0 0.0
    %2979 = vmatmul.mubr.f32.gmra.mrb[0].mxu0 %v2200
    %v2980 = vpop.f32.mrb[0].mxu0
    %v2981 = vadd.f32 0.0, %v2980
    %v2982 = vpop.f32.mrb[0].mxu0
    %2983 = vmatprep.mubr.f32.mxu0 0.0
    %2984 = vmatmul.mubr.f32.gmra.mrb[0].mxu0 %v2203
    %v2985 = vpop.f32.mrb[0].mxu0
    %v2986 = vadd.f32 0.0, %v2985
    %v2987 = vpop.f32.mrb[0].mxu0
    %2988 = vmatprep.mubr.f32.mxu0 0.0
    %2989 = vmatmul.mubr.f32.gmra.mrb[0].mxu0 %v2206
    %v2990 = vpop.f32.mrb[0].mxu0
    %v2991 = vadd.f32 0.0, %v2990
    %v2992 = vpop.f32.mrb[0].mxu0
    %2993 = vmatprep.mubr.f32.mxu0 0.0
    %2994 = vmatmul.mubr.f32.gmra.mrb[0].mxu0 %v2209
    %v2995 = vpop.f32.mrb[0].mxu0
    %v2996 = vadd.f32 0.0, %v2995
    %v2997 = vpop.f32.mrb[0].mxu0
    %2998 = vmatprep.mubr.f32.mxu0 0.0
    %2999 = vmatmul.mubr.f32.gmra.mrb[0].mxu0 %v2212
    %v3000 = vpop.f32.mrb[0].mxu0
    %v3001 = vadd.f32 0.0, %v3000
    %v3002 = vpop.f32.mrb[0].mxu0
    %3003 = vmatprep.mubr.f32.mxu0 0.0
    %3004 = vmatmul.mubr.f32.gmra.mrb[0].mxu0 %v2215
    %v3005 = vpop.f32.mrb[0].mxu0
    %v3006 = vadd.f32 0.0, %v3005
    %v3007 = vpop.f32.mrb[0].mxu0
    %3008 = vmatprep.mubr.f32.mxu0 0.0
    %3009 = vmatmul.mubr.f32.gmra.mrb[0].mxu0 %v2218
    %v3010 = vpop.f32.mrb[0].mxu0
    %v3011 = vadd.f32 0.0, %v3010
    %v3012 = vpop.f32.mrb[0].mxu0
    %3013 = vmatprep.mubr.f32.mxu0 0.0
    %3014 = vmatmul.mubr.f32.gmra.mrb[0].mxu0 %v2221
    %v3015 = vpop.f32.mrb[0].mxu0
    %v3016 = vadd.f32 0.0, %v3015
    %v3017 = vpop.f32.mrb[0].mxu0
    %3018 = vmatprep.mubr.f32.mxu0 0.0
    %3019 = vmatmul.mubr.f32.gmra.mrb[0].mxu0 %v2224
    %v3020 = vpop.f32.mrb[0].mxu0
    %v3021 = vadd.f32 0.0, %v3020
    %v3022 = vpop.f32.mrb[0].mxu0
    %3023 = vmatprep.mubr.f32.mxu0 0.0
    %3024 = vmatmul.mubr.f32.gmra.mrb[0].mxu0 %v2227
    %v3025 = vpop.f32.mrb[0].mxu0
    %v3026 = vadd.f32 0.0, %v3025
    %v3027 = vpop.f32.mrb[0].mxu0
    %3028 = vdwg.mxu0
    %v3029 = vld [vmem:[%s1152] sm:$0xff]
    %v3030 = vld [vmem:[%s1152 + $0x8] sm:$0xff]
    %v3031 = vld [vmem:[%s1152 + $0x10] sm:$0xff]
    %v3032 = vld [vmem:[%s1152 + $0x18] sm:$0xff]
    %v3033 = vld [vmem:[%s1152 + $0x20] sm:$0xff]
    %v3034 = vld [vmem:[%s1152 + $0x28] sm:$0xff]
    %v3035 = vld [vmem:[%s1152 + $0x30] sm:$0xff]
    %v3036 = vld [vmem:[%s1152 + $0x38] sm:$0xff]
    %v3037 = vld [vmem:[%s1152 + $0x40] sm:$0xff]
    %v3038 = vld [vmem:[%s1152 + $0x48] sm:$0xff]
    %v3039 = vld [vmem:[%s1152 + $0x50] sm:$0xff]
    %v3040 = vld [vmem:[%s1152 + $0x58] sm:$0xff]
    %v3041 = vadd.f32 %v3029, %v2971
    %v3042 = vadd.f32 %v3030, %v2976
    %v3043 = vadd.f32 %v3031, %v2981
    %v3044 = vadd.f32 %v3032, %v2986
    %v3045 = vxor.u32 %v3041, 2147483648
    %v3046 = vxor.u32 %v3042, 2147483648
    %v3047 = vxor.u32 %v3043, 2147483648
    %v3048 = vxor.u32 %v3044, 2147483648
    %v3049 = vmul.f32 %v3045, 1.442695
    %v3050 = vpow.pop %v3049
    %v3051 = vmul.f32 %v3046, 1.442695
    %v3052 = vpow.pop %v3051
    %v3053 = vmul.f32 %v3047, 1.442695
    %v3054 = vpow.pop %v3053
    %v3055 = vmul.f32 %v3048, 1.442695
    %v3056 = vpow.pop %v3055
    %v3057 = vadd.f32 %v3050, 1.0
    %v3058 = vadd.f32 %v3052, 1.0
    %v3059 = vadd.f32 %v3054, 1.0
    %v3060 = vadd.f32 %v3056, 1.0
    %v3061 = vrcp.pop %v3057
    %v3062 = vmul.f32 1.0, %v3061
    %v3063 = vrcp.pop %v3058
    %v3064 = vmul.f32 1.0, %v3063
    %v3065 = vrcp.pop %v3059
    %v3066 = vmul.f32 1.0, %v3065
    %v3067 = vrcp.pop %v3060
    %v3068 = vmul.f32 1.0, %v3067
    %v3069 = vadd.f32 %v3033, %v2991
    %v3070 = vadd.f32 %v3034, %v2996
    %v3071 = vadd.f32 %v3035, %v3001
    %v3072 = vadd.f32 %v3036, %v3006
    %v3073 = vxor.u32 %v3069, 2147483648
    %v3074 = vxor.u32 %v3070, 2147483648
    %v3075 = vxor.u32 %v3071, 2147483648
    %v3076 = vxor.u32 %v3072, 2147483648
    %v3077 = vmul.f32 %v3073, 1.442695
    %v3078 = vpow.pop %v3077
    %v3079 = vmul.f32 %v3074, 1.442695
    %v3080 = vpow.pop %v3079
    %v3081 = vmul.f32 %v3075, 1.442695
    %v3082 = vpow.pop %v3081
    %v3083 = vmul.f32 %v3076, 1.442695
    %v3084 = vpow.pop %v3083
    %v3085 = vadd.f32 %v3078, 1.0
    %v3086 = vadd.f32 %v3080, 1.0
    %v3087 = vadd.f32 %v3082, 1.0
    %v3088 = vadd.f32 %v3084, 1.0
    %v3089 = vrcp.pop %v3085
    %v3090 = vmul.f32 1.0, %v3089
    %v3091 = vrcp.pop %v3086
    %v3092 = vmul.f32 1.0, %v3091
    %v3093 = vrcp.pop %v3087
    %v3094 = vmul.f32 1.0, %v3093
    %v3095 = vrcp.pop %v3088
    %v3096 = vmul.f32 1.0, %v3095
    %v3097 = vadd.f32 %v3011, %v2176
    %v3098 = vadd.f32 %v3016, %v2181
    %v3099 = vadd.f32 %v3021, %v2186
    %v3100 = vadd.f32 %v3026, %v2191
    %v3101 = vmul.f32 %v3062, %v3097
    %v3102 = vmul.f32 %v3064, %v3098
    %v3103 = vmul.f32 %v3066, %v3099
    %v3104 = vmul.f32 %v3068, %v3100
    %v3105 = vadd.f32 %v3037, %v3101
    %v3106 = vadd.f32 %v3038, %v3102
    %v3107 = vadd.f32 %v3039, %v3103
    %v3108 = vadd.f32 %v3040, %v3104
    %v3109 = vtanh.pop %v3105
    %v3110 = vtanh.pop %v3106
    %v3111 = vtanh.pop %v3107
    %v3112 = vtanh.pop %v3108
    %v3113 = vsub.f32 1.0, %v3090
    %v3114 = vsub.f32 1.0, %v3092
    %v3115 = vsub.f32 1.0, %v3094
    %v3116 = vsub.f32 1.0, %v3096
    %v3117 = vmul.f32 %v3113, %v3109
    %v3118 = vmul.f32 %v3114, %v3110
    %v3119 = vmul.f32 %v3115, %v3111
    %v3120 = vmul.f32 %v3116, %v3112
    %v3121 = vmul.f32 %v3090, %v2900
    %v3122 = vmul.f32 %v3092, %v2901
    %v3123 = vmul.f32 %v3094, %v2902
    %v3124 = vmul.f32 %v3096, %v2903
    %v3125 = vadd.f32 %v3117, %v3121
    %v3126 = vadd.f32 %v3118, %v3122
    %v3127 = vadd.f32 %v3119, %v3123
    %v3128 = vadd.f32 %v3120, %v3124
    %3129 = vmatprep.subr.mxu0 0.0
    %3130 = vmatpush1.msra.mxu0 %v3125
    %3131 = vmatprep.subr.mxu0 0.0
    %3132 = vmatpush1.msra.mxu0 %v3126
    %3133 = vmatprep.subr.mxu0 0.0
    %3134 = vmatpush1.msra.mxu0 %v3127
    %3135 = vmatprep.subr.mxu0 0.0
    %3136 = vmatpush1.msra.mxu0 %v3128
    %3137 = vmatprep.subr.mxu0 0.0
    %3138 = vmatpush1.msra.mxu0 0.0
    %3139 = vmatprep.subr.mxu0 0.0
    %3140 = vmatpush1.msra.mxu0 0.0
    %3141 = vmatprep.subr.mxu0 0.0
    %3142 = vmatpush1.msra.mxu0 0.0
    %3143 = vmatprep.subr.mxu0 0.0
    %3144 = vmatpush1.msra.mxu0 0.0
    %3145 = vmatprep.subr.mxu0 0.0
    %3146 = vmatpush1.msra.mxu0 0.0
    %3147 = vmatprep.subr.mxu0 0.0
    %3148 = vmatpush1.msra.mxu0 0.0
    %3149 = vmatprep.subr.mxu0 0.0
    %3150 = vmatpush1.msra.mxu0 0.0
    %3151 = vmatprep.subr.mxu0 0.0
    %3152 = vmatpush1.msra.mxu0 0.0
    %3153 = vmatprep.subr.mxu0 0.0
    %3154 = vmatpush1.msra.mxu0 0.0
    %3155 = vmatprep.subr.mxu0 0.0
    %3156 = vmatpush1.msra.mxu0 0.0
    %3157 = vmatprep.subr.mxu0 0.0
    %3158 = vmatpush1.msra.mxu0 0.0
    %3159 = vmatprep.subr.mxu0 0.0
    %3160 = vmatpush1.msra.mxu0 0.0
    %3161 = vmatprep.subr.mxu0 0.0
    %3162 = vmatpush1.msra.mxu0 0.0
    %3163 = vmatprep.subr.mxu0 0.0
    %3164 = vmatpush1.msra.mxu0 0.0
    %3165 = vmatprep.subr.mxu0 0.0
    %3166 = vmatpush1.msra.mxu0 0.0
    %3167 = vmatprep.subr.mxu0 0.0
    %3168 = vmatpush1.msra.mxu0 0.0
    %3169 = vmatprep.subr.mxu0 0.0
    %3170 = vmatpush1.msra.mxu0 0.0
    %3171 = vmatprep.subr.mxu0 0.0
    %3172 = vmatpush1.msra.mxu0 0.0
    %3173 = vmatprep.subr.mxu0 0.0
    %3174 = vmatpush1.msra.mxu0 0.0
    %3175 = vmatprep.subr.mxu0 0.0
    %3176 = vmatpush1.msra.mxu0 0.0
    %3177 = vmatprep.subr.mxu0 0.0
    %3178 = vmatpush1.msra.mxu0 0.0
    %3179 = vmatprep.subr.mxu0 0.0
    %3180 = vmatpush1.msra.mxu0 0.0
    %3181 = vmatprep.subr.mxu0 0.0
    %3182 = vmatpush1.msra.mxu0 0.0
    %3183 = vmatprep.subr.mxu0 0.0
    %3184 = vmatpush1.msra.mxu0 0.0
    %3185 = vmatprep.subr.mxu0 0.0
    %3186 = vmatpush1.msra.mxu0 0.0
    %3187 = vmatprep.subr.mxu0 0.0
    %3188 = vmatpush1.msra.mxu0 0.0
    %3189 = vmatprep.subr.mxu0 0.0
    %3190 = vmatpush1.msra.mxu0 0.0
    %3191 = vmatprep.subr.mxu0 0.0
    %3192 = vmatpush1.msra.mxu0 0.0
    %3193 = vmatprep.mubr.f32.mxu0 0.0
    %3194 = vmatmul.mubr.f32.gmra.mrb[0].mxu0 %v2194
    %v3195 = vpop.f32.mrb[0].mxu0
    %v3196 = vadd.f32 0.0, %v3195
    %v3197 = vpop.f32.mrb[0].mxu0
    %3198 = vmatprep.mubr.f32.mxu0 0.0
    %3199 = vmatmul.mubr.f32.gmra.mrb[0].mxu0 %v2197
    %v3200 = vpop.f32.mrb[0].mxu0
    %v3201 = vadd.f32 0.0, %v3200
    %v3202 = vpop.f32.mrb[0].mxu0
    %3203 = vmatprep.mubr.f32.mxu0 0.0
    %3204 = vmatmul.mubr.f32.gmra.mrb[0].mxu0 %v2200
    %v3205 = vpop.f32.mrb[0].mxu0
    %v3206 = vadd.f32 0.0, %v3205
    %v3207 = vpop.f32.mrb[0].mxu0
    %3208 = vmatprep.mubr.f32.mxu0 0.0
    %3209 = vmatmul.mubr.f32.gmra.mrb[0].mxu0 %v2203
    %v3210 = vpop.f32.mrb[0].mxu0
    %v3211 = vadd.f32 0.0, %v3210
    %v3212 = vpop.f32.mrb[0].mxu0
    %3213 = vmatprep.mubr.f32.mxu0 0.0
    %3214 = vmatmul.mubr.f32.gmra.mrb[0].mxu0 %v2206
    %v3215 = vpop.f32.mrb[0].mxu0
    %v3216 = vadd.f32 0.0, %v3215
    %v3217 = vpop.f32.mrb[0].mxu0
    %3218 = vmatprep.mubr.f32.mxu0 0.0
    %3219 = vmatmul.mubr.f32.gmra.mrb[0].mxu0 %v2209
    %v3220 = vpop.f32.mrb[0].mxu0
    %v3221 = vadd.f32 0.0, %v3220
    %v3222 = vpop.f32.mrb[0].mxu0
    %3223 = vmatprep.mubr.f32.mxu0 0.0
    %3224 = vmatmul.mubr.f32.gmra.mrb[0].mxu0 %v2212
    %v3225 = vpop.f32.mrb[0].mxu0
    %v3226 = vadd.f32 0.0, %v3225
    %v3227 = vpop.f32.mrb[0].mxu0
    %3228 = vmatprep.mubr.f32.mxu0 0.0
    %3229 = vmatmul.mubr.f32.gmra.mrb[0].mxu0 %v2215
    %v3230 = vpop.f32.mrb[0].mxu0
    %v3231 = vadd.f32 0.0, %v3230
    %v3232 = vpop.f32.mrb[0].mxu0
    %3233 = vmatprep.mubr.f32.mxu0 0.0
    %3234 = vmatmul.mubr.f32.gmra.mrb[0].mxu0 %v2218
    %v3235 = vpop.f32.mrb[0].mxu0
    %v3236 = vadd.f32 0.0, %v3235
    %v3237 = vpop.f32.mrb[0].mxu0
    %3238 = vmatprep.mubr.f32.mxu0 0.0
    %3239 = vmatmul.mubr.f32.gmra.mrb[0].mxu0 %v2221
    %v3240 = vpop.f32.mrb[0].mxu0
    %v3241 = vadd.f32 0.0, %v3240
    %v3242 = vpop.f32.mrb[0].mxu0
    %3243 = vmatprep.mubr.f32.mxu0 0.0
    %3244 = vmatmul.mubr.f32.gmra.mrb[0].mxu0 %v2224
    %v3245 = vpop.f32.mrb[0].mxu0
    %v3246 = vadd.f32 0.0, %v3245
    %v3247 = vpop.f32.mrb[0].mxu0
    %3248 = vmatprep.mubr.f32.mxu0 0.0
    %3249 = vmatmul.mubr.f32.gmra.mrb[0].mxu0 %v2227
    %v3250 = vpop.f32.mrb[0].mxu0
    %v3251 = vadd.f32 0.0, %v3250
    %v3252 = vpop.f32.mrb[0].mxu0
    %3253 = vdwg.mxu0
    %v3254 = vld [vmem:[%s1400] sm:$0xff]
    %v3255 = vld [vmem:[%s1400 + $0x8] sm:$0xff]
    %v3256 = vld [vmem:[%s1400 + $0x10] sm:$0xff]
    %v3257 = vld [vmem:[%s1400 + $0x18] sm:$0xff]
    %v3258 = vld [vmem:[%s1400 + $0x20] sm:$0xff]
    %v3259 = vld [vmem:[%s1400 + $0x28] sm:$0xff]
    %v3260 = vld [vmem:[%s1400 + $0x30] sm:$0xff]
    %v3261 = vld [vmem:[%s1400 + $0x38] sm:$0xff]
    %v3262 = vld [vmem:[%s1400 + $0x40] sm:$0xff]
    %v3263 = vld [vmem:[%s1400 + $0x48] sm:$0xff]
    %v3264 = vld [vmem:[%s1400 + $0x50] sm:$0xff]
    %v3265 = vld [vmem:[%s1400 + $0x58] sm:$0xff]
    %v3266 = vadd.f32 %v3254, %v3196
    %v3267 = vadd.f32 %v3255, %v3201
    %v3268 = vadd.f32 %v3256, %v3206
    %v3269 = vadd.f32 %v3257, %v3211
    %v3270 = vxor.u32 %v3266, 2147483648
    %v3271 = vxor.u32 %v3267, 2147483648
    %v3272 = vxor.u32 %v3268, 2147483648
    %v3273 = vxor.u32 %v3269, 2147483648
    %v3274 = vmul.f32 %v3270, 1.442695
    %v3275 = vpow.pop %v3274
    %v3276 = vmul.f32 %v3271, 1.442695
    %v3277 = vpow.pop %v3276
    %v3278 = vmul.f32 %v3272, 1.442695
    %v3279 = vpow.pop %v3278
    %v3280 = vmul.f32 %v3273, 1.442695
    %v3281 = vpow.pop %v3280
    %v3282 = vadd.f32 %v3275, 1.0
    %v3283 = vadd.f32 %v3277, 1.0
    %v3284 = vadd.f32 %v3279, 1.0
    %v3285 = vadd.f32 %v3281, 1.0
    %v3286 = vrcp.pop %v3282
    %v3287 = vmul.f32 1.0, %v3286
    %v3288 = vrcp.pop %v3283
    %v3289 = vmul.f32 1.0, %v3288
    %v3290 = vrcp.pop %v3284
    %v3291 = vmul.f32 1.0, %v3290
    %v3292 = vrcp.pop %v3285
    %v3293 = vmul.f32 1.0, %v3292
    %v3294 = vadd.f32 %v3258, %v3216
    %v3295 = vadd.f32 %v3259, %v3221
    %v3296 = vadd.f32 %v3260, %v3226
    %v3297 = vadd.f32 %v3261, %v3231
    %v3298 = vxor.u32 %v3294, 2147483648
    %v3299 = vxor.u32 %v3295, 2147483648
    %v3300 = vxor.u32 %v3296, 2147483648
    %v3301 = vxor.u32 %v3297, 2147483648
    %v3302 = vmul.f32 %v3298, 1.442695
    %v3303 = vpow.pop %v3302
    %v3304 = vmul.f32 %v3299, 1.442695
    %v3305 = vpow.pop %v3304
    %v3306 = vmul.f32 %v3300, 1.442695
    %v3307 = vpow.pop %v3306
    %v3308 = vmul.f32 %v3301, 1.442695
    %v3309 = vpow.pop %v3308
    %v3310 = vadd.f32 %v3303, 1.0
    %v3311 = vadd.f32 %v3305, 1.0
    %v3312 = vadd.f32 %v3307, 1.0
    %v3313 = vadd.f32 %v3309, 1.0
    %v3314 = vrcp.pop %v3310
    %v3315 = vmul.f32 1.0, %v3314
    %v3316 = vrcp.pop %v3311
    %v3317 = vmul.f32 1.0, %v3316
    %v3318 = vrcp.pop %v3312
    %v3319 = vmul.f32 1.0, %v3318
    %v3320 = vrcp.pop %v3313
    %v3321 = vmul.f32 1.0, %v3320
    %v3322 = vadd.f32 %v3236, %v2176
    %v3323 = vadd.f32 %v3241, %v2181
    %v3324 = vadd.f32 %v3246, %v2186
    %v3325 = vadd.f32 %v3251, %v2191
    %v3326 = vmul.f32 %v3287, %v3322
    %v3327 = vmul.f32 %v3289, %v3323
    %v3328 = vmul.f32 %v3291, %v3324
    %v3329 = vmul.f32 %v3293, %v3325
    %v3330 = vadd.f32 %v3262, %v3326
    %v3331 = vadd.f32 %v3263, %v3327
    %v3332 = vadd.f32 %v3264, %v3328
    %v3333 = vadd.f32 %v3265, %v3329
    %v3334 = vtanh.pop %v3330
    %v3335 = vtanh.pop %v3331
    %v3336 = vtanh.pop %v3332
    %v3337 = vtanh.pop %v3333
    %v3338 = vsub.f32 1.0, %v3315
    %v3339 = vsub.f32 1.0, %v3317
    %v3340 = vsub.f32 1.0, %v3319
    %v3341 = vsub.f32 1.0, %v3321
    %v3342 = vmul.f32 %v3338, %v3334
    %v3343 = vmul.f32 %v3339, %v3335
    %v3344 = vmul.f32 %v3340, %v3336
    %v3345 = vmul.f32 %v3341, %v3337
    %v3346 = vmul.f32 %v3315, %v3125
    %v3347 = vmul.f32 %v3317, %v3126
    %v3348 = vmul.f32 %v3319, %v3127
    %v3349 = vmul.f32 %v3321, %v3128
    %v3350 = vadd.f32 %v3342, %v3346
    %v3351 = vadd.f32 %v3343, %v3347
    %v3352 = vadd.f32 %v3344, %v3348
    %v3353 = vadd.f32 %v3345, %v3349
    %3354 = vmatprep.subr.mxu0 0.0
    %3355 = vmatpush1.msra.mxu0 %v3350
    %3356 = vmatprep.subr.mxu0 0.0
    %3357 = vmatpush1.msra.mxu0 %v3351
    %3358 = vmatprep.subr.mxu0 0.0
    %3359 = vmatpush1.msra.mxu0 %v3352
    %3360 = vmatprep.subr.mxu0 0.0
    %3361 = vmatpush1.msra.mxu0 %v3353
    %3362 = vmatprep.subr.mxu0 0.0
    %3363 = vmatpush1.msra.mxu0 0.0
    %3364 = vmatprep.subr.mxu0 0.0
    %3365 = vmatpush1.msra.mxu0 0.0
    %3366 = vmatprep.subr.mxu0 0.0
    %3367 = vmatpush1.msra.mxu0 0.0
    %3368 = vmatprep.subr.mxu0 0.0
    %3369 = vmatpush1.msra.mxu0 0.0
    %3370 = vmatprep.subr.mxu0 0.0
    %3371 = vmatpush1.msra.mxu0 0.0
    %3372 = vmatprep.subr.mxu0 0.0
    %3373 = vmatpush1.msra.mxu0 0.0
    %3374 = vmatprep.subr.mxu0 0.0
    %3375 = vmatpush1.msra.mxu0 0.0
    %3376 = vmatprep.subr.mxu0 0.0
    %3377 = vmatpush1.msra.mxu0 0.0
    %3378 = vmatprep.subr.mxu0 0.0
    %3379 = vmatpush1.msra.mxu0 0.0
    %3380 = vmatprep.subr.mxu0 0.0
    %3381 = vmatpush1.msra.mxu0 0.0
    %3382 = vmatprep.subr.mxu0 0.0
    %3383 = vmatpush1.msra.mxu0 0.0
    %3384 = vmatprep.subr.mxu0 0.0
    %3385 = vmatpush1.msra.mxu0 0.0
    %3386 = vmatprep.subr.mxu0 0.0
    %3387 = vmatpush1.msra.mxu0 0.0
    %3388 = vmatprep.subr.mxu0 0.0
    %3389 = vmatpush1.msra.mxu0 0.0
    %3390 = vmatprep.subr.mxu0 0.0
    %3391 = vmatpush1.msra.mxu0 0.0
    %3392 = vmatprep.subr.mxu0 0.0
    %3393 = vmatpush1.msra.mxu0 0.0
    %3394 = vmatprep.subr.mxu0 0.0
    %3395 = vmatpush1.msra.mxu0 0.0
    %3396 = vmatprep.subr.mxu0 0.0
    %3397 = vmatpush1.msra.mxu0 0.0
    %3398 = vmatprep.subr.mxu0 0.0
    %3399 = vmatpush1.msra.mxu0 0.0
    %3400 = vmatprep.subr.mxu0 0.0
    %3401 = vmatpush1.msra.mxu0 0.0
    %3402 = vmatprep.subr.mxu0 0.0
    %3403 = vmatpush1.msra.mxu0 0.0
    %3404 = vmatprep.subr.mxu0 0.0
    %3405 = vmatpush1.msra.mxu0 0.0
    %3406 = vmatprep.subr.mxu0 0.0
    %3407 = vmatpush1.msra.mxu0 0.0
    %3408 = vmatprep.subr.mxu0 0.0
    %3409 = vmatpush1.msra.mxu0 0.0
    %3410 = vmatprep.subr.mxu0 0.0
    %3411 = vmatpush1.msra.mxu0 0.0
    %3412 = vmatprep.subr.mxu0 0.0
    %3413 = vmatpush1.msra.mxu0 0.0
    %3414 = vmatprep.subr.mxu0 0.0
    %3415 = vmatpush1.msra.mxu0 0.0
    %3416 = vmatprep.subr.mxu0 0.0
    %3417 = vmatpush1.msra.mxu0 0.0
    %3418 = vmatprep.mubr.f32.mxu0 0.0
    %3419 = vmatmul.mubr.f32.gmra.mrb[0].mxu0 %v2194
    %v3420 = vpop.f32.mrb[0].mxu0
    %v3421 = vadd.f32 0.0, %v3420
    %v3422 = vpop.f32.mrb[0].mxu0
    %3423 = vmatprep.mubr.f32.mxu0 0.0
    %3424 = vmatmul.mubr.f32.gmra.mrb[0].mxu0 %v2197
    %v3425 = vpop.f32.mrb[0].mxu0
    %v3426 = vadd.f32 0.0, %v3425
    %v3427 = vpop.f32.mrb[0].mxu0
    %3428 = vmatprep.mubr.f32.mxu0 0.0
    %3429 = vmatmul.mubr.f32.gmra.mrb[0].mxu0 %v2200
    %v3430 = vpop.f32.mrb[0].mxu0
    %v3431 = vadd.f32 0.0, %v3430
    %v3432 = vpop.f32.mrb[0].mxu0
    %3433 = vmatprep.mubr.f32.mxu0 0.0
    %3434 = vmatmul.mubr.f32.gmra.mrb[0].mxu0 %v2203
    %v3435 = vpop.f32.mrb[0].mxu0
    %v3436 = vadd.f32 0.0, %v3435
    %v3437 = vpop.f32.mrb[0].mxu0
    %3438 = vmatprep.mubr.f32.mxu0 0.0
    %3439 = vmatmul.mubr.f32.gmra.mrb[0].mxu0 %v2206
    %v3440 = vpop.f32.mrb[0].mxu0
    %v3441 = vadd.f32 0.0, %v3440
    %v3442 = vpop.f32.mrb[0].mxu0
    %3443 = vmatprep.mubr.f32.mxu0 0.0
    %3444 = vmatmul.mubr.f32.gmra.mrb[0].mxu0 %v2209
    %v3445 = vpop.f32.mrb[0].mxu0
    %v3446 = vadd.f32 0.0, %v3445
    %v3447 = vpop.f32.mrb[0].mxu0
    %3448 = vmatprep.mubr.f32.mxu0 0.0
    %3449 = vmatmul.mubr.f32.gmra.mrb[0].mxu0 %v2212
    %v3450 = vpop.f32.mrb[0].mxu0
    %v3451 = vadd.f32 0.0, %v3450
    %v3452 = vpop.f32.mrb[0].mxu0
    %3453 = vmatprep.mubr.f32.mxu0 0.0
    %3454 = vmatmul.mubr.f32.gmra.mrb[0].mxu0 %v2215
    %v3455 = vpop.f32.mrb[0].mxu0
    %v3456 = vadd.f32 0.0, %v3455
    %v3457 = vpop.f32.mrb[0].mxu0
    %3458 = vmatprep.mubr.f32.mxu0 0.0
    %3459 = vmatmul.mubr.f32.gmra.mrb[0].mxu0 %v2218
    %v3460 = vpop.f32.mrb[0].mxu0
    %v3461 = vadd.f32 0.0, %v3460
    %v3462 = vpop.f32.mrb[0].mxu0
    %3463 = vmatprep.mubr.f32.mxu0 0.0
    %3464 = vmatmul.mubr.f32.gmra.mrb[0].mxu0 %v2221
    %v3465 = vpop.f32.mrb[0].mxu0
    %v3466 = vadd.f32 0.0, %v3465
    %v3467 = vpop.f32.mrb[0].mxu0
    %3468 = vmatprep.mubr.f32.mxu0 0.0
    %3469 = vmatmul.mubr.f32.gmra.mrb[0].mxu0 %v2224
    %v3470 = vpop.f32.mrb[0].mxu0
    %v3471 = vadd.f32 0.0, %v3470
    %v3472 = vpop.f32.mrb[0].mxu0
    %3473 = vmatprep.mubr.f32.mxu0 0.0
    %3474 = vmatmul.mubr.f32.gmra.mrb[0].mxu0 %v2227
    %v3475 = vpop.f32.mrb[0].mxu0
    %v3476 = vadd.f32 0.0, %v3475
    %v3477 = vpop.f32.mrb[0].mxu0
    %3478 = vdwg.mxu0
    %v3479 = vld [vmem:[%s1648] sm:$0xff]
    %v3480 = vld [vmem:[%s1648 + $0x8] sm:$0xff]
    %v3481 = vld [vmem:[%s1648 + $0x10] sm:$0xff]
    %v3482 = vld [vmem:[%s1648 + $0x18] sm:$0xff]
    %v3483 = vld [vmem:[%s1648 + $0x20] sm:$0xff]
    %v3484 = vld [vmem:[%s1648 + $0x28] sm:$0xff]
    %v3485 = vld [vmem:[%s1648 + $0x30] sm:$0xff]
    %v3486 = vld [vmem:[%s1648 + $0x38] sm:$0xff]
    %v3487 = vld [vmem:[%s1648 + $0x40] sm:$0xff]
    %v3488 = vld [vmem:[%s1648 + $0x48] sm:$0xff]
    %v3489 = vld [vmem:[%s1648 + $0x50] sm:$0xff]
    %v3490 = vld [vmem:[%s1648 + $0x58] sm:$0xff]
    %v3491 = vadd.f32 %v3479, %v3421
    %v3492 = vadd.f32 %v3480, %v3426
    %v3493 = vadd.f32 %v3481, %v3431
    %v3494 = vadd.f32 %v3482, %v3436
    %v3495 = vxor.u32 %v3491, 2147483648
    %v3496 = vxor.u32 %v3492, 2147483648
    %v3497 = vxor.u32 %v3493, 2147483648
    %v3498 = vxor.u32 %v3494, 2147483648
    %v3499 = vmul.f32 %v3495, 1.442695
    %v3500 = vpow.pop %v3499
    %v3501 = vmul.f32 %v3496, 1.442695
    %v3502 = vpow.pop %v3501
    %v3503 = vmul.f32 %v3497, 1.442695
    %v3504 = vpow.pop %v3503
    %v3505 = vmul.f32 %v3498, 1.442695
    %v3506 = vpow.pop %v3505
    %v3507 = vadd.f32 %v3500, 1.0
    %v3508 = vadd.f32 %v3502, 1.0
    %v3509 = vadd.f32 %v3504, 1.0
    %v3510 = vadd.f32 %v3506, 1.0
    %v3511 = vrcp.pop %v3507
    %v3512 = vmul.f32 1.0, %v3511
    %v3513 = vrcp.pop %v3508
    %v3514 = vmul.f32 1.0, %v3513
    %v3515 = vrcp.pop %v3509
    %v3516 = vmul.f32 1.0, %v3515
    %v3517 = vrcp.pop %v3510
    %v3518 = vmul.f32 1.0, %v3517
    %v3519 = vadd.f32 %v3483, %v3441
    %v3520 = vadd.f32 %v3484, %v3446
    %v3521 = vadd.f32 %v3485, %v3451
    %v3522 = vadd.f32 %v3486, %v3456
    %v3523 = vxor.u32 %v3519, 2147483648
    %v3524 = vxor.u32 %v3520, 2147483648
    %v3525 = vxor.u32 %v3521, 2147483648
    %v3526 = vxor.u32 %v3522, 2147483648
    %v3527 = vmul.f32 %v3523, 1.442695
    %v3528 = vpow.pop %v3527
    %v3529 = vmul.f32 %v3524, 1.442695
    %v3530 = vpow.pop %v3529
    %v3531 = vmul.f32 %v3525, 1.442695
    %v3532 = vpow.pop %v3531
    %v3533 = vmul.f32 %v3526, 1.442695
    %v3534 = vpow.pop %v3533
    %v3535 = vadd.f32 %v3528, 1.0
    %v3536 = vadd.f32 %v3530, 1.0
    %v3537 = vadd.f32 %v3532, 1.0
    %v3538 = vadd.f32 %v3534, 1.0
    %v3539 = vrcp.pop %v3535
    %v3540 = vmul.f32 1.0, %v3539
    %v3541 = vrcp.pop %v3536
    %v3542 = vmul.f32 1.0, %v3541
    %v3543 = vrcp.pop %v3537
    %v3544 = vmul.f32 1.0, %v3543
    %v3545 = vrcp.pop %v3538
    %v3546 = vmul.f32 1.0, %v3545
    %v3547 = vadd.f32 %v3461, %v2176
    %v3548 = vadd.f32 %v3466, %v2181
    %v3549 = vadd.f32 %v3471, %v2186
    %v3550 = vadd.f32 %v3476, %v2191
    %v3551 = vmul.f32 %v3512, %v3547
    %v3552 = vmul.f32 %v3514, %v3548
    %v3553 = vmul.f32 %v3516, %v3549
    %v3554 = vmul.f32 %v3518, %v3550
    %v3555 = vadd.f32 %v3487, %v3551
    %v3556 = vadd.f32 %v3488, %v3552
    %v3557 = vadd.f32 %v3489, %v3553
    %v3558 = vadd.f32 %v3490, %v3554
    %v3559 = vtanh.pop %v3555
    %v3560 = vtanh.pop %v3556
    %v3561 = vtanh.pop %v3557
    %v3562 = vtanh.pop %v3558
    %v3563 = vsub.f32 1.0, %v3540
    %v3564 = vsub.f32 1.0, %v3542
    %v3565 = vsub.f32 1.0, %v3544
    %v3566 = vsub.f32 1.0, %v3546
    %v3567 = vmul.f32 %v3563, %v3559
    %v3568 = vmul.f32 %v3564, %v3560
    %v3569 = vmul.f32 %v3565, %v3561
    %v3570 = vmul.f32 %v3566, %v3562
    %v3571 = vmul.f32 %v3540, %v3350
    %v3572 = vmul.f32 %v3542, %v3351
    %v3573 = vmul.f32 %v3544, %v3352
    %v3574 = vmul.f32 %v3546, %v3353
    %v3575 = vadd.f32 %v3567, %v3571
    %v3576 = vadd.f32 %v3568, %v3572
    %v3577 = vadd.f32 %v3569, %v3573
    %v3578 = vadd.f32 %v3570, %v3574
    %3579 = vmatprep.subr.mxu0 0.0
    %3580 = vmatpush1.msra.mxu0 %v3575
    %3581 = vmatprep.subr.mxu0 0.0
    %3582 = vmatpush1.msra.mxu0 %v3576
    %3583 = vmatprep.subr.mxu0 0.0
    %3584 = vmatpush1.msra.mxu0 %v3577
    %3585 = vmatprep.subr.mxu0 0.0
    %3586 = vmatpush1.msra.mxu0 %v3578
    %3587 = vmatprep.subr.mxu0 0.0
    %3588 = vmatpush1.msra.mxu0 0.0
    %3589 = vmatprep.subr.mxu0 0.0
    %3590 = vmatpush1.msra.mxu0 0.0
    %3591 = vmatprep.subr.mxu0 0.0
    %3592 = vmatpush1.msra.mxu0 0.0
    %3593 = vmatprep.subr.mxu0 0.0
    %3594 = vmatpush1.msra.mxu0 0.0
    %3595 = vmatprep.subr.mxu0 0.0
    %3596 = vmatpush1.msra.mxu0 0.0
    %3597 = vmatprep.subr.mxu0 0.0
    %3598 = vmatpush1.msra.mxu0 0.0
    %3599 = vmatprep.subr.mxu0 0.0
    %3600 = vmatpush1.msra.mxu0 0.0
    %3601 = vmatprep.subr.mxu0 0.0
    %3602 = vmatpush1.msra.mxu0 0.0
    %3603 = vmatprep.subr.mxu0 0.0
    %3604 = vmatpush1.msra.mxu0 0.0
    %3605 = vmatprep.subr.mxu0 0.0
    %3606 = vmatpush1.msra.mxu0 0.0
    %3607 = vmatprep.subr.mxu0 0.0
    %3608 = vmatpush1.msra.mxu0 0.0
    %3609 = vmatprep.subr.mxu0 0.0
    %3610 = vmatpush1.msra.mxu0 0.0
    %3611 = vmatprep.subr.mxu0 0.0
    %3612 = vmatpush1.msra.mxu0 0.0
    %3613 = vmatprep.subr.mxu0 0.0
    %3614 = vmatpush1.msra.mxu0 0.0
    %3615 = vmatprep.subr.mxu0 0.0
    %3616 = vmatpush1.msra.mxu0 0.0
    %3617 = vmatprep.subr.mxu0 0.0
    %3618 = vmatpush1.msra.mxu0 0.0
    %3619 = vmatprep.subr.mxu0 0.0
    %3620 = vmatpush1.msra.mxu0 0.0
    %3621 = vmatprep.subr.mxu0 0.0
    %3622 = vmatpush1.msra.mxu0 0.0
    %3623 = vmatprep.subr.mxu0 0.0
    %3624 = vmatpush1.msra.mxu0 0.0
    %3625 = vmatprep.subr.mxu0 0.0
    %3626 = vmatpush1.msra.mxu0 0.0
    %3627 = vmatprep.subr.mxu0 0.0
    %3628 = vmatpush1.msra.mxu0 0.0
    %3629 = vmatprep.subr.mxu0 0.0
    %3630 = vmatpush1.msra.mxu0 0.0
    %3631 = vmatprep.subr.mxu0 0.0
    %3632 = vmatpush1.msra.mxu0 0.0
    %3633 = vmatprep.subr.mxu0 0.0
    %3634 = vmatpush1.msra.mxu0 0.0
    %3635 = vmatprep.subr.mxu0 0.0
    %3636 = vmatpush1.msra.mxu0 0.0
    %3637 = vmatprep.subr.mxu0 0.0
    %3638 = vmatpush1.msra.mxu0 0.0
    %3639 = vmatprep.subr.mxu0 0.0
    %3640 = vmatpush1.msra.mxu0 0.0
    %3641 = vmatprep.subr.mxu0 0.0
    %3642 = vmatpush1.msra.mxu0 0.0
    %3643 = vmatprep.mubr.f32.mxu0 0.0
    %3644 = vmatmul.mubr.f32.gmra.mrb[0].mxu0 %v2194
    %v3645 = vpop.f32.mrb[0].mxu0
    %v3646 = vadd.f32 0.0, %v3645
    %v3647 = vpop.f32.mrb[0].mxu0
    %3648 = vmatprep.mubr.f32.mxu0 0.0
    %3649 = vmatmul.mubr.f32.gmra.mrb[0].mxu0 %v2197
    %v3650 = vpop.f32.mrb[0].mxu0
    %v3651 = vadd.f32 0.0, %v3650
    %v3652 = vpop.f32.mrb[0].mxu0
    %3653 = vmatprep.mubr.f32.mxu0 0.0
    %3654 = vmatmul.mubr.f32.gmra.mrb[0].mxu0 %v2200
    %v3655 = vpop.f32.mrb[0].mxu0
    %v3656 = vadd.f32 0.0, %v3655
    %v3657 = vpop.f32.mrb[0].mxu0
    %3658 = vmatprep.mubr.f32.mxu0 0.0
    %3659 = vmatmul.mubr.f32.gmra.mrb[0].mxu0 %v2203
    %v3660 = vpop.f32.mrb[0].mxu0
    %v3661 = vadd.f32 0.0, %v3660
    %v3662 = vpop.f32.mrb[0].mxu0
    %3663 = vmatprep.mubr.f32.mxu0 0.0
    %3664 = vmatmul.mubr.f32.gmra.mrb[0].mxu0 %v2206
    %v3665 = vpop.f32.mrb[0].mxu0
    %v3666 = vadd.f32 0.0, %v3665
    %v3667 = vpop.f32.mrb[0].mxu0
    %3668 = vmatprep.mubr.f32.mxu0 0.0
    %3669 = vmatmul.mubr.f32.gmra.mrb[0].mxu0 %v2209
    %v3670 = vpop.f32.mrb[0].mxu0
    %v3671 = vadd.f32 0.0, %v3670
    %v3672 = vpop.f32.mrb[0].mxu0
    %3673 = vmatprep.mubr.f32.mxu0 0.0
    %3674 = vmatmul.mubr.f32.gmra.mrb[0].mxu0 %v2212
    %v3675 = vpop.f32.mrb[0].mxu0
    %v3676 = vadd.f32 0.0, %v3675
    %v3677 = vpop.f32.mrb[0].mxu0
    %3678 = vmatprep.mubr.f32.mxu0 0.0
    %3679 = vmatmul.mubr.f32.gmra.mrb[0].mxu0 %v2215
    %v3680 = vpop.f32.mrb[0].mxu0
    %v3681 = vadd.f32 0.0, %v3680
    %v3682 = vpop.f32.mrb[0].mxu0
    %3683 = vmatprep.mubr.f32.mxu0 0.0
    %3684 = vmatmul.mubr.f32.gmra.mrb[0].mxu0 %v2218
    %v3685 = vpop.f32.mrb[0].mxu0
    %v3686 = vadd.f32 0.0, %v3685
    %v3687 = vpop.f32.mrb[0].mxu0
    %3688 = vmatprep.mubr.f32.mxu0 0.0
    %3689 = vmatmul.mubr.f32.gmra.mrb[0].mxu0 %v2221
    %v3690 = vpop.f32.mrb[0].mxu0
    %v3691 = vadd.f32 0.0, %v3690
    %v3692 = vpop.f32.mrb[0].mxu0
    %3693 = vmatprep.mubr.f32.mxu0 0.0
    %3694 = vmatmul.mubr.f32.gmra.mrb[0].mxu0 %v2224
    %v3695 = vpop.f32.mrb[0].mxu0
    %v3696 = vadd.f32 0.0, %v3695
    %v3697 = vpop.f32.mrb[0].mxu0
    %3698 = vmatprep.mubr.f32.mxu0 0.0
    %3699 = vmatmul.mubr.f32.gmra.mrb[0].mxu0 %v2227
    %v3700 = vpop.f32.mrb[0].mxu0
    %v3701 = vadd.f32 0.0, %v3700
    %v3702 = vpop.f32.mrb[0].mxu0
    %3703 = vdwg.mxu0
    %v3704 = vld [vmem:[%s1896] sm:$0xff]
    %v3705 = vld [vmem:[%s1896 + $0x8] sm:$0xff]
    %v3706 = vld [vmem:[%s1896 + $0x10] sm:$0xff]
    %v3707 = vld [vmem:[%s1896 + $0x18] sm:$0xff]
    %v3708 = vld [vmem:[%s1896 + $0x20] sm:$0xff]
    %v3709 = vld [vmem:[%s1896 + $0x28] sm:$0xff]
    %v3710 = vld [vmem:[%s1896 + $0x30] sm:$0xff]
    %v3711 = vld [vmem:[%s1896 + $0x38] sm:$0xff]
    %v3712 = vld [vmem:[%s1896 + $0x40] sm:$0xff]
    %v3713 = vld [vmem:[%s1896 + $0x48] sm:$0xff]
    %v3714 = vld [vmem:[%s1896 + $0x50] sm:$0xff]
    %v3715 = vld [vmem:[%s1896 + $0x58] sm:$0xff]
    %v3716 = vadd.f32 %v3704, %v3646
    %v3717 = vadd.f32 %v3705, %v3651
    %v3718 = vadd.f32 %v3706, %v3656
    %v3719 = vadd.f32 %v3707, %v3661
    %v3720 = vxor.u32 %v3716, 2147483648
    %v3721 = vxor.u32 %v3717, 2147483648
    %v3722 = vxor.u32 %v3718, 2147483648
    %v3723 = vxor.u32 %v3719, 2147483648
    %v3724 = vmul.f32 %v3720, 1.442695
    %v3725 = vpow.pop %v3724
    %v3726 = vmul.f32 %v3721, 1.442695
    %v3727 = vpow.pop %v3726
    %v3728 = vmul.f32 %v3722, 1.442695
    %v3729 = vpow.pop %v3728
    %v3730 = vmul.f32 %v3723, 1.442695
    %v3731 = vpow.pop %v3730
    %v3732 = vadd.f32 %v3725, 1.0
    %v3733 = vadd.f32 %v3727, 1.0
    %v3734 = vadd.f32 %v3729, 1.0
    %v3735 = vadd.f32 %v3731, 1.0
    %v3736 = vrcp.pop %v3732
    %v3737 = vmul.f32 1.0, %v3736
    %v3738 = vrcp.pop %v3733
    %v3739 = vmul.f32 1.0, %v3738
    %v3740 = vrcp.pop %v3734
    %v3741 = vmul.f32 1.0, %v3740
    %v3742 = vrcp.pop %v3735
    %v3743 = vmul.f32 1.0, %v3742
    %v3744 = vadd.f32 %v3708, %v3666
    %v3745 = vadd.f32 %v3709, %v3671
    %v3746 = vadd.f32 %v3710, %v3676
    %v3747 = vadd.f32 %v3711, %v3681
    %v3748 = vxor.u32 %v3744, 2147483648
    %v3749 = vxor.u32 %v3745, 2147483648
    %v3750 = vxor.u32 %v3746, 2147483648
    %v3751 = vxor.u32 %v3747, 2147483648
    %v3752 = vmul.f32 %v3748, 1.442695
    %v3753 = vpow.pop %v3752
    %v3754 = vmul.f32 %v3749, 1.442695
    %v3755 = vpow.pop %v3754
    %v3756 = vmul.f32 %v3750, 1.442695
    %v3757 = vpow.pop %v3756
    %v3758 = vmul.f32 %v3751, 1.442695
    %v3759 = vpow.pop %v3758
    %v3760 = vadd.f32 %v3753, 1.0
    %v3761 = vadd.f32 %v3755, 1.0
    %v3762 = vadd.f32 %v3757, 1.0
    %v3763 = vadd.f32 %v3759, 1.0
    %v3764 = vrcp.pop %v3760
    %v3765 = vmul.f32 1.0, %v3764
    %v3766 = vrcp.pop %v3761
    %v3767 = vmul.f32 1.0, %v3766
    %v3768 = vrcp.pop %v3762
    %v3769 = vmul.f32 1.0, %v3768
    %v3770 = vrcp.pop %v3763
    %v3771 = vmul.f32 1.0, %v3770
    %v3772 = vadd.f32 %v3686, %v2176
    %v3773 = vadd.f32 %v3691, %v2181
    %v3774 = vadd.f32 %v3696, %v2186
    %v3775 = vadd.f32 %v3701, %v2191
    %v3776 = vmul.f32 %v3737, %v3772
    %v3777 = vmul.f32 %v3739, %v3773
    %v3778 = vmul.f32 %v3741, %v3774
    %v3779 = vmul.f32 %v3743, %v3775
    %v3780 = vadd.f32 %v3712, %v3776
    %v3781 = vadd.f32 %v3713, %v3777
    %v3782 = vadd.f32 %v3714, %v3778
    %v3783 = vadd.f32 %v3715, %v3779
    %v3784 = vtanh.pop %v3780
    %v3785 = vtanh.pop %v3781
    %v3786 = vtanh.pop %v3782
    %v3787 = vtanh.pop %v3783
    %v3788 = vsub.f32 1.0, %v3765
    %v3789 = vsub.f32 1.0, %v3767
    %v3790 = vsub.f32 1.0, %v3769
    %v3791 = vsub.f32 1.0, %v3771
    %v3792 = vmul.f32 %v3788, %v3784
    %v3793 = vmul.f32 %v3789, %v3785
    %v3794 = vmul.f32 %v3790, %v3786
    %v3795 = vmul.f32 %v3791, %v3787
    %v3796 = vmul.f32 %v3765, %v3575
    %v3797 = vmul.f32 %v3767, %v3576
    %v3798 = vmul.f32 %v3769, %v3577
    %v3799 = vmul.f32 %v3771, %v3578
    %v3800 = vadd.f32 %v3792, %v3796
    %v3801 = vadd.f32 %v3793, %v3797
    %v3802 = vadd.f32 %v3794, %v3798
    %v3803 = vadd.f32 %v3795, %v3799
    %3804 = vmatprep.subr.mxu0 0.0
    %3805 = vmatpush1.msra.mxu0 %v3800
    %3806 = vmatprep.subr.mxu0 0.0
    %3807 = vmatpush1.msra.mxu0 %v3801
    %3808 = vmatprep.subr.mxu0 0.0
    %3809 = vmatpush1.msra.mxu0 %v3802
    %3810 = vmatprep.subr.mxu0 0.0
    %3811 = vmatpush1.msra.mxu0 %v3803
    %3812 = vmatprep.subr.mxu0 0.0
    %3813 = vmatpush1.msra.mxu0 0.0
    %3814 = vmatprep.subr.mxu0 0.0
    %3815 = vmatpush1.msra.mxu0 0.0
    %3816 = vmatprep.subr.mxu0 0.0
    %3817 = vmatpush1.msra.mxu0 0.0
    %3818 = vmatprep.subr.mxu0 0.0
    %3819 = vmatpush1.msra.mxu0 0.0
    %3820 = vmatprep.subr.mxu0 0.0
    %3821 = vmatpush1.msra.mxu0 0.0
    %3822 = vmatprep.subr.mxu0 0.0
    %3823 = vmatpush1.msra.mxu0 0.0
    %3824 = vmatprep.subr.mxu0 0.0
    %3825 = vmatpush1.msra.mxu0 0.0
    %3826 = vmatprep.subr.mxu0 0.0
    %3827 = vmatpush1.msra.mxu0 0.0
    %3828 = vmatprep.subr.mxu0 0.0
    %3829 = vmatpush1.msra.mxu0 0.0
    %3830 = vmatprep.subr.mxu0 0.0
    %3831 = vmatpush1.msra.mxu0 0.0
    %3832 = vmatprep.subr.mxu0 0.0
    %3833 = vmatpush1.msra.mxu0 0.0
    %3834 = vmatprep.subr.mxu0 0.0
    %3835 = vmatpush1.msra.mxu0 0.0
    %3836 = vmatprep.subr.mxu0 0.0
    %3837 = vmatpush1.msra.mxu0 0.0
    %3838 = vmatprep.subr.mxu0 0.0
    %3839 = vmatpush1.msra.mxu0 0.0
    %3840 = vmatprep.subr.mxu0 0.0
    %3841 = vmatpush1.msra.mxu0 0.0
    %3842 = vmatprep.subr.mxu0 0.0
    %3843 = vmatpush1.msra.mxu0 0.0
    %3844 = vmatprep.subr.mxu0 0.0
    %3845 = vmatpush1.msra.mxu0 0.0
    %3846 = vmatprep.subr.mxu0 0.0
    %3847 = vmatpush1.msra.mxu0 0.0
    %3848 = vmatprep.subr.mxu0 0.0
    %3849 = vmatpush1.msra.mxu0 0.0
    %3850 = vmatprep.subr.mxu0 0.0
    %3851 = vmatpush1.msra.mxu0 0.0
    %3852 = vmatprep.subr.mxu0 0.0
    %3853 = vmatpush1.msra.mxu0 0.0
    %3854 = vmatprep.subr.mxu0 0.0
    %3855 = vmatpush1.msra.mxu0 0.0
    %3856 = vmatprep.subr.mxu0 0.0
    %3857 = vmatpush1.msra.mxu0 0.0
    %3858 = vmatprep.subr.mxu0 0.0
    %3859 = vmatpush1.msra.mxu0 0.0
    %3860 = vmatprep.subr.mxu0 0.0
    %3861 = vmatpush1.msra.mxu0 0.0
    %3862 = vmatprep.subr.mxu0 0.0
    %3863 = vmatpush1.msra.mxu0 0.0
    %3864 = vmatprep.subr.mxu0 0.0
    %3865 = vmatpush1.msra.mxu0 0.0
    %3866 = vmatprep.subr.mxu0 0.0
    %3867 = vmatpush1.msra.mxu0 0.0
    %3868 = vmatprep.mubr.f32.mxu0 0.0
    %3869 = vmatmul.mubr.f32.gmra.mrb[0].mxu0 %v2194
    %v3870 = vpop.f32.mrb[0].mxu0
    %v3871 = vadd.f32 0.0, %v3870
    %v3872 = vpop.f32.mrb[0].mxu0
    %3873 = vmatprep.mubr.f32.mxu0 0.0
    %3874 = vmatmul.mubr.f32.gmra.mrb[0].mxu0 %v2197
    %v3875 = vpop.f32.mrb[0].mxu0
    %v3876 = vadd.f32 0.0, %v3875
    %v3877 = vpop.f32.mrb[0].mxu0
    %3878 = vmatprep.mubr.f32.mxu0 0.0
    %3879 = vmatmul.mubr.f32.gmra.mrb[0].mxu0 %v2200
    %v3880 = vpop.f32.mrb[0].mxu0
    %v3881 = vadd.f32 0.0, %v3880
    %v3882 = vpop.f32.mrb[0].mxu0
    %3883 = vmatprep.mubr.f32.mxu0 0.0
    %3884 = vmatmul.mubr.f32.gmra.mrb[0].mxu0 %v2203
    %v3885 = vpop.f32.mrb[0].mxu0
    %v3886 = vadd.f32 0.0, %v3885
    %v3887 = vpop.f32.mrb[0].mxu0
    %3888 = vmatprep.mubr.f32.mxu0 0.0
    %3889 = vmatmul.mubr.f32.gmra.mrb[0].mxu0 %v2206
    %v3890 = vpop.f32.mrb[0].mxu0
    %v3891 = vadd.f32 0.0, %v3890
    %v3892 = vpop.f32.mrb[0].mxu0
    %3893 = vmatprep.mubr.f32.mxu0 0.0
    %3894 = vmatmul.mubr.f32.gmra.mrb[0].mxu0 %v2209
    %v3895 = vpop.f32.mrb[0].mxu0
    %v3896 = vadd.f32 0.0, %v3895
    %v3897 = vpop.f32.mrb[0].mxu0
    %3898 = vmatprep.mubr.f32.mxu0 0.0
    %3899 = vmatmul.mubr.f32.gmra.mrb[0].mxu0 %v2212
    %v3900 = vpop.f32.mrb[0].mxu0
    %v3901 = vadd.f32 0.0, %v3900
    %v3902 = vpop.f32.mrb[0].mxu0
    %3903 = vmatprep.mubr.f32.mxu0 0.0
    %3904 = vmatmul.mubr.f32.gmra.mrb[0].mxu0 %v2215
    %v3905 = vpop.f32.mrb[0].mxu0
    %v3906 = vadd.f32 0.0, %v3905
    %v3907 = vpop.f32.mrb[0].mxu0
    %3908 = vmatprep.mubr.f32.mxu0 0.0
    %3909 = vmatmul.mubr.f32.gmra.mrb[0].mxu0 %v2218
    %v3910 = vpop.f32.mrb[0].mxu0
    %v3911 = vadd.f32 0.0, %v3910
    %v3912 = vpop.f32.mrb[0].mxu0
    %3913 = vmatprep.mubr.f32.mxu0 0.0
    %3914 = vmatmul.mubr.f32.gmra.mrb[0].mxu0 %v2221
    %v3915 = vpop.f32.mrb[0].mxu0
    %v3916 = vadd.f32 0.0, %v3915
    %v3917 = vpop.f32.mrb[0].mxu0
    %3918 = vmatprep.mubr.f32.mxu0 0.0
    %3919 = vmatmul.mubr.f32.gmra.mrb[0].mxu0 %v2224
    %v3920 = vpop.f32.mrb[0].mxu0
    %v3921 = vadd.f32 0.0, %v3920
    %v3922 = vpop.f32.mrb[0].mxu0
    %3923 = vmatprep.mubr.f32.mxu0 0.0
    %3924 = vmatmul.mubr.f32.gmra.mrb[0].mxu0 %v2227
    %v3925 = vpop.f32.mrb[0].mxu0
    %v3926 = vadd.f32 0.0, %v3925
    %v3927 = vpop.f32.mrb[0].mxu0
    %3928 = vdwg.mxu0
    %v3929 = vld [vmem:[%s2144] sm:$0xff]
    %v3930 = vld [vmem:[%s2144 + $0x8] sm:$0xff]
    %v3931 = vld [vmem:[%s2144 + $0x10] sm:$0xff]
    %v3932 = vld [vmem:[%s2144 + $0x18] sm:$0xff]
    %v3933 = vld [vmem:[%s2144 + $0x20] sm:$0xff]
    %v3934 = vld [vmem:[%s2144 + $0x28] sm:$0xff]
    %v3935 = vld [vmem:[%s2144 + $0x30] sm:$0xff]
    %v3936 = vld [vmem:[%s2144 + $0x38] sm:$0xff]
    %v3937 = vld [vmem:[%s2144 + $0x40] sm:$0xff]
    %v3938 = vld [vmem:[%s2144 + $0x48] sm:$0xff]
    %v3939 = vld [vmem:[%s2144 + $0x50] sm:$0xff]
    %v3940 = vld [vmem:[%s2144 + $0x58] sm:$0xff]
    %v3941 = vadd.f32 %v3929, %v3871
    %v3942 = vadd.f32 %v3930, %v3876
    %v3943 = vadd.f32 %v3931, %v3881
    %v3944 = vadd.f32 %v3932, %v3886
    %v3945 = vxor.u32 %v3941, 2147483648
    %v3946 = vxor.u32 %v3942, 2147483648
    %v3947 = vxor.u32 %v3943, 2147483648
    %v3948 = vxor.u32 %v3944, 2147483648
    %v3949 = vmul.f32 %v3945, 1.442695
    %v3950 = vpow.pop %v3949
    %v3951 = vmul.f32 %v3946, 1.442695
    %v3952 = vpow.pop %v3951
    %v3953 = vmul.f32 %v3947, 1.442695
    %v3954 = vpow.pop %v3953
    %v3955 = vmul.f32 %v3948, 1.442695
    %v3956 = vpow.pop %v3955
    %v3957 = vadd.f32 %v3950, 1.0
    %v3958 = vadd.f32 %v3952, 1.0
    %v3959 = vadd.f32 %v3954, 1.0
    %v3960 = vadd.f32 %v3956, 1.0
    %v3961 = vrcp.pop %v3957
    %v3962 = vmul.f32 1.0, %v3961
    %v3963 = vrcp.pop %v3958
    %v3964 = vmul.f32 1.0, %v3963
    %v3965 = vrcp.pop %v3959
    %v3966 = vmul.f32 1.0, %v3965
    %v3967 = vrcp.pop %v3960
    %v3968 = vmul.f32 1.0, %v3967
    %v3969 = vadd.f32 %v3933, %v3891
    %v3970 = vadd.f32 %v3934, %v3896
    %v3971 = vadd.f32 %v3935, %v3901
    %v3972 = vadd.f32 %v3936, %v3906
    %v3973 = vxor.u32 %v3969, 2147483648
    %v3974 = vxor.u32 %v3970, 2147483648
    %v3975 = vxor.u32 %v3971, 2147483648
    %v3976 = vxor.u32 %v3972, 2147483648
    %v3977 = vmul.f32 %v3973, 1.442695
    %v3978 = vpow.pop %v3977
    %v3979 = vmul.f32 %v3974, 1.442695
    %v3980 = vpow.pop %v3979
    %v3981 = vmul.f32 %v3975, 1.442695
    %v3982 = vpow.pop %v3981
    %v3983 = vmul.f32 %v3976, 1.442695
    %v3984 = vpow.pop %v3983
    %v3985 = vadd.f32 %v3978, 1.0
    %v3986 = vadd.f32 %v3980, 1.0
    %v3987 = vadd.f32 %v3982, 1.0
    %v3988 = vadd.f32 %v3984, 1.0
    %v3989 = vrcp.pop %v3985
    %v3990 = vmul.f32 1.0, %v3989
    %v3991 = vrcp.pop %v3986
    %v3992 = vmul.f32 1.0, %v3991
    %v3993 = vrcp.pop %v3987
    %v3994 = vmul.f32 1.0, %v3993
    %v3995 = vrcp.pop %v3988
    %v3996 = vmul.f32 1.0, %v3995
    %v3997 = vadd.f32 %v3911, %v2176
    %v3998 = vadd.f32 %v3916, %v2181
    %v3999 = vadd.f32 %v3921, %v2186
    %v4000 = vadd.f32 %v3926, %v2191
    %v4001 = vmul.f32 %v3962, %v3997
    %v4002 = vmul.f32 %v3964, %v3998
    %v4003 = vmul.f32 %v3966, %v3999
    %v4004 = vmul.f32 %v3968, %v4000
    %v4005 = vadd.f32 %v3937, %v4001
    %v4006 = vadd.f32 %v3938, %v4002
    %v4007 = vadd.f32 %v3939, %v4003
    %v4008 = vadd.f32 %v3940, %v4004
    %v4009 = vtanh.pop %v4005
    %v4010 = vtanh.pop %v4006
    %v4011 = vtanh.pop %v4007
    %v4012 = vtanh.pop %v4008
    %v4013 = vsub.f32 1.0, %v3990
    %v4014 = vsub.f32 1.0, %v3992
    %v4015 = vsub.f32 1.0, %v3994
    %v4016 = vsub.f32 1.0, %v3996
    %v4017 = vmul.f32 %v4013, %v4009
    %v4018 = vmul.f32 %v4014, %v4010
    %v4019 = vmul.f32 %v4015, %v4011
    %v4020 = vmul.f32 %v4016, %v4012
    %v4021 = vmul.f32 %v3990, %v3800
    %v4022 = vmul.f32 %v3992, %v3801
    %v4023 = vmul.f32 %v3994, %v3802
    %v4024 = vmul.f32 %v3996, %v3803
    %v4025 = vadd.f32 %v4017, %v4021
    %v4026 = vadd.f32 %v4018, %v4022
    %v4027 = vadd.f32 %v4019, %v4023
    %v4028 = vadd.f32 %v4020, %v4024
    %4029 = vst.msk [vmem:[%s9] sm:$0xff] %vm408, %v4025
    %4030 = vst.msk [vmem:[%s9 + $0x8] sm:$0xff] %vm408, %v4026
    %4031 = vst.msk [vmem:[%s9 + $0x10] sm:$0xff] %vm408, %v4027
    %4032 = vst.msk [vmem:[%s9 + $0x18] sm:$0xff] %vm408, %v4028
    %v4033 = vld [vmem:[%s6] sm:$0x7f]
    %v4034 = vld [vmem:[%s7] sm:$0x7f]
    %4036 = vset.pattern.permute.xlu0 0
    %4037 = vperm.xlu0 %4036, %v4034
    %v4038 = vpop.permute.xlu0 %4037
    %v4041 = vsel %vm246, %v4033, 0
    %4043 = vmatprep.subr.mxu0 0.0
    %4044 = vmatpush1.msra.mxu0 %v4025
    %4045 = vmatprep.subr.mxu0 0.0
    %4046 = vmatpush1.msra.mxu0 %v4026
    %4047 = vmatprep.subr.mxu0 0.0
    %4048 = vmatpush1.msra.mxu0 %v4027
    %4049 = vmatprep.subr.mxu0 0.0
    %4050 = vmatpush1.msra.mxu0 %v4028
    %4051 = vmatprep.subr.mxu0 0.0
    %4052 = vmatpush1.msra.mxu0 0.0
    %4053 = vmatprep.subr.mxu0 0.0
    %4054 = vmatpush1.msra.mxu0 0.0
    %4055 = vmatprep.subr.mxu0 0.0
    %4056 = vmatpush1.msra.mxu0 0.0
    %4057 = vmatprep.subr.mxu0 0.0
    %4058 = vmatpush1.msra.mxu0 0.0
    %4059 = vmatprep.subr.mxu0 0.0
    %4060 = vmatpush1.msra.mxu0 0.0
    %4061 = vmatprep.subr.mxu0 0.0
    %4062 = vmatpush1.msra.mxu0 0.0
    %4063 = vmatprep.subr.mxu0 0.0
    %4064 = vmatpush1.msra.mxu0 0.0
    %4065 = vmatprep.subr.mxu0 0.0
    %4066 = vmatpush1.msra.mxu0 0.0
    %4067 = vmatprep.subr.mxu0 0.0
    %4068 = vmatpush1.msra.mxu0 0.0
    %4069 = vmatprep.subr.mxu0 0.0
    %4070 = vmatpush1.msra.mxu0 0.0
    %4071 = vmatprep.subr.mxu0 0.0
    %4072 = vmatpush1.msra.mxu0 0.0
    %4073 = vmatprep.subr.mxu0 0.0
    %4074 = vmatpush1.msra.mxu0 0.0
    %4075 = vmatprep.subr.mxu0 0.0
    %4076 = vmatpush1.msra.mxu0 0.0
    %4077 = vmatprep.subr.mxu0 0.0
    %4078 = vmatpush1.msra.mxu0 0.0
    %4079 = vmatprep.subr.mxu0 0.0
    %4080 = vmatpush1.msra.mxu0 0.0
    %4081 = vmatprep.subr.mxu0 0.0
    %4082 = vmatpush1.msra.mxu0 0.0
    %4083 = vmatprep.subr.mxu0 0.0
    %4084 = vmatpush1.msra.mxu0 0.0
    %4085 = vmatprep.subr.mxu0 0.0
    %4086 = vmatpush1.msra.mxu0 0.0
    %4087 = vmatprep.subr.mxu0 0.0
    %4088 = vmatpush1.msra.mxu0 0.0
    %4089 = vmatprep.subr.mxu0 0.0
    %4090 = vmatpush1.msra.mxu0 0.0
    %4091 = vmatprep.subr.mxu0 0.0
    %4092 = vmatpush1.msra.mxu0 0.0
    %4093 = vmatprep.subr.mxu0 0.0
    %4094 = vmatpush1.msra.mxu0 0.0
    %4095 = vmatprep.subr.mxu0 0.0
    %4096 = vmatpush1.msra.mxu0 0.0
    %4097 = vmatprep.subr.mxu0 0.0
    %4098 = vmatpush1.msra.mxu0 0.0
    %4099 = vmatprep.subr.mxu0 0.0
    %4100 = vmatpush1.msra.mxu0 0.0
    %4101 = vmatprep.subr.mxu0 0.0
    %4102 = vmatpush1.msra.mxu0 0.0
    %4103 = vmatprep.subr.mxu0 0.0
    %4104 = vmatpush1.msra.mxu0 0.0
    %4105 = vmatprep.subr.mxu0 0.0
    %4106 = vmatpush1.msra.mxu0 0.0
    %4107 = vmatprep.mubr.f32.mxu0 0.0
    %4108 = vmatmul.mubr.f32.gmra.mrb[0].mxu0 %v4041
    %v4109 = vpop.f32.mrb[0].mxu0
    %v4110 = vadd.f32 %v4038, %v4109
    %v4111 = vpop.f32.mrb[0].mxu0
    %4112 = vdwg.mxu0
    %vm4113 = vcmask 63488
    %v4114 = vsel %vm4113, %v4110, -inf
    %v4115 = vrot.slane %v4114, 4
    %v4116 = vmax.f32 %v4114, %v4115
    %v4117 = vrot.slane %v4116, 2
    %v4118 = vmax.f32 %v4116, %v4117
    %v4119 = vrot.slane %v4118, 1
    %v4120 = vmax.f32 %v4118, %v4119
    %v4121 = vsub.f32 %v4110, %v4120
    %v4122 = vmul.f32 %v4121, 1.442695
    %v4123 = vpow.pop %v4122
    %v4124 = vsel %vm4113, %v4123, 0.0
    %v4125 = vrot.slane %v4124, 4
    %v4126 = vadd.f32 %v4124, %v4125
    %v4127 = vrot.slane %v4126, 2
    %v4128 = vadd.f32 %v4126, %v4127
    %v4129 = vrot.slane %v4128, 1
    %v4130 = vadd.f32 %v4128, %v4129
    %v4131 = vrcp.pop %v4130
    %v4132 = vmul.f32 %v4123, %v4131
    %vm4133 = vcmask 59392
    %v4134 = vsel %vm4133, %v4132, 0.0
    %v4135 = vrot.slane %v4134, 4
    %v4136 = vadd.f32 %v4134, %v4135
    %v4137 = vrot.slane %v4136, 2
    %v4138 = vadd.f32 %v4136, %v4137
    %v4139 = vrot.slane %v4138, 1
    %v4140 = vadd.f32 %v4138, %v4139
    %v4141 = vsub.f32 1.0, %v4140
    %vm4142 = vcmask 57344
    %4143 = vst.msk [vmem:[#allocation3] sm:$0x1] %vm4142, %v4141
    // Predicated region
    $region34: #{tpu_custom_call.1} parent=1 // pred_check
      _
    $region35: #{tpu_custom_call.1} parent=1 // pred_check_branch
      %4145 = sbr.rel (0) target = $region37
    $region36: #{tpu_custom_call.1} parent=1 // pred_region
      %s4147 = ssub.s32 16, 16
      %4148 = vsyncadd [#allocation4], %s4147
      %s4150 = sshll.u32 [#allocation3], 4
      %s4151 = int_to_ptr.vmem [resolvable:$true] %s4150
      %4153 = dma.vmem_to_hbm [thread:$0]  %s4151, 16, %s8, [#allocation4]
    $region37: #{tpu_custom_call.1} parent=1 // pred_fallthru
      _
    // Predicated region
    $region38: #{tpu_custom_call.1} parent=1 // pred_check
      _
    $region39: #{tpu_custom_call.1} parent=1 // pred_check_branch
      %4155 = sbr.rel (0) target = $region41
    $region40: #{tpu_custom_call.1} parent=1 // pred_region
      _
    $region41: #{tpu_custom_call.1} parent=1 // pred_fallthru
      _
    // Predicated region
    $region42: #{tpu_custom_call.1} parent=1 // pred_check
      _
    $region43: #{tpu_custom_call.1} parent=1 // pred_check_branch
      %4157 = sbr.rel (0) target = $region45
    $region44: #{tpu_custom_call.1} parent=1 // pred_region
      %4158 = dma.done [#allocation4], 16
    $region45: #{tpu_custom_call.1} parent=1 // pred_fallthru
      _
    // Predicated region
    $region46: #{tpu_custom_call.1} parent=1 // pred_check
      _
    $region47: #{tpu_custom_call.1} parent=1 // pred_check_branch
      %4160 = sbr.rel (0) target = $region49
    $region48: #{tpu_custom_call.1} parent=1 // pred_region
      _
    $region49: #{tpu_custom_call.1} parent=1 // pred_fallthru
      _
    %4161 = vsyncpa [#allocation4], 1

</llo_original>
